<compile_context>
chip_gen: v6e
topology: v6e:2x2x1
jax: 0.10.0
libtpu: 0.0.40
codegen_flags: <defaults>
</compile_context>

<pallas_src>
import math
import jax
import jax.numpy as jnp
from jax import lax
from jax.experimental import pallas as pl
from jax.experimental.pallas import tpu as pltpu

# ----------------------------- problem sizes --------------------------------
B, S, D = 2, 8, 32          # batch, seq, d_model
BS = B * S                  # batch folded into rows (sublanes)
H = 4                       # n_heads
DK = D // H                 # head dim
TCN_CH = [64, 64, 128]      # num_channels_large (hard-coded in the module)
KSIZE = 3                   # TCN kernel size
NCLUSTERS = 4               # LSKT.center_num
F32 = jnp.float32
NEG_INF = -1e32


# ================================ fused kernel ================================

def lskt_fused_kernel(
    # activations (B*S, D) + precomputed same-batch causal mask (B*S, B*S)
    q_emb_ref, s_emb_ref, q_att_ref, causal_ref,
    # TemporalBlock 0 (D -> 64): stacked conv taps, bias, 1x1 downsample, BN
    wc0_ref, bc0_ref, wd0_ref, bd0_ref, bns0_ref, bnb0_ref,
    # TemporalBlock 1 (64 -> 64): identity residual
    wc1_ref, bc1_ref, bns1_ref, bnb1_ref,
    # TemporalBlock 2 (64 -> 128): 1x1 downsample residual
    wc2_ref, bc2_ref, wd2_ref, bd2_ref, bns2_ref, bnb2_ref,
    # per-level Linear heads fused with the 1x1 deconv, stacked to (256, D)
    wh_ref, bh_ref,
    # cluster centers (D, K), LrState gammas (1, H)
    cent_ref, gam_ref,
    # DTransformerLayer (kq_same MHA) + LayerNorm
    wq_ref, bq_ref, wv_ref, bv_ref, wo_ref, bo_ref, lnw_ref, lnb_ref,
    # learning_1 weight stacked over the [sub, hs] concat (2D, D) + bias
    l1w_ref, l1b_ref,
    # single lane-dense output slab (B*S, 4*D): [sout | hs | sub | labels]
    out_ref,
):
    f32 = jnp.float32
    dn_last = (((1,), (1,)), ((), ()))           # contract last axis of both operands

    causal = causal_ref[...] > 0.5               # (BS, BS) bool, same-batch & tril(0)

    # row-validity masks for the causal taps (zero rows whose in-segment idx < k)
    rmod = jax.lax.broadcasted_iota(jnp.int32, (BS, 1), 0) % S
    m1 = (rmod >= 1).astype(f32)
    m2 = (rmod >= 2).astype(f32)

    def shift_concat(x):
        # [x[t], x[t-1], x[t-2]]: XLU sublane rolls + VPU row masks, lane-concat.
        x1 = pltpu.roll(x, shift=1, axis=0) * m1
        x2 = pltpu.roll(x, shift=2, axis=0) * m2
        return jnp.concatenate([x, x1, x2], axis=-1)

    def temporal_block(x, wc_ref, bc_ref, bns_ref, bnb_ref, wd_ref=None, bd_ref=None):
        """TemporalBlock + outer ReLU + L1-normalize (whole flattened batch)."""
        xs = shift_concat(x)                                           # (BS, 3*Cin)
        acc = jnp.dot(xs, wc_ref[...], preferred_element_type=f32)     # one deep matmul
        acc = jnp.maximum(acc + bc_ref[...], 0.0)                      # relu1 in .net
        if wd_ref is None:
            res = x                                                    # downsample None
        else:
            res = jnp.dot(x, wd_ref[...], preferred_element_type=f32) + bd_ref[...]
        y = (acc + res) * bns_ref[...] + bnb_ref[...]                  # eval BatchNorm1d
        xn = jnp.maximum(y, 0.0)                                       # per-level ReLU
        l1 = jnp.maximum(jnp.sum(xn, axis=-1, keepdims=True), 1e-12)   # xn>=0 => |xn|=xn
        out = xn * pl.reciprocal(l1, approx=True)                      # F.normalize(p=1)
        return xn, out

    # ------------------------------ TemporalConvNet ---------------------------
    x0 = s_emb_ref[...]
    x1, o0 = temporal_block(x0, wc0_ref, bc0_ref, bns0_ref, bnb0_ref, wd0_ref, bd0_ref)
    x2, o1 = temporal_block(x1, wc1_ref, bc1_ref, bns1_ref, bnb1_ref)
    _,  o2 = temporal_block(x2, wc2_ref, bc2_ref, bns2_ref, bnb2_ref, wd2_ref, bd2_ref)

    # per-level Linear heads + 1x1 deconv, fused at init: one (BS,256)x(256,D)
    o_all = jnp.concatenate([o0, o1, o2], axis=-1)
    sub = jnp.dot(o_all, wh_ref[...], preferred_element_type=f32) + bh_ref[...]

    # ------------------------------ Cluster -----------------------------------
    # TODO(synk): sklearn KMeans refit on the running state_pool is replaced by
    # deterministic nearest-center assignment to fixed centers; pool is dropped.
    c = cent_ref[...]                                                  # (D, K)
    d2 = (jnp.sum(c * c, axis=0, keepdims=True)
          - 2.0 * jnp.dot(sub, c, preferred_element_type=f32))         # ||x||^2 dropped
    kidx = jax.lax.broadcasted_iota(jnp.int32, d2.shape, 1)
    mind = jnp.min(d2, axis=-1, keepdims=True)
    labels = jnp.min(jnp.where(d2 <= mind, kidx, NCLUSTERS),
                     axis=-1, keepdims=True)                           # first argmin
    onehot = (labels == jax.lax.broadcasted_iota(jnp.int32, (BS, NCLUSTERS), 1)).astype(f32)
    same_cluster = lax.dot_general(onehot, onehot, dn_last,
                                   preferred_element_type=f32) > 0.5
    keep = jnp.logical_and(same_cluster, causal)

    # ---------------- LrState decay + MHA projections -------------------------
    te = jnp.clip(jnp.exp(-jax.nn.softplus(gam_ref[...])), 1e-5, 1e5)  # (1, H)
    q_in = q_att_ref[...]
    # Q and K share W_q (kq_same=True): one sublane-stacked (2*BS, D) matmul.
    qk = jnp.dot(jnp.concatenate([q_in, q_emb_ref[...]], axis=0), wq_ref[...],
                 preferred_element_type=f32) + bq_ref[...]
    Q, K = qk[:BS], qk[BS:]
    V = jnp.dot(s_emb_ref[...], wv_ref[...], preferred_element_type=f32) + bv_ref[...]

    inv_sqrt_dk = 1.0 / math.sqrt(DK)
    inv_sqrt_dm = 1.0 / math.sqrt(D)          # LrState divides by sqrt(d_model)
    heads = []
    for h in range(H):
        sl = slice(h * DK, (h + 1) * DK)
        # LrState bias for this head (computed in-loop, merged with attention)
        qh = sub[:, sl]
        lr = lax.dot_general(qh, qh, dn_last, preferred_element_type=f32) * inv_sqrt_dm
        lr = jnp.where(keep, lr * te[0:1, h:h + 1], 0.0)
        # masked attention scores (mask -> -1e32, add lr bias, re-mask == fused where)
        sc = lax.dot_general(Q[:, sl], K[:, sl], dn_last,
                             preferred_element_type=f32) * inv_sqrt_dk
        sc = jnp.where(causal, sc + lr, NEG_INF)
        m = jnp.max(sc, axis=-1, keepdims=True)
        p = jnp.exp(sc - m)
        p = p * pl.reciprocal(jnp.sum(p, axis=-1, keepdims=True), approx=True)
        p = jnp.where(causal, p, 0.0)                                  # masked_fill 0
        heads.append(jnp.dot(p, V[:, sl], preferred_element_type=f32))

    attn = jnp.dot(jnp.concatenate(heads, axis=-1), wo_ref[...],
                   preferred_element_type=f32) + bo_ref[...]
    xres = q_in + attn                                                 # dropout = id
    mu = jnp.mean(xres, axis=-1, keepdims=True)
    var = jnp.mean((xres - mu) ** 2, axis=-1, keepdims=True)
    hs = (xres - mu) * jax.lax.rsqrt(var + 1e-5) * lnw_ref[...] + lnb_ref[...]

    # ------------------------- learning_1(cat(sub, hs)) ------------------------
    sout = jnp.dot(jnp.concatenate([sub, hs], axis=-1), l1w_ref[...],
                   preferred_element_type=f32) + l1b_ref[...]

    # single lane-dense (BS, 128) output slab: [sout | hs | sub | labels-as-f32]
    lab_f = jnp.broadcast_to(labels.astype(f32), (BS, D))
    out_ref[...] = jnp.concatenate([sout, hs, sub, lab_f], axis=-1)


# ============================== pallas wrapper ================================

def lskt_forward(params, q_emb, s_emb, q_emb_att, lens):
    # `lens` only drives training-time random mask dropout -> unused in eval.
    del lens
    p = params
    args = (
        q_emb.reshape(BS, D), s_emb.reshape(BS, D), q_emb_att.reshape(BS, D),
        p['causal_mask'],
        p['wc0'], p['bc0'], p['wd0'], p['bd0'], p['bns0'], p['bnb0'],
        p['wc1'], p['bc1'], p['bns1'], p['bnb1'],
        p['wc2'], p['bc2'], p['wd2'], p['bd2'], p['bns2'], p['bnb2'],
        p['wh'], p['bh'], p['centers_t'], p['gammas'],
        p['wq'], p['bq'], p['wv'], p['bv'], p['wo'], p['bo'],
        p['ln_w'], p['ln_b'],
        p['l1w'], p['l1b'],
    )
    vmem = pl.BlockSpec(memory_space=pltpu.MemorySpace.VMEM)
    slab = pl.pallas_call(
        lskt_fused_kernel,
        out_shape=jax.ShapeDtypeStruct((BS, 4 * D), F32),
        in_specs=[vmem] * len(args),
        out_specs=vmem,
    )(*args)
    s_out = slab[:, 0 * D:1 * D].reshape(B, S, D)
    hs    = slab[:, 1 * D:2 * D].reshape(B, S, D)
    sub   = slab[:, 2 * D:3 * D].reshape(B, S, D)
    labels = slab[:, 3 * D].astype(jnp.int32).reshape(B, S)
    return s_out, hs, sub, labels


# ============================ parameter setup =================================

def init_params(key):
    keys = iter(jax.random.split(key, 64))

    def nrm(shape, scale=0.1):
        return (scale * jax.random.normal(next(keys), shape)).astype(F32)

    p = {}
    bn_scale = 1.0 / math.sqrt(1.0 + 1e-5)    # eval BatchNorm, default running stats
    cins = [D] + TCN_CH[:-1]
    for i, (cin, cout) in enumerate(zip(cins, TCN_CH)):
        # taps[j] multiplies x[t - (KSIZE-1-j)] (== torch W[:,:,j].T).
        taps = nrm((KSIZE, cin, cout), 0.05)
        # stacked rows match the in-kernel lane-concat order [x, x@-1, x@-2]:
        p[f'wc{i}'] = jnp.concatenate([taps[2], taps[1], taps[0]], axis=0)  # (3*Cin,Cout)
        p[f'bc{i}'] = nrm((1, cout), 0.05)
        p[f'bns{i}'] = jnp.full((1, cout), bn_scale, F32)
        p[f'bnb{i}'] = jnp.zeros((1, cout), F32)
        if cin != cout:                        # 1x1 downsample conv (with bias)
            p[f'wd{i}'] = nrm((cin, cout), 0.05)
            p[f'bd{i}'] = nrm((1, cout), 0.05)
        # else: downsample is None -> identity residual handled in-kernel.

    # per-level Linear heads + 1x1 deconv, fused & stacked once at init.
    wl = [nrm((c, D)) for c in TCN_CH]
    bl = [nrm((1, D), 0.05) for _ in TCN_CH]
    wd_split = [nrm((D, D)) for _ in TCN_CH]   # deconv weight (3D, D), split per level
    bh = nrm((1, D), 0.05)                     # deconv bias
    wh_parts = []
    for i in range(len(TCN_CH)):
        wh_parts.append((wl[i] @ wd_split[i]).astype(F32))
        bh = bh + bl[i] @ wd_split[i]
    p['wh'] = jnp.concatenate(wh_parts, axis=0)        # (sum(TCN_CH)=256, D)
    p['bh'] = bh.astype(F32)

    p['centers_t'] = jax.random.normal(next(keys), (D, NCLUSTERS)).astype(F32)
    p['gammas'] = nrm((1, H), 0.5)
    p['wq'] = nrm((D, D)); p['bq'] = nrm((1, D), 0.05)
    p['wv'] = nrm((D, D)); p['bv'] = nrm((1, D), 0.05)
    p['wo'] = nrm((D, D)); p['bo'] = nrm((1, D), 0.05)
    p['ln_w'] = jnp.ones((1, D), F32)
    p['ln_b'] = jnp.zeros((1, D), F32)
    # learning_1 weight stacked over the [sub, hs] concat -> single matmul in-kernel
    p['l1w'] = jnp.concatenate([nrm((D, D)), nrm((D, D))], axis=0)      # (2D, D)
    p['l1b'] = nrm((1, D), 0.05)

    # constant same-batch causal (peek_cur=True -> tril(0)) mask, hoisted to init
    r = jnp.arange(BS)
    same_b = (r[:, None] // S) == (r[None, :] // S)
    tril = (r[:, None] % S) >= (r[None, :] % S)
    p['causal_mask'] = (same_b & tril).astype(F32)
    return p


# ================================== main ======================================

if __name__ == "__main__":
    key = jax.random.PRNGKey(0)
    kp, k1, k2, k3 = jax.random.split(key, 4)
    params = init_params(kp)
    q_emb = jax.random.normal(k1, (B, S, D), dtype=F32)
    s_emb = jax.random.normal(k2, (B, S, D), dtype=F32)
    q_emb_att = jax.random.normal(k3, (B, S, D), dtype=F32)
    lens = jnp.full((B,), S, dtype=jnp.int32)

    fwd = jax.jit(lskt_forward)
    outs = fwd(params, q_emb, s_emb, q_emb_att, lens)
    jax.block_until_ready(outs)
    s_out, hs, sub, labels = outs
    assert s_out.shape == (B, S, D) and hs.shape == (B, S, D)
    assert sub.shape == (B, S, D) and labels.shape == (B, S)
    assert bool(jnp.all(jnp.isfinite(s_out))) and bool(jnp.all(jnp.isfinite(hs)))
    assert bool(jnp.all((labels >= 0) & (labels < NCLUSTERS)))
    print("KERNEL_OK")
</pallas_src>

<mosaic_0001>
module attributes {stable_mosaic.version = 11 : i64} {
  func.func @lskt_fused_kernel(%arg0: memref<16x32xf32, #tpu.memory_space<vmem>>, %arg1: memref<16x32xf32, #tpu.memory_space<vmem>>, %arg2: memref<16x32xf32, #tpu.memory_space<vmem>>, %arg3: memref<16x16xf32, #tpu.memory_space<vmem>>, %arg4: memref<96x64xf32, #tpu.memory_space<vmem>>, %arg5: memref<1x64xf32, #tpu.memory_space<vmem>>, %arg6: memref<32x64xf32, #tpu.memory_space<vmem>>, %arg7: memref<1x64xf32, #tpu.memory_space<vmem>>, %arg8: memref<1x64xf32, #tpu.memory_space<vmem>>, %arg9: memref<1x64xf32, #tpu.memory_space<vmem>>, %arg10: memref<192x64xf32, #tpu.memory_space<vmem>>, %arg11: memref<1x64xf32, #tpu.memory_space<vmem>>, %arg12: memref<1x64xf32, #tpu.memory_space<vmem>>, %arg13: memref<1x64xf32, #tpu.memory_space<vmem>>, %arg14: memref<192x128xf32, #tpu.memory_space<vmem>>, %arg15: memref<1x128xf32, #tpu.memory_space<vmem>>, %arg16: memref<64x128xf32, #tpu.memory_space<vmem>>, %arg17: memref<1x128xf32, #tpu.memory_space<vmem>>, %arg18: memref<1x128xf32, #tpu.memory_space<vmem>>, %arg19: memref<1x128xf32, #tpu.memory_space<vmem>>, %arg20: memref<256x32xf32, #tpu.memory_space<vmem>>, %arg21: memref<1x32xf32, #tpu.memory_space<vmem>>, %arg22: memref<32x4xf32, #tpu.memory_space<vmem>>, %arg23: memref<1x4xf32, #tpu.memory_space<vmem>>, %arg24: memref<32x32xf32, #tpu.memory_space<vmem>>, %arg25: memref<1x32xf32, #tpu.memory_space<vmem>>, %arg26: memref<32x32xf32, #tpu.memory_space<vmem>>, %arg27: memref<1x32xf32, #tpu.memory_space<vmem>>, %arg28: memref<32x32xf32, #tpu.memory_space<vmem>>, %arg29: memref<1x32xf32, #tpu.memory_space<vmem>>, %arg30: memref<1x32xf32, #tpu.memory_space<vmem>>, %arg31: memref<1x32xf32, #tpu.memory_space<vmem>>, %arg32: memref<64x32xf32, #tpu.memory_space<vmem>>, %arg33: memref<1x32xf32, #tpu.memory_space<vmem>>, %arg34: memref<16x128xf32, #tpu.memory_space<vmem>>) attributes {dimension_semantics = [], scalar_prefetch = 0 : i64, scratch_operands = 0 : i64, tpu.core_type = #tpu.core_type<tc>} {
    %c0 = arith.constant 0 : index
    %c0_0 = arith.constant 0 : index
    %0 = vector.load %arg3[%c0, %c0_0] : memref<16x16xf32, #tpu.memory_space<vmem>>, vector<16x16xf32>
    %cst = arith.constant 5.000000e-01 : f32
    %1 = vector.broadcast %cst : f32 to vector<16x16xf32>
    %2 = arith.cmpf ogt, %0, %1 : vector<16x16xf32>
    %3 = tpu.iota {dimensions = array<i32: 0>} : vector<16x1xi32>
    %c8_i32 = arith.constant 8 : i32
    %c0_i32 = arith.constant 0 : i32
    %4 = arith.cmpi eq, %c8_i32, %c0_i32 : i32
    %c1_i32 = arith.constant 1 : i32
    %5 = arith.select %4, %c1_i32, %c8_i32 : i32
    %6 = vector.broadcast %5 : i32 to vector<16x1xi32>
    %7 = arith.remsi %3, %6 : vector<16x1xi32>
    %c0_i32_1 = arith.constant 0 : i32
    %8 = vector.broadcast %c0_i32_1 : i32 to vector<16x1xi32>
    %9 = arith.cmpi ne, %7, %8 : vector<16x1xi32>
    %c0_i32_2 = arith.constant 0 : i32
    %10 = vector.broadcast %c0_i32_2 : i32 to vector<16x1xi32>
    %11 = arith.cmpi slt, %7, %10 : vector<16x1xi32>
    %c0_i32_3 = arith.constant 0 : i32
    %12 = arith.cmpi slt, %5, %c0_i32_3 : i32
    %13 = vector.broadcast %12 : i1 to vector<16x1xi1>
    %14 = vector.broadcast %13 : vector<16x1xi1> to vector<16x1xi1>
    %15 = arith.xori %11, %14 : vector<16x1xi1>
    %16 = arith.andi %15, %9 : vector<16x1xi1>
    %17 = vector.broadcast %5 : i32 to vector<16x1xi32>
    %18 = arith.addi %7, %17 : vector<16x1xi32>
    %19 = arith.select %16, %18, %7 : vector<16x1xi1>, vector<16x1xi32>
    %c1_i32_4 = arith.constant 1 : i32
    %20 = vector.broadcast %c1_i32_4 : i32 to vector<16x1xi32>
    %21 = arith.cmpi sge, %19, %20 : vector<16x1xi32>
    %22 = arith.extui %21 : vector<16x1xi1> to vector<16x1xi32>
    %23 = arith.sitofp %22 : vector<16x1xi32> to vector<16x1xf32>
    %c2_i32 = arith.constant 2 : i32
    %24 = vector.broadcast %c2_i32 : i32 to vector<16x1xi32>
    %25 = arith.cmpi sge, %19, %24 : vector<16x1xi32>
    %26 = arith.extui %25 : vector<16x1xi1> to vector<16x1xi32>
    %27 = arith.sitofp %26 : vector<16x1xi32> to vector<16x1xf32>
    %c0_5 = arith.constant 0 : index
    %c0_6 = arith.constant 0 : index
    %28 = vector.load %arg1[%c0_5, %c0_6] : memref<16x32xf32, #tpu.memory_space<vmem>>, vector<16x32xf32>
    %c1_i32_7 = arith.constant 1 : i32
    %29 = tpu.dynamic_rotate %28 by %c1_i32_7 dim 0 : vector<16x32xf32>, i32 -> vector<16x32xf32>
    %30 = vector.broadcast %23 : vector<16x1xf32> to vector<16x32xf32>
    %31 = arith.mulf %29, %30 : vector<16x32xf32>
    %c2_i32_8 = arith.constant 2 : i32
    %32 = tpu.dynamic_rotate %28 by %c2_i32_8 dim 0 : vector<16x32xf32>, i32 -> vector<16x32xf32>
    %33 = vector.broadcast %27 : vector<16x1xf32> to vector<16x32xf32>
    %34 = arith.mulf %32, %33 : vector<16x32xf32>
    %35 = tpu.concatenate %28, %31, %34 in 1 : vector<16x32xf32>, vector<16x32xf32>, vector<16x32xf32> -> vector<16x96xf32>
    %c0_9 = arith.constant 0 : index
    %c0_10 = arith.constant 0 : index
    %36 = vector.load %arg4[%c0_9, %c0_10] : memref<96x64xf32, #tpu.memory_space<vmem>>, vector<96x64xf32>
    %cst_11 = arith.constant dense<0.000000e+00> : vector<16x64xf32>
    %37 = tpu.matmul %35, %36, %cst_11 {dimension_numbers = #tpu.dot_dimension_numbers<[1], [0], [0], [1], [0, 0, 1, 1], [], []>} : vector<16x96xf32>, vector<96x64xf32>, vector<16x64xf32> -> vector<16x64xf32>
    %c0_12 = arith.constant 0 : index
    %c0_13 = arith.constant 0 : index
    %38 = vector.load %arg5[%c0_12, %c0_13] : memref<1x64xf32, #tpu.memory_space<vmem>>, vector<1x64xf32>
    %39 = vector.broadcast %38 : vector<1x64xf32> to vector<16x64xf32>
    %40 = arith.addf %37, %39 : vector<16x64xf32>
    %cst_14 = arith.constant 0.000000e+00 : f32
    %41 = vector.broadcast %cst_14 : f32 to vector<16x64xf32>
    %42 = arith.maximumf %40, %41 : vector<16x64xf32>
    %c0_15 = arith.constant 0 : index
    %c0_16 = arith.constant 0 : index
    %43 = vector.load %arg6[%c0_15, %c0_16] : memref<32x64xf32, #tpu.memory_space<vmem>>, vector<32x64xf32>
    %cst_17 = arith.constant dense<0.000000e+00> : vector<16x64xf32>
    %44 = tpu.matmul %28, %43, %cst_17 {dimension_numbers = #tpu.dot_dimension_numbers<[1], [0], [0], [1], [0, 0, 1, 1], [], []>} : vector<16x32xf32>, vector<32x64xf32>, vector<16x64xf32> -> vector<16x64xf32>
    %c0_18 = arith.constant 0 : index
    %c0_19 = arith.constant 0 : index
    %45 = vector.load %arg7[%c0_18, %c0_19] : memref<1x64xf32, #tpu.memory_space<vmem>>, vector<1x64xf32>
    %46 = vector.broadcast %45 : vector<1x64xf32> to vector<16x64xf32>
    %47 = arith.addf %44, %46 : vector<16x64xf32>
    %48 = arith.addf %42, %47 : vector<16x64xf32>
    %c0_20 = arith.constant 0 : index
    %c0_21 = arith.constant 0 : index
    %49 = vector.load %arg8[%c0_20, %c0_21] : memref<1x64xf32, #tpu.memory_space<vmem>>, vector<1x64xf32>
    %50 = vector.broadcast %49 : vector<1x64xf32> to vector<16x64xf32>
    %51 = arith.mulf %48, %50 : vector<16x64xf32>
    %c0_22 = arith.constant 0 : index
    %c0_23 = arith.constant 0 : index
    %52 = vector.load %arg9[%c0_22, %c0_23] : memref<1x64xf32, #tpu.memory_space<vmem>>, vector<1x64xf32>
    %53 = vector.broadcast %52 : vector<1x64xf32> to vector<16x64xf32>
    %54 = arith.addf %51, %53 : vector<16x64xf32>
    %cst_24 = arith.constant 0.000000e+00 : f32
    %55 = vector.broadcast %cst_24 : f32 to vector<16x64xf32>
    %56 = arith.maximumf %54, %55 : vector<16x64xf32>
    %cst_25 = arith.constant dense<0.000000e+00> : vector<16xf32>
    %57 = vector.multi_reduction <add>, %56, %cst_25 [1] : vector<16x64xf32> to vector<16xf32>
    %58 = vector.shape_cast %57 : vector<16xf32> to vector<16x1xf32>
    %cst_26 = arith.constant 9.99999996E-13 : f32
    %59 = vector.broadcast %cst_26 : f32 to vector<16x1xf32>
    %60 = arith.maximumf %58, %59 : vector<16x1xf32>
    %61 = tpu.reciprocal %60 {approx = true} : vector<16x1xf32> -> vector<16x1xf32>
    %62 = vector.broadcast %61 : vector<16x1xf32> to vector<16x64xf32>
    %63 = arith.mulf %56, %62 : vector<16x64xf32>
    %c1_i32_27 = arith.constant 1 : i32
    %64 = tpu.dynamic_rotate %56 by %c1_i32_27 dim 0 : vector<16x64xf32>, i32 -> vector<16x64xf32>
    %65 = vector.broadcast %23 : vector<16x1xf32> to vector<16x64xf32>
    %66 = arith.mulf %64, %65 : vector<16x64xf32>
    %c2_i32_28 = arith.constant 2 : i32
    %67 = tpu.dynamic_rotate %56 by %c2_i32_28 dim 0 : vector<16x64xf32>, i32 -> vector<16x64xf32>
    %68 = vector.broadcast %27 : vector<16x1xf32> to vector<16x64xf32>
    %69 = arith.mulf %67, %68 : vector<16x64xf32>
    %70 = tpu.concatenate %56, %66, %69 in 1 : vector<16x64xf32>, vector<16x64xf32>, vector<16x64xf32> -> vector<16x192xf32>
    %c0_29 = arith.constant 0 : index
    %c0_30 = arith.constant 0 : index
    %71 = vector.load %arg10[%c0_29, %c0_30] : memref<192x64xf32, #tpu.memory_space<vmem>>, vector<192x64xf32>
    %cst_31 = arith.constant dense<0.000000e+00> : vector<16x64xf32>
    %72 = tpu.matmul %70, %71, %cst_31 {dimension_numbers = #tpu.dot_dimension_numbers<[1], [0], [0], [1], [0, 0, 1, 1], [], []>} : vector<16x192xf32>, vector<192x64xf32>, vector<16x64xf32> -> vector<16x64xf32>
    %c0_32 = arith.constant 0 : index
    %c0_33 = arith.constant 0 : index
    %73 = vector.load %arg11[%c0_32, %c0_33] : memref<1x64xf32, #tpu.memory_space<vmem>>, vector<1x64xf32>
    %74 = vector.broadcast %73 : vector<1x64xf32> to vector<16x64xf32>
    %75 = arith.addf %72, %74 : vector<16x64xf32>
    %cst_34 = arith.constant 0.000000e+00 : f32
    %76 = vector.broadcast %cst_34 : f32 to vector<16x64xf32>
    %77 = arith.maximumf %75, %76 : vector<16x64xf32>
    %78 = arith.addf %77, %56 : vector<16x64xf32>
    %c0_35 = arith.constant 0 : index
    %c0_36 = arith.constant 0 : index
    %79 = vector.load %arg12[%c0_35, %c0_36] : memref<1x64xf32, #tpu.memory_space<vmem>>, vector<1x64xf32>
    %80 = vector.broadcast %79 : vector<1x64xf32> to vector<16x64xf32>
    %81 = arith.mulf %78, %80 : vector<16x64xf32>
    %c0_37 = arith.constant 0 : index
    %c0_38 = arith.constant 0 : index
    %82 = vector.load %arg13[%c0_37, %c0_38] : memref<1x64xf32, #tpu.memory_space<vmem>>, vector<1x64xf32>
    %83 = vector.broadcast %82 : vector<1x64xf32> to vector<16x64xf32>
    %84 = arith.addf %81, %83 : vector<16x64xf32>
    %cst_39 = arith.constant 0.000000e+00 : f32
    %85 = vector.broadcast %cst_39 : f32 to vector<16x64xf32>
    %86 = arith.maximumf %84, %85 : vector<16x64xf32>
    %cst_40 = arith.constant dense<0.000000e+00> : vector<16xf32>
    %87 = vector.multi_reduction <add>, %86, %cst_40 [1] : vector<16x64xf32> to vector<16xf32>
    %88 = vector.shape_cast %87 : vector<16xf32> to vector<16x1xf32>
    %cst_41 = arith.constant 9.99999996E-13 : f32
    %89 = vector.broadcast %cst_41 : f32 to vector<16x1xf32>
    %90 = arith.maximumf %88, %89 : vector<16x1xf32>
    %91 = tpu.reciprocal %90 {approx = true} : vector<16x1xf32> -> vector<16x1xf32>
    %92 = vector.broadcast %91 : vector<16x1xf32> to vector<16x64xf32>
    %93 = arith.mulf %86, %92 : vector<16x64xf32>
    %c1_i32_42 = arith.constant 1 : i32
    %94 = tpu.dynamic_rotate %86 by %c1_i32_42 dim 0 : vector<16x64xf32>, i32 -> vector<16x64xf32>
    %95 = vector.broadcast %23 : vector<16x1xf32> to vector<16x64xf32>
    %96 = arith.mulf %94, %95 : vector<16x64xf32>
    %c2_i32_43 = arith.constant 2 : i32
    %97 = tpu.dynamic_rotate %86 by %c2_i32_43 dim 0 : vector<16x64xf32>, i32 -> vector<16x64xf32>
    %98 = vector.broadcast %27 : vector<16x1xf32> to vector<16x64xf32>
    %99 = arith.mulf %97, %98 : vector<16x64xf32>
    %100 = tpu.concatenate %86, %96, %99 in 1 : vector<16x64xf32>, vector<16x64xf32>, vector<16x64xf32> -> vector<16x192xf32>
    %c0_44 = arith.constant 0 : index
    %c0_45 = arith.constant 0 : index
    %101 = vector.load %arg14[%c0_44, %c0_45] : memref<192x128xf32, #tpu.memory_space<vmem>>, vector<192x128xf32>
    %cst_46 = arith.constant dense<0.000000e+00> : vector<16x128xf32>
    %102 = tpu.matmul %100, %101, %cst_46 {dimension_numbers = #tpu.dot_dimension_numbers<[1], [0], [0], [1], [0, 0, 1, 1], [], []>} : vector<16x192xf32>, vector<192x128xf32>, vector<16x128xf32> -> vector<16x128xf32>
    %c0_47 = arith.constant 0 : index
    %c0_48 = arith.constant 0 : index
    %103 = vector.load %arg15[%c0_47, %c0_48] : memref<1x128xf32, #tpu.memory_space<vmem>>, vector<1x128xf32>
    %104 = vector.broadcast %103 : vector<1x128xf32> to vector<16x128xf32>
    %105 = arith.addf %102, %104 : vector<16x128xf32>
    %cst_49 = arith.constant 0.000000e+00 : f32
    %106 = vector.broadcast %cst_49 : f32 to vector<16x128xf32>
    %107 = arith.maximumf %105, %106 : vector<16x128xf32>
    %c0_50 = arith.constant 0 : index
    %c0_51 = arith.constant 0 : index
    %108 = vector.load %arg16[%c0_50, %c0_51] : memref<64x128xf32, #tpu.memory_space<vmem>>, vector<64x128xf32>
    %cst_52 = arith.constant dense<0.000000e+00> : vector<16x128xf32>
    %109 = tpu.matmul %86, %108, %cst_52 {dimension_numbers = #tpu.dot_dimension_numbers<[1], [0], [0], [1], [0, 0, 1, 1], [], []>} : vector<16x64xf32>, vector<64x128xf32>, vector<16x128xf32> -> vector<16x128xf32>
    %c0_53 = arith.constant 0 : index
    %c0_54 = arith.constant 0 : index
    %110 = vector.load %arg17[%c0_53, %c0_54] : memref<1x128xf32, #tpu.memory_space<vmem>>, vector<1x128xf32>
    %111 = vector.broadcast %110 : vector<1x128xf32> to vector<16x128xf32>
    %112 = arith.addf %109, %111 : vector<16x128xf32>
    %113 = arith.addf %107, %112 : vector<16x128xf32>
    %c0_55 = arith.constant 0 : index
    %c0_56 = arith.constant 0 : index
    %114 = vector.load %arg18[%c0_55, %c0_56] : memref<1x128xf32, #tpu.memory_space<vmem>>, vector<1x128xf32>
    %115 = vector.broadcast %114 : vector<1x128xf32> to vector<16x128xf32>
    %116 = arith.mulf %113, %115 : vector<16x128xf32>
    %c0_57 = arith.constant 0 : index
    %c0_58 = arith.constant 0 : index
    %117 = vector.load %arg19[%c0_57, %c0_58] : memref<1x128xf32, #tpu.memory_space<vmem>>, vector<1x128xf32>
    %118 = vector.broadcast %117 : vector<1x128xf32> to vector<16x128xf32>
    %119 = arith.addf %116, %118 : vector<16x128xf32>
    %cst_59 = arith.constant 0.000000e+00 : f32
    %120 = vector.broadcast %cst_59 : f32 to vector<16x128xf32>
    %121 = arith.maximumf %119, %120 : vector<16x128xf32>
    %cst_60 = arith.constant dense<0.000000e+00> : vector<16xf32>
    %122 = vector.multi_reduction <add>, %121, %cst_60 [1] : vector<16x128xf32> to vector<16xf32>
    %123 = vector.shape_cast %122 : vector<16xf32> to vector<16x1xf32>
    %cst_61 = arith.constant 9.99999996E-13 : f32
    %124 = vector.broadcast %cst_61 : f32 to vector<16x1xf32>
    %125 = arith.maximumf %123, %124 : vector<16x1xf32>
    %126 = tpu.reciprocal %125 {approx = true} : vector<16x1xf32> -> vector<16x1xf32>
    %127 = vector.broadcast %126 : vector<16x1xf32> to vector<16x128xf32>
    %128 = arith.mulf %121, %127 : vector<16x128xf32>
    %129 = tpu.concatenate %63, %93, %128 in 1 : vector<16x64xf32>, vector<16x64xf32>, vector<16x128xf32> -> vector<16x256xf32>
    %c0_62 = arith.constant 0 : index
    %c0_63 = arith.constant 0 : index
    %130 = vector.load %arg20[%c0_62, %c0_63] : memref<256x32xf32, #tpu.memory_space<vmem>>, vector<256x32xf32>
    %cst_64 = arith.constant dense<0.000000e+00> : vector<16x32xf32>
    %131 = tpu.matmul %129, %130, %cst_64 {dimension_numbers = #tpu.dot_dimension_numbers<[1], [0], [0], [1], [0, 0, 1, 1], [], []>} : vector<16x256xf32>, vector<256x32xf32>, vector<16x32xf32> -> vector<16x32xf32>
    %c0_65 = arith.constant 0 : index
    %c0_66 = arith.constant 0 : index
    %132 = vector.load %arg21[%c0_65, %c0_66] : memref<1x32xf32, #tpu.memory_space<vmem>>, vector<1x32xf32>
    %133 = vector.broadcast %132 : vector<1x32xf32> to vector<16x32xf32>
    %134 = arith.addf %131, %133 : vector<16x32xf32>
    %c0_67 = arith.constant 0 : index
    %c0_68 = arith.constant 0 : index
    %135 = vector.load %arg22[%c0_67, %c0_68] : memref<32x4xf32, #tpu.memory_space<vmem>>, vector<32x4xf32>
    %136 = arith.mulf %135, %135 : vector<32x4xf32>
    %cst_69 = arith.constant dense<0.000000e+00> : vector<4xf32>
    %137 = vector.multi_reduction <add>, %136, %cst_69 [0] : vector<32x4xf32> to vector<4xf32>
    %138 = vector.shape_cast %137 : vector<4xf32> to vector<1x4xf32>
    %cst_70 = arith.constant dense<0.000000e+00> : vector<16x4xf32>
    %139 = tpu.matmul %134, %135, %cst_70 {dimension_numbers = #tpu.dot_dimension_numbers<[1], [0], [0], [1], [0, 0, 1, 1], [], []>} : vector<16x32xf32>, vector<32x4xf32>, vector<16x4xf32> -> vector<16x4xf32>
    %cst_71 = arith.constant 2.000000e+00 : f32
    %140 = vector.broadcast %cst_71 : f32 to vector<16x4xf32>
    %141 = arith.mulf %140, %139 : vector<16x4xf32>
    %142 = vector.broadcast %138 : vector<1x4xf32> to vector<16x4xf32>
    %143 = arith.subf %142, %141 : vector<16x4xf32>
    %144 = tpu.iota {dimensions = array<i32: 1>} : vector<16x4xi32>
    %cst_72 = arith.constant dense<0x7F800000> : vector<16xf32>
    %145 = vector.multi_reduction <minimumf>, %143, %cst_72 [1] : vector<16x4xf32> to vector<16xf32>
    %146 = vector.shape_cast %145 : vector<16xf32> to vector<16x1xf32>
    %147 = vector.broadcast %146 : vector<16x1xf32> to vector<16x4xf32>
    %148 = arith.cmpf ole, %143, %147 : vector<16x4xf32>
    %c4_i32 = arith.constant 4 : i32
    %149 = vector.broadcast %c4_i32 : i32 to vector<16x4xi32>
    %150 = arith.select %148, %144, %149 : vector<16x4xi1>, vector<16x4xi32>
    %cst_73 = arith.constant dense<2147483647> : vector<16xi32>
    %151 = vector.multi_reduction <minsi>, %150, %cst_73 [1] : vector<16x4xi32> to vector<16xi32>
    %152 = vector.shape_cast %151 : vector<16xi32> to vector<16x1xi32>
    %153 = tpu.iota {dimensions = array<i32: 1>} : vector<16x4xi32>
    %154 = vector.broadcast %152 : vector<16x1xi32> to vector<16x4xi32>
    %155 = arith.cmpi eq, %154, %153 : vector<16x4xi32>
    %156 = arith.extui %155 : vector<16x4xi1> to vector<16x4xi32>
    %157 = arith.sitofp %156 : vector<16x4xi32> to vector<16x4xf32>
    %cst_74 = arith.constant dense<0.000000e+00> : vector<16x16xf32>
    %158 = tpu.matmul %157, %157, %cst_74 {dimension_numbers = #tpu.dot_dimension_numbers<[1], [1], [0], [0], [0, 0, 1, 0], [], []>} : vector<16x4xf32>, vector<16x4xf32>, vector<16x16xf32> -> vector<16x16xf32>
    %cst_75 = arith.constant 5.000000e-01 : f32
    %159 = vector.broadcast %cst_75 : f32 to vector<16x16xf32>
    %160 = arith.cmpf ogt, %158, %159 : vector<16x16xf32>
    %161 = arith.andi %160, %2 : vector<16x16xi1>
    %c0_76 = arith.constant 0 : index
    %c0_77 = arith.constant 0 : index
    %162 = vector.load %arg23[%c0_76, %c0_77] : memref<1x4xf32, #tpu.memory_space<vmem>>, vector<1x4xf32>
    %cst_78 = arith.constant 0.000000e+00 : f32
    %163 = vector.broadcast %cst_78 : f32 to vector<1x4xf32>
    %164 = arith.maximumf %162, %163 : vector<1x4xf32>
    %165 = vector.broadcast %cst_78 : f32 to vector<1x4xf32>
    %166 = arith.subf %162, %165 : vector<1x4xf32>
    %167 = arith.cmpf one, %166, %166 : vector<1x4xf32>
    %168 = vector.broadcast %cst_78 : f32 to vector<1x4xf32>
    %169 = arith.addf %162, %168 : vector<1x4xf32>
    %170 = math.absf %166 : vector<1x4xf32>
    %cst_79 = arith.constant 0.000000e+00 : f32
    %171 = vector.broadcast %cst_79 : f32 to vector<1x4xf32>
    %172 = arith.subf %171, %170 : vector<1x4xf32>
    %173 = math.exp %172 : vector<1x4xf32>
    %174 = math.log1p %173 : vector<1x4xf32>
    %175 = arith.addf %164, %174 : vector<1x4xf32>
    %176 = arith.select %167, %169, %175 : vector<1x4xi1>, vector<1x4xf32>
    %cst_80 = arith.constant 0.000000e+00 : f32
    %177 = vector.broadcast %cst_80 : f32 to vector<1x4xf32>
    %178 = arith.subf %177, %176 : vector<1x4xf32>
    %179 = math.exp %178 : vector<1x4xf32>
    %cst_81 = arith.constant 9.99999974E-6 : f32
    %cst_82 = arith.constant 1.000000e+05 : f32
    %180 = vector.broadcast %cst_81 : f32 to vector<1x4xf32>
    %181 = arith.maximumf %180, %179 : vector<1x4xf32>
    %182 = vector.broadcast %cst_82 : f32 to vector<1x4xf32>
    %183 = arith.minimumf %182, %181 : vector<1x4xf32>
    %c0_83 = arith.constant 0 : index
    %c0_84 = arith.constant 0 : index
    %184 = vector.load %arg2[%c0_83, %c0_84] : memref<16x32xf32, #tpu.memory_space<vmem>>, vector<16x32xf32>
    %c0_85 = arith.constant 0 : index
    %c0_86 = arith.constant 0 : index
    %185 = vector.load %arg0[%c0_85, %c0_86] : memref<16x32xf32, #tpu.memory_space<vmem>>, vector<16x32xf32>
    %186 = tpu.concatenate %184, %185 in 0 : vector<16x32xf32>, vector<16x32xf32> -> vector<32x32xf32>
    %c0_87 = arith.constant 0 : index
    %c0_88 = arith.constant 0 : index
    %187 = vector.load %arg24[%c0_87, %c0_88] : memref<32x32xf32, #tpu.memory_space<vmem>>, vector<32x32xf32>
    %cst_89 = arith.constant dense<0.000000e+00> : vector<32x32xf32>
    %188 = tpu.matmul %186, %187, %cst_89 {dimension_numbers = #tpu.dot_dimension_numbers<[1], [0], [0], [1], [0, 0, 1, 1], [], []>} : vector<32x32xf32>, vector<32x32xf32>, vector<32x32xf32> -> vector<32x32xf32>
    %c0_90 = arith.constant 0 : index
    %c0_91 = arith.constant 0 : index
    %189 = vector.load %arg25[%c0_90, %c0_91] : memref<1x32xf32, #tpu.memory_space<vmem>>, vector<1x32xf32>
    %190 = vector.broadcast %189 : vector<1x32xf32> to vector<32x32xf32>
    %191 = arith.addf %188, %190 : vector<32x32xf32>
    %192 = vector.extract_strided_slice %191 {offsets = [0, 0], sizes = [16, 32], strides = [1, 1]} : vector<32x32xf32> to vector<16x32xf32>
    %193 = vector.extract_strided_slice %191 {offsets = [16, 0], sizes = [16, 32], strides = [1, 1]} : vector<32x32xf32> to vector<16x32xf32>
    %c0_92 = arith.constant 0 : index
    %c0_93 = arith.constant 0 : index
    %194 = vector.load %arg1[%c0_92, %c0_93] : memref<16x32xf32, #tpu.memory_space<vmem>>, vector<16x32xf32>
    %c0_94 = arith.constant 0 : index
    %c0_95 = arith.constant 0 : index
    %195 = vector.load %arg26[%c0_94, %c0_95] : memref<32x32xf32, #tpu.memory_space<vmem>>, vector<32x32xf32>
    %cst_96 = arith.constant dense<0.000000e+00> : vector<16x32xf32>
    %196 = tpu.matmul %194, %195, %cst_96 {dimension_numbers = #tpu.dot_dimension_numbers<[1], [0], [0], [1], [0, 0, 1, 1], [], []>} : vector<16x32xf32>, vector<32x32xf32>, vector<16x32xf32> -> vector<16x32xf32>
    %c0_97 = arith.constant 0 : index
    %c0_98 = arith.constant 0 : index
    %197 = vector.load %arg27[%c0_97, %c0_98] : memref<1x32xf32, #tpu.memory_space<vmem>>, vector<1x32xf32>
    %198 = vector.broadcast %197 : vector<1x32xf32> to vector<16x32xf32>
    %199 = arith.addf %196, %198 : vector<16x32xf32>
    %200 = vector.extract_strided_slice %134 {offsets = [0, 0], sizes = [16, 8], strides = [1, 1]} : vector<16x32xf32> to vector<16x8xf32>
    %cst_99 = arith.constant dense<0.000000e+00> : vector<16x16xf32>
    %201 = tpu.matmul %200, %200, %cst_99 {dimension_numbers = #tpu.dot_dimension_numbers<[1], [1], [0], [0], [0, 0, 1, 0], [], []>} : vector<16x8xf32>, vector<16x8xf32>, vector<16x16xf32> -> vector<16x16xf32>
    %cst_100 = arith.constant 0.176776692 : f32
    %202 = vector.broadcast %cst_100 : f32 to vector<16x16xf32>
    %203 = arith.mulf %201, %202 : vector<16x16xf32>
    %204 = vector.extract_strided_slice %183 {offsets = [0, 0], sizes = [1, 1], strides = [1, 1]} : vector<1x4xf32> to vector<1x1xf32>
    %205 = vector.broadcast %204 : vector<1x1xf32> to vector<16x16xf32>
    %206 = arith.mulf %203, %205 : vector<16x16xf32>
    %cst_101 = arith.constant 0.000000e+00 : f32
    %207 = vector.broadcast %cst_101 : f32 to vector<16x16xf32>
    %208 = arith.select %161, %206, %207 : vector<16x16xi1>, vector<16x16xf32>
    %209 = vector.extract_strided_slice %192 {offsets = [0, 0], sizes = [16, 8], strides = [1, 1]} : vector<16x32xf32> to vector<16x8xf32>
    %210 = vector.extract_strided_slice %193 {offsets = [0, 0], sizes = [16, 8], strides = [1, 1]} : vector<16x32xf32> to vector<16x8xf32>
    %cst_102 = arith.constant dense<0.000000e+00> : vector<16x16xf32>
    %211 = tpu.matmul %209, %210, %cst_102 {dimension_numbers = #tpu.dot_dimension_numbers<[1], [1], [0], [0], [0, 0, 1, 0], [], []>} : vector<16x8xf32>, vector<16x8xf32>, vector<16x16xf32> -> vector<16x16xf32>
    %cst_103 = arith.constant 0.353553385 : f32
    %212 = vector.broadcast %cst_103 : f32 to vector<16x16xf32>
    %213 = arith.mulf %211, %212 : vector<16x16xf32>
    %214 = arith.addf %213, %208 : vector<16x16xf32>
    %cst_104 = arith.constant -1.000000e+32 : f32
    %215 = vector.broadcast %cst_104 : f32 to vector<16x16xf32>
    %216 = arith.select %2, %214, %215 : vector<16x16xi1>, vector<16x16xf32>
    %cst_105 = arith.constant dense<0xFF800000> : vector<16xf32>
    %217 = vector.multi_reduction <maximumf>, %216, %cst_105 [1] : vector<16x16xf32> to vector<16xf32>
    %218 = vector.shape_cast %217 : vector<16xf32> to vector<16x1xf32>
    %219 = vector.broadcast %218 : vector<16x1xf32> to vector<16x16xf32>
    %220 = arith.subf %216, %219 : vector<16x16xf32>
    %221 = math.exp %220 : vector<16x16xf32>
    %cst_106 = arith.constant dense<0.000000e+00> : vector<16xf32>
    %222 = vector.multi_reduction <add>, %221, %cst_106 [1] : vector<16x16xf32> to vector<16xf32>
    %223 = vector.shape_cast %222 : vector<16xf32> to vector<16x1xf32>
    %224 = tpu.reciprocal %223 {approx = true} : vector<16x1xf32> -> vector<16x1xf32>
    %225 = vector.broadcast %224 : vector<16x1xf32> to vector<16x16xf32>
    %226 = arith.mulf %221, %225 : vector<16x16xf32>
    %cst_107 = arith.constant 0.000000e+00 : f32
    %227 = vector.broadcast %cst_107 : f32 to vector<16x16xf32>
    %228 = arith.select %2, %226, %227 : vector<16x16xi1>, vector<16x16xf32>
    %229 = vector.extract_strided_slice %199 {offsets = [0, 0], sizes = [16, 8], strides = [1, 1]} : vector<16x32xf32> to vector<16x8xf32>
    %cst_108 = arith.constant dense<0.000000e+00> : vector<16x8xf32>
    %230 = tpu.matmul %228, %229, %cst_108 {dimension_numbers = #tpu.dot_dimension_numbers<[1], [0], [0], [1], [0, 0, 1, 1], [], []>} : vector<16x16xf32>, vector<16x8xf32>, vector<16x8xf32> -> vector<16x8xf32>
    %231 = vector.extract_strided_slice %134 {offsets = [0, 8], sizes = [16, 8], strides = [1, 1]} : vector<16x32xf32> to vector<16x8xf32>
    %cst_109 = arith.constant dense<0.000000e+00> : vector<16x16xf32>
    %232 = tpu.matmul %231, %231, %cst_109 {dimension_numbers = #tpu.dot_dimension_numbers<[1], [1], [0], [0], [0, 0, 1, 0], [], []>} : vector<16x8xf32>, vector<16x8xf32>, vector<16x16xf32> -> vector<16x16xf32>
    %cst_110 = arith.constant 0.176776692 : f32
    %233 = vector.broadcast %cst_110 : f32 to vector<16x16xf32>
    %234 = arith.mulf %232, %233 : vector<16x16xf32>
    %235 = vector.extract_strided_slice %183 {offsets = [0, 1], sizes = [1, 1], strides = [1, 1]} : vector<1x4xf32> to vector<1x1xf32>
    %236 = vector.broadcast %235 : vector<1x1xf32> to vector<16x16xf32>
    %237 = arith.mulf %234, %236 : vector<16x16xf32>
    %cst_111 = arith.constant 0.000000e+00 : f32
    %238 = vector.broadcast %cst_111 : f32 to vector<16x16xf32>
    %239 = arith.select %161, %237, %238 : vector<16x16xi1>, vector<16x16xf32>
    %240 = vector.extract_strided_slice %192 {offsets = [0, 8], sizes = [16, 8], strides = [1, 1]} : vector<16x32xf32> to vector<16x8xf32>
    %241 = vector.extract_strided_slice %193 {offsets = [0, 8], sizes = [16, 8], strides = [1, 1]} : vector<16x32xf32> to vector<16x8xf32>
    %cst_112 = arith.constant dense<0.000000e+00> : vector<16x16xf32>
    %242 = tpu.matmul %240, %241, %cst_112 {dimension_numbers = #tpu.dot_dimension_numbers<[1], [1], [0], [0], [0, 0, 1, 0], [], []>} : vector<16x8xf32>, vector<16x8xf32>, vector<16x16xf32> -> vector<16x16xf32>
    %cst_113 = arith.constant 0.353553385 : f32
    %243 = vector.broadcast %cst_113 : f32 to vector<16x16xf32>
    %244 = arith.mulf %242, %243 : vector<16x16xf32>
    %245 = arith.addf %244, %239 : vector<16x16xf32>
    %cst_114 = arith.constant -1.000000e+32 : f32
    %246 = vector.broadcast %cst_114 : f32 to vector<16x16xf32>
    %247 = arith.select %2, %245, %246 : vector<16x16xi1>, vector<16x16xf32>
    %cst_115 = arith.constant dense<0xFF800000> : vector<16xf32>
    %248 = vector.multi_reduction <maximumf>, %247, %cst_115 [1] : vector<16x16xf32> to vector<16xf32>
    %249 = vector.shape_cast %248 : vector<16xf32> to vector<16x1xf32>
    %250 = vector.broadcast %249 : vector<16x1xf32> to vector<16x16xf32>
    %251 = arith.subf %247, %250 : vector<16x16xf32>
    %252 = math.exp %251 : vector<16x16xf32>
    %cst_116 = arith.constant dense<0.000000e+00> : vector<16xf32>
    %253 = vector.multi_reduction <add>, %252, %cst_116 [1] : vector<16x16xf32> to vector<16xf32>
    %254 = vector.shape_cast %253 : vector<16xf32> to vector<16x1xf32>
    %255 = tpu.reciprocal %254 {approx = true} : vector<16x1xf32> -> vector<16x1xf32>
    %256 = vector.broadcast %255 : vector<16x1xf32> to vector<16x16xf32>
    %257 = arith.mulf %252, %256 : vector<16x16xf32>
    %cst_117 = arith.constant 0.000000e+00 : f32
    %258 = vector.broadcast %cst_117 : f32 to vector<16x16xf32>
    %259 = arith.select %2, %257, %258 : vector<16x16xi1>, vector<16x16xf32>
    %260 = vector.extract_strided_slice %199 {offsets = [0, 8], sizes = [16, 8], strides = [1, 1]} : vector<16x32xf32> to vector<16x8xf32>
    %cst_118 = arith.constant dense<0.000000e+00> : vector<16x8xf32>
    %261 = tpu.matmul %259, %260, %cst_118 {dimension_numbers = #tpu.dot_dimension_numbers<[1], [0], [0], [1], [0, 0, 1, 1], [], []>} : vector<16x16xf32>, vector<16x8xf32>, vector<16x8xf32> -> vector<16x8xf32>
    %262 = vector.extract_strided_slice %134 {offsets = [0, 16], sizes = [16, 8], strides = [1, 1]} : vector<16x32xf32> to vector<16x8xf32>
    %cst_119 = arith.constant dense<0.000000e+00> : vector<16x16xf32>
    %263 = tpu.matmul %262, %262, %cst_119 {dimension_numbers = #tpu.dot_dimension_numbers<[1], [1], [0], [0], [0, 0, 1, 0], [], []>} : vector<16x8xf32>, vector<16x8xf32>, vector<16x16xf32> -> vector<16x16xf32>
    %cst_120 = arith.constant 0.176776692 : f32
    %264 = vector.broadcast %cst_120 : f32 to vector<16x16xf32>
    %265 = arith.mulf %263, %264 : vector<16x16xf32>
    %266 = vector.extract_strided_slice %183 {offsets = [0, 2], sizes = [1, 1], strides = [1, 1]} : vector<1x4xf32> to vector<1x1xf32>
    %267 = vector.broadcast %266 : vector<1x1xf32> to vector<16x16xf32>
    %268 = arith.mulf %265, %267 : vector<16x16xf32>
    %cst_121 = arith.constant 0.000000e+00 : f32
    %269 = vector.broadcast %cst_121 : f32 to vector<16x16xf32>
    %270 = arith.select %161, %268, %269 : vector<16x16xi1>, vector<16x16xf32>
    %271 = vector.extract_strided_slice %192 {offsets = [0, 16], sizes = [16, 8], strides = [1, 1]} : vector<16x32xf32> to vector<16x8xf32>
    %272 = vector.extract_strided_slice %193 {offsets = [0, 16], sizes = [16, 8], strides = [1, 1]} : vector<16x32xf32> to vector<16x8xf32>
    %cst_122 = arith.constant dense<0.000000e+00> : vector<16x16xf32>
    %273 = tpu.matmul %271, %272, %cst_122 {dimension_numbers = #tpu.dot_dimension_numbers<[1], [1], [0], [0], [0, 0, 1, 0], [], []>} : vector<16x8xf32>, vector<16x8xf32>, vector<16x16xf32> -> vector<16x16xf32>
    %cst_123 = arith.constant 0.353553385 : f32
    %274 = vector.broadcast %cst_123 : f32 to vector<16x16xf32>
    %275 = arith.mulf %273, %274 : vector<16x16xf32>
    %276 = arith.addf %275, %270 : vector<16x16xf32>
    %cst_124 = arith.constant -1.000000e+32 : f32
    %277 = vector.broadcast %cst_124 : f32 to vector<16x16xf32>
    %278 = arith.select %2, %276, %277 : vector<16x16xi1>, vector<16x16xf32>
    %cst_125 = arith.constant dense<0xFF800000> : vector<16xf32>
    %279 = vector.multi_reduction <maximumf>, %278, %cst_125 [1] : vector<16x16xf32> to vector<16xf32>
    %280 = vector.shape_cast %279 : vector<16xf32> to vector<16x1xf32>
    %281 = vector.broadcast %280 : vector<16x1xf32> to vector<16x16xf32>
    %282 = arith.subf %278, %281 : vector<16x16xf32>
    %283 = math.exp %282 : vector<16x16xf32>
    %cst_126 = arith.constant dense<0.000000e+00> : vector<16xf32>
    %284 = vector.multi_reduction <add>, %283, %cst_126 [1] : vector<16x16xf32> to vector<16xf32>
    %285 = vector.shape_cast %284 : vector<16xf32> to vector<16x1xf32>
    %286 = tpu.reciprocal %285 {approx = true} : vector<16x1xf32> -> vector<16x1xf32>
    %287 = vector.broadcast %286 : vector<16x1xf32> to vector<16x16xf32>
    %288 = arith.mulf %283, %287 : vector<16x16xf32>
    %cst_127 = arith.constant 0.000000e+00 : f32
    %289 = vector.broadcast %cst_127 : f32 to vector<16x16xf32>
    %290 = arith.select %2, %288, %289 : vector<16x16xi1>, vector<16x16xf32>
    %291 = vector.extract_strided_slice %199 {offsets = [0, 16], sizes = [16, 8], strides = [1, 1]} : vector<16x32xf32> to vector<16x8xf32>
    %cst_128 = arith.constant dense<0.000000e+00> : vector<16x8xf32>
    %292 = tpu.matmul %290, %291, %cst_128 {dimension_numbers = #tpu.dot_dimension_numbers<[1], [0], [0], [1], [0, 0, 1, 1], [], []>} : vector<16x16xf32>, vector<16x8xf32>, vector<16x8xf32> -> vector<16x8xf32>
    %293 = vector.extract_strided_slice %134 {offsets = [0, 24], sizes = [16, 8], strides = [1, 1]} : vector<16x32xf32> to vector<16x8xf32>
    %cst_129 = arith.constant dense<0.000000e+00> : vector<16x16xf32>
    %294 = tpu.matmul %293, %293, %cst_129 {dimension_numbers = #tpu.dot_dimension_numbers<[1], [1], [0], [0], [0, 0, 1, 0], [], []>} : vector<16x8xf32>, vector<16x8xf32>, vector<16x16xf32> -> vector<16x16xf32>
    %cst_130 = arith.constant 0.176776692 : f32
    %295 = vector.broadcast %cst_130 : f32 to vector<16x16xf32>
    %296 = arith.mulf %294, %295 : vector<16x16xf32>
    %297 = vector.extract_strided_slice %183 {offsets = [0, 3], sizes = [1, 1], strides = [1, 1]} : vector<1x4xf32> to vector<1x1xf32>
    %298 = vector.broadcast %297 : vector<1x1xf32> to vector<16x16xf32>
    %299 = arith.mulf %296, %298 : vector<16x16xf32>
    %cst_131 = arith.constant 0.000000e+00 : f32
    %300 = vector.broadcast %cst_131 : f32 to vector<16x16xf32>
    %301 = arith.select %161, %299, %300 : vector<16x16xi1>, vector<16x16xf32>
    %302 = vector.extract_strided_slice %192 {offsets = [0, 24], sizes = [16, 8], strides = [1, 1]} : vector<16x32xf32> to vector<16x8xf32>
    %303 = vector.extract_strided_slice %193 {offsets = [0, 24], sizes = [16, 8], strides = [1, 1]} : vector<16x32xf32> to vector<16x8xf32>
    %cst_132 = arith.constant dense<0.000000e+00> : vector<16x16xf32>
    %304 = tpu.matmul %302, %303, %cst_132 {dimension_numbers = #tpu.dot_dimension_numbers<[1], [1], [0], [0], [0, 0, 1, 0], [], []>} : vector<16x8xf32>, vector<16x8xf32>, vector<16x16xf32> -> vector<16x16xf32>
    %cst_133 = arith.constant 0.353553385 : f32
    %305 = vector.broadcast %cst_133 : f32 to vector<16x16xf32>
    %306 = arith.mulf %304, %305 : vector<16x16xf32>
    %307 = arith.addf %306, %301 : vector<16x16xf32>
    %cst_134 = arith.constant -1.000000e+32 : f32
    %308 = vector.broadcast %cst_134 : f32 to vector<16x16xf32>
    %309 = arith.select %2, %307, %308 : vector<16x16xi1>, vector<16x16xf32>
    %cst_135 = arith.constant dense<0xFF800000> : vector<16xf32>
    %310 = vector.multi_reduction <maximumf>, %309, %cst_135 [1] : vector<16x16xf32> to vector<16xf32>
    %311 = vector.shape_cast %310 : vector<16xf32> to vector<16x1xf32>
    %312 = vector.broadcast %311 : vector<16x1xf32> to vector<16x16xf32>
    %313 = arith.subf %309, %312 : vector<16x16xf32>
    %314 = math.exp %313 : vector<16x16xf32>
    %cst_136 = arith.constant dense<0.000000e+00> : vector<16xf32>
    %315 = vector.multi_reduction <add>, %314, %cst_136 [1] : vector<16x16xf32> to vector<16xf32>
    %316 = vector.shape_cast %315 : vector<16xf32> to vector<16x1xf32>
    %317 = tpu.reciprocal %316 {approx = true} : vector<16x1xf32> -> vector<16x1xf32>
    %318 = vector.broadcast %317 : vector<16x1xf32> to vector<16x16xf32>
    %319 = arith.mulf %314, %318 : vector<16x16xf32>
    %cst_137 = arith.constant 0.000000e+00 : f32
    %320 = vector.broadcast %cst_137 : f32 to vector<16x16xf32>
    %321 = arith.select %2, %319, %320 : vector<16x16xi1>, vector<16x16xf32>
    %322 = vector.extract_strided_slice %199 {offsets = [0, 24], sizes = [16, 8], strides = [1, 1]} : vector<16x32xf32> to vector<16x8xf32>
    %cst_138 = arith.constant dense<0.000000e+00> : vector<16x8xf32>
    %323 = tpu.matmul %321, %322, %cst_138 {dimension_numbers = #tpu.dot_dimension_numbers<[1], [0], [0], [1], [0, 0, 1, 1], [], []>} : vector<16x16xf32>, vector<16x8xf32>, vector<16x8xf32> -> vector<16x8xf32>
    %324 = tpu.concatenate %230, %261, %292, %323 in 1 : vector<16x8xf32>, vector<16x8xf32>, vector<16x8xf32>, vector<16x8xf32> -> vector<16x32xf32>
    %c0_139 = arith.constant 0 : index
    %c0_140 = arith.constant 0 : index
    %325 = vector.load %arg28[%c0_139, %c0_140] : memref<32x32xf32, #tpu.memory_space<vmem>>, vector<32x32xf32>
    %cst_141 = arith.constant dense<0.000000e+00> : vector<16x32xf32>
    %326 = tpu.matmul %324, %325, %cst_141 {dimension_numbers = #tpu.dot_dimension_numbers<[1], [0], [0], [1], [0, 0, 1, 1], [], []>} : vector<16x32xf32>, vector<32x32xf32>, vector<16x32xf32> -> vector<16x32xf32>
    %c0_142 = arith.constant 0 : index
    %c0_143 = arith.constant 0 : index
    %327 = vector.load %arg29[%c0_142, %c0_143] : memref<1x32xf32, #tpu.memory_space<vmem>>, vector<1x32xf32>
    %328 = vector.broadcast %327 : vector<1x32xf32> to vector<16x32xf32>
    %329 = arith.addf %326, %328 : vector<16x32xf32>
    %330 = arith.addf %184, %329 : vector<16x32xf32>
    %cst_144 = arith.constant dense<0.000000e+00> : vector<16xf32>
    %331 = vector.multi_reduction <add>, %330, %cst_144 [1] : vector<16x32xf32> to vector<16xf32>
    %332 = vector.shape_cast %331 : vector<16xf32> to vector<16x1xf32>
    %cst_145 = arith.constant 3.200000e+01 : f32
    %333 = vector.broadcast %cst_145 : f32 to vector<16x1xf32>
    %334 = arith.divf %332, %333 : vector<16x1xf32>
    %335 = vector.broadcast %334 : vector<16x1xf32> to vector<16x32xf32>
    %336 = arith.subf %330, %335 : vector<16x32xf32>
    %337 = arith.mulf %336, %336 : vector<16x32xf32>
    %cst_146 = arith.constant dense<0.000000e+00> : vector<16xf32>
    %338 = vector.multi_reduction <add>, %337, %cst_146 [1] : vector<16x32xf32> to vector<16xf32>
    %339 = vector.shape_cast %338 : vector<16xf32> to vector<16x1xf32>
    %cst_147 = arith.constant 3.200000e+01 : f32
    %340 = vector.broadcast %cst_147 : f32 to vector<16x1xf32>
    %341 = arith.divf %339, %340 : vector<16x1xf32>
    %342 = vector.broadcast %334 : vector<16x1xf32> to vector<16x32xf32>
    %343 = arith.subf %330, %342 : vector<16x32xf32>
    %cst_148 = arith.constant 9.99999974E-6 : f32
    %344 = vector.broadcast %cst_148 : f32 to vector<16x1xf32>
    %345 = arith.addf %341, %344 : vector<16x1xf32>
    %346 = math.rsqrt %345 : vector<16x1xf32>
    %347 = vector.broadcast %346 : vector<16x1xf32> to vector<16x32xf32>
    %348 = arith.mulf %343, %347 : vector<16x32xf32>
    %c0_149 = arith.constant 0 : index
    %c0_150 = arith.constant 0 : index
    %349 = vector.load %arg30[%c0_149, %c0_150] : memref<1x32xf32, #tpu.memory_space<vmem>>, vector<1x32xf32>
    %350 = vector.broadcast %349 : vector<1x32xf32> to vector<16x32xf32>
    %351 = arith.mulf %348, %350 : vector<16x32xf32>
    %c0_151 = arith.constant 0 : index
    %c0_152 = arith.constant 0 : index
    %352 = vector.load %arg31[%c0_151, %c0_152] : memref<1x32xf32, #tpu.memory_space<vmem>>, vector<1x32xf32>
    %353 = vector.broadcast %352 : vector<1x32xf32> to vector<16x32xf32>
    %354 = arith.addf %351, %353 : vector<16x32xf32>
    %355 = tpu.concatenate %134, %354 in 1 : vector<16x32xf32>, vector<16x32xf32> -> vector<16x64xf32>
    %c0_153 = arith.constant 0 : index
    %c0_154 = arith.constant 0 : index
    %356 = vector.load %arg32[%c0_153, %c0_154] : memref<64x32xf32, #tpu.memory_space<vmem>>, vector<64x32xf32>
    %cst_155 = arith.constant dense<0.000000e+00> : vector<16x32xf32>
    %357 = tpu.matmul %355, %356, %cst_155 {dimension_numbers = #tpu.dot_dimension_numbers<[1], [0], [0], [1], [0, 0, 1, 1], [], []>} : vector<16x64xf32>, vector<64x32xf32>, vector<16x32xf32> -> vector<16x32xf32>
    %c0_156 = arith.constant 0 : index
    %c0_157 = arith.constant 0 : index
    %358 = vector.load %arg33[%c0_156, %c0_157] : memref<1x32xf32, #tpu.memory_space<vmem>>, vector<1x32xf32>
    %359 = vector.broadcast %358 : vector<1x32xf32> to vector<16x32xf32>
    %360 = arith.addf %357, %359 : vector<16x32xf32>
    %361 = arith.sitofp %152 : vector<16x1xi32> to vector<16x1xf32>
    %362 = vector.shape_cast %361 : vector<16x1xf32> to vector<16x1xf32>
    %363 = vector.broadcast %362 : vector<16x1xf32> to vector<16x32xf32>
    %364 = tpu.concatenate %360, %354, %134, %363 in 1 : vector<16x32xf32>, vector<16x32xf32>, vector<16x32xf32>, vector<16x32xf32> -> vector<16x128xf32>
    %c0_158 = arith.constant 0 : index
    %c0_159 = arith.constant 0 : index
    %365 = vector.load %arg34[%c0_158, %c0_159] : memref<16x128xf32, #tpu.memory_space<vmem>>, vector<16x128xf32>
    tpu.vector_store %arg34[%c0_158, %c0_159], %364 {strides = array<i32>} : memref<16x128xf32, #tpu.memory_space<vmem>>, vector<16x128xf32>,
    return
  }
}

</mosaic_0001>

<llo_original>
// kernel: lskt_forward.1
$region0: #{lskt_forward.1}
  #allocation0 [shape = 'u32[]', space=smem, size = 0x4, offset = 0x4, fixed_abs, tag = 'smem constant byte address 0x4 - core index']
  #allocation1 [shape = 'u32[144,128]{1,0:T(1,128)}', space=vmem, size = 0x12000, scoped, tag = 'internal scratch']
  %s0 = inlined_call_operand.smem [shape: u32[35], index: -1, kind: input, shape index: {}]
  %s1 = sld [smem:[%s0]]
  %s2 = scalar_lea.smem %s0, 1
  %s3 = sld [smem:[%s2]]
  %s4 = scalar_lea.smem %s0, 2
  %s5 = sld [smem:[%s4]]
  %s6 = scalar_lea.smem %s0, 3
  %s7 = sld [smem:[%s6]]
  %s8 = scalar_lea.smem %s0, 4
  %s9 = sld [smem:[%s8]]
  %s10 = scalar_lea.smem %s0, 5
  %s11 = sld [smem:[%s10]]
  %s12 = scalar_lea.smem %s0, 6
  %s13 = sld [smem:[%s12]]
  %s14 = scalar_lea.smem %s0, 7
  %s15 = sld [smem:[%s14]]
  %s16 = scalar_lea.smem %s0, 8
  %s17 = sld [smem:[%s16]]
  %s18 = scalar_lea.smem %s0, 9
  %s19 = sld [smem:[%s18]]
  %s20 = scalar_lea.smem %s0, 10
  %s21 = sld [smem:[%s20]]
  %s22 = scalar_lea.smem %s0, 11
  %s23 = sld [smem:[%s22]]
  %s24 = scalar_lea.smem %s0, 12
  %s25 = sld [smem:[%s24]]
  %s26 = scalar_lea.smem %s0, 13
  %s27 = sld [smem:[%s26]]
  %s28 = scalar_lea.smem %s0, 14
  %s29 = sld [smem:[%s28]]
  %s30 = scalar_lea.smem %s0, 15
  %s31 = sld [smem:[%s30]]
  %s32 = scalar_lea.smem %s0, 16
  %s33 = sld [smem:[%s32]]
  %s34 = scalar_lea.smem %s0, 17
  %s35 = sld [smem:[%s34]]
  %s36 = scalar_lea.smem %s0, 18
  %s37 = sld [smem:[%s36]]
  %s38 = scalar_lea.smem %s0, 19
  %s39 = sld [smem:[%s38]]
  %s40 = scalar_lea.smem %s0, 20
  %s41 = sld [smem:[%s40]]
  %s42 = scalar_lea.smem %s0, 21
  %s43 = sld [smem:[%s42]]
  %s44 = scalar_lea.smem %s0, 22
  %s45 = sld [smem:[%s44]]
  %s46 = scalar_lea.smem %s0, 23
  %s47 = sld [smem:[%s46]]
  %s48 = scalar_lea.smem %s0, 24
  %s49 = sld [smem:[%s48]]
  %s50 = scalar_lea.smem %s0, 25
  %s51 = sld [smem:[%s50]]
  %s52 = scalar_lea.smem %s0, 26
  %s53 = sld [smem:[%s52]]
  %s54 = scalar_lea.smem %s0, 27
  %s55 = sld [smem:[%s54]]
  %s56 = scalar_lea.smem %s0, 28
  %s57 = sld [smem:[%s56]]
  %s58 = scalar_lea.smem %s0, 29
  %s59 = sld [smem:[%s58]]
  %s60 = scalar_lea.smem %s0, 30
  %s61 = sld [smem:[%s60]]
  %s62 = scalar_lea.smem %s0, 31
  %s63 = sld [smem:[%s62]]
  %s64 = scalar_lea.smem %s0, 32
  %s65 = sld [smem:[%s64]]
  %s66 = scalar_lea.smem %s0, 33
  %s67 = sld [smem:[%s66]]
  %s68 = scalar_lea.smem %s0, 34
  %s69 = sld [smem:[%s68]]
  %s70 = sld [smem:[#allocation0]]
  $region146: #{lskt_forward.1} parent=0
    _
  %s72 = ssub.s32 1, %s70
  %s73 = scalar_select 0, %s72, %s70
  // Predicated region
  $region2: #{lskt_forward.1} parent=0 // pred_check
    _
  $region3: #{lskt_forward.1} parent=0 // pred_check_branch
    %75 = sbr.rel (0) target = $region5
  $region4: #{lskt_forward.1} parent=0 // pred_region
    _
  $region5: #{lskt_forward.1} parent=0 // pred_fallthru
    _
  // Predicated region
  $region6: #{lskt_forward.1} parent=0 // pred_check
    _
  $region7: #{lskt_forward.1} parent=0 // pred_check_branch
    %77 = sbr.rel (0) target = $region9
  $region8: #{lskt_forward.1} parent=0 // pred_region
    _
  $region9: #{lskt_forward.1} parent=0 // pred_fallthru
    _
  // Predicated region
  $region10: #{lskt_forward.1} parent=0 // pred_check
    _
  $region11: #{lskt_forward.1} parent=0 // pred_check_branch
    %79 = sbr.rel (0) target = $region13
  $region12: #{lskt_forward.1} parent=0 // pred_region
    _
  $region13: #{lskt_forward.1} parent=0 // pred_fallthru
    _
  // Predicated region
  $region14: #{lskt_forward.1} parent=0 // pred_check
    _
  $region15: #{lskt_forward.1} parent=0 // pred_check_branch
    %81 = sbr.rel (0) target = $region17
  $region16: #{lskt_forward.1} parent=0 // pred_region
    _
  $region17: #{lskt_forward.1} parent=0 // pred_fallthru
    _
  // Predicated region
  $region18: #{lskt_forward.1} parent=0 // pred_check
    _
  $region19: #{lskt_forward.1} parent=0 // pred_check_branch
    %83 = sbr.rel (0) target = $region21
  $region20: #{lskt_forward.1} parent=0 // pred_region
    _
  $region21: #{lskt_forward.1} parent=0 // pred_fallthru
    _
  // Predicated region
  $region22: #{lskt_forward.1} parent=0 // pred_check
    _
  $region23: #{lskt_forward.1} parent=0 // pred_check_branch
    %85 = sbr.rel (0) target = $region25
  $region24: #{lskt_forward.1} parent=0 // pred_region
    _
  $region25: #{lskt_forward.1} parent=0 // pred_fallthru
    _
  // Predicated region
  $region26: #{lskt_forward.1} parent=0 // pred_check
    _
  $region27: #{lskt_forward.1} parent=0 // pred_check_branch
    %87 = sbr.rel (0) target = $region29
  $region28: #{lskt_forward.1} parent=0 // pred_region
    _
  $region29: #{lskt_forward.1} parent=0 // pred_fallthru
    _
  // Predicated region
  $region30: #{lskt_forward.1} parent=0 // pred_check
    _
  $region31: #{lskt_forward.1} parent=0 // pred_check_branch
    %89 = sbr.rel (0) target = $region33
  $region32: #{lskt_forward.1} parent=0 // pred_region
    _
  $region33: #{lskt_forward.1} parent=0 // pred_fallthru
    _
  // Predicated region
  $region34: #{lskt_forward.1} parent=0 // pred_check
    _
  $region35: #{lskt_forward.1} parent=0 // pred_check_branch
    %91 = sbr.rel (0) target = $region37
  $region36: #{lskt_forward.1} parent=0 // pred_region
    _
  $region37: #{lskt_forward.1} parent=0 // pred_fallthru
    _
  // Predicated region
  $region38: #{lskt_forward.1} parent=0 // pred_check
    _
  $region39: #{lskt_forward.1} parent=0 // pred_check_branch
    %93 = sbr.rel (0) target = $region41
  $region40: #{lskt_forward.1} parent=0 // pred_region
    _
  $region41: #{lskt_forward.1} parent=0 // pred_fallthru
    _
  // Predicated region
  $region42: #{lskt_forward.1} parent=0 // pred_check
    _
  $region43: #{lskt_forward.1} parent=0 // pred_check_branch
    %95 = sbr.rel (0) target = $region45
  $region44: #{lskt_forward.1} parent=0 // pred_region
    _
  $region45: #{lskt_forward.1} parent=0 // pred_fallthru
    _
  // Predicated region
  $region46: #{lskt_forward.1} parent=0 // pred_check
    _
  $region47: #{lskt_forward.1} parent=0 // pred_check_branch
    %97 = sbr.rel (0) target = $region49
  $region48: #{lskt_forward.1} parent=0 // pred_region
    _
  $region49: #{lskt_forward.1} parent=0 // pred_fallthru
    _
  // Predicated region
  $region50: #{lskt_forward.1} parent=0 // pred_check
    _
  $region51: #{lskt_forward.1} parent=0 // pred_check_branch
    %99 = sbr.rel (0) target = $region53
  $region52: #{lskt_forward.1} parent=0 // pred_region
    _
  $region53: #{lskt_forward.1} parent=0 // pred_fallthru
    _
  // Predicated region
  $region54: #{lskt_forward.1} parent=0 // pred_check
    _
  $region55: #{lskt_forward.1} parent=0 // pred_check_branch
    %101 = sbr.rel (0) target = $region57
  $region56: #{lskt_forward.1} parent=0 // pred_region
    _
  $region57: #{lskt_forward.1} parent=0 // pred_fallthru
    _
  // Predicated region
  $region58: #{lskt_forward.1} parent=0 // pred_check
    _
  $region59: #{lskt_forward.1} parent=0 // pred_check_branch
    %103 = sbr.rel (0) target = $region61
  $region60: #{lskt_forward.1} parent=0 // pred_region
    _
  $region61: #{lskt_forward.1} parent=0 // pred_fallthru
    _
  // Predicated region
  $region62: #{lskt_forward.1} parent=0 // pred_check
    _
  $region63: #{lskt_forward.1} parent=0 // pred_check_branch
    %105 = sbr.rel (0) target = $region65
  $region64: #{lskt_forward.1} parent=0 // pred_region
    _
  $region65: #{lskt_forward.1} parent=0 // pred_fallthru
    _
  // Predicated region
  $region66: #{lskt_forward.1} parent=0 // pred_check
    _
  $region67: #{lskt_forward.1} parent=0 // pred_check_branch
    %107 = sbr.rel (0) target = $region69
  $region68: #{lskt_forward.1} parent=0 // pred_region
    _
  $region69: #{lskt_forward.1} parent=0 // pred_fallthru
    _
  // Predicated region
  $region70: #{lskt_forward.1} parent=0 // pred_check
    _
  $region71: #{lskt_forward.1} parent=0 // pred_check_branch
    %109 = sbr.rel (0) target = $region73
  $region72: #{lskt_forward.1} parent=0 // pred_region
    _
  $region73: #{lskt_forward.1} parent=0 // pred_fallthru
    _
  // Predicated region
  $region74: #{lskt_forward.1} parent=0 // pred_check
    _
  $region75: #{lskt_forward.1} parent=0 // pred_check_branch
    %111 = sbr.rel (0) target = $region77
  $region76: #{lskt_forward.1} parent=0 // pred_region
    _
  $region77: #{lskt_forward.1} parent=0 // pred_fallthru
    _
  // Predicated region
  $region78: #{lskt_forward.1} parent=0 // pred_check
    _
  $region79: #{lskt_forward.1} parent=0 // pred_check_branch
    %113 = sbr.rel (0) target = $region81
  $region80: #{lskt_forward.1} parent=0 // pred_region
    _
  $region81: #{lskt_forward.1} parent=0 // pred_fallthru
    _
  // Predicated region
  $region82: #{lskt_forward.1} parent=0 // pred_check
    _
  $region83: #{lskt_forward.1} parent=0 // pred_check_branch
    %115 = sbr.rel (0) target = $region85
  $region84: #{lskt_forward.1} parent=0 // pred_region
    _
  $region85: #{lskt_forward.1} parent=0 // pred_fallthru
    _
  // Predicated region
  $region86: #{lskt_forward.1} parent=0 // pred_check
    _
  $region87: #{lskt_forward.1} parent=0 // pred_check_branch
    %117 = sbr.rel (0) target = $region89
  $region88: #{lskt_forward.1} parent=0 // pred_region
    _
  $region89: #{lskt_forward.1} parent=0 // pred_fallthru
    _
  // Predicated region
  $region90: #{lskt_forward.1} parent=0 // pred_check
    _
  $region91: #{lskt_forward.1} parent=0 // pred_check_branch
    %119 = sbr.rel (0) target = $region93
  $region92: #{lskt_forward.1} parent=0 // pred_region
    _
  $region93: #{lskt_forward.1} parent=0 // pred_fallthru
    _
  // Predicated region
  $region94: #{lskt_forward.1} parent=0 // pred_check
    _
  $region95: #{lskt_forward.1} parent=0 // pred_check_branch
    %121 = sbr.rel (0) target = $region97
  $region96: #{lskt_forward.1} parent=0 // pred_region
    _
  $region97: #{lskt_forward.1} parent=0 // pred_fallthru
    _
  // Predicated region
  $region98: #{lskt_forward.1} parent=0 // pred_check
    _
  $region99: #{lskt_forward.1} parent=0 // pred_check_branch
    %123 = sbr.rel (0) target = $region101
  $region100: #{lskt_forward.1} parent=0 // pred_region
    _
  $region101: #{lskt_forward.1} parent=0 // pred_fallthru
    _
  // Predicated region
  $region102: #{lskt_forward.1} parent=0 // pred_check
    _
  $region103: #{lskt_forward.1} parent=0 // pred_check_branch
    %125 = sbr.rel (0) target = $region105
  $region104: #{lskt_forward.1} parent=0 // pred_region
    _
  $region105: #{lskt_forward.1} parent=0 // pred_fallthru
    _
  // Predicated region
  $region106: #{lskt_forward.1} parent=0 // pred_check
    _
  $region107: #{lskt_forward.1} parent=0 // pred_check_branch
    %127 = sbr.rel (0) target = $region109
  $region108: #{lskt_forward.1} parent=0 // pred_region
    _
  $region109: #{lskt_forward.1} parent=0 // pred_fallthru
    _
  // Predicated region
  $region110: #{lskt_forward.1} parent=0 // pred_check
    _
  $region111: #{lskt_forward.1} parent=0 // pred_check_branch
    %129 = sbr.rel (0) target = $region113
  $region112: #{lskt_forward.1} parent=0 // pred_region
    _
  $region113: #{lskt_forward.1} parent=0 // pred_fallthru
    _
  // Predicated region
  $region114: #{lskt_forward.1} parent=0 // pred_check
    _
  $region115: #{lskt_forward.1} parent=0 // pred_check_branch
    %131 = sbr.rel (0) target = $region117
  $region116: #{lskt_forward.1} parent=0 // pred_region
    _
  $region117: #{lskt_forward.1} parent=0 // pred_fallthru
    _
  // Predicated region
  $region118: #{lskt_forward.1} parent=0 // pred_check
    _
  $region119: #{lskt_forward.1} parent=0 // pred_check_branch
    %133 = sbr.rel (0) target = $region121
  $region120: #{lskt_forward.1} parent=0 // pred_region
    _
  $region121: #{lskt_forward.1} parent=0 // pred_fallthru
    _
  // Predicated region
  $region122: #{lskt_forward.1} parent=0 // pred_check
    _
  $region123: #{lskt_forward.1} parent=0 // pred_check_branch
    %135 = sbr.rel (0) target = $region125
  $region124: #{lskt_forward.1} parent=0 // pred_region
    _
  $region125: #{lskt_forward.1} parent=0 // pred_fallthru
    _
  // Predicated region
  $region126: #{lskt_forward.1} parent=0 // pred_check
    _
  $region127: #{lskt_forward.1} parent=0 // pred_check_branch
    %137 = sbr.rel (0) target = $region129
  $region128: #{lskt_forward.1} parent=0 // pred_region
    _
  $region129: #{lskt_forward.1} parent=0 // pred_fallthru
    _
  // Predicated region
  $region130: #{lskt_forward.1} parent=0 // pred_check
    _
  $region131: #{lskt_forward.1} parent=0 // pred_check_branch
    %139 = sbr.rel (0) target = $region133
  $region132: #{lskt_forward.1} parent=0 // pred_region
    _
  $region133: #{lskt_forward.1} parent=0 // pred_fallthru
    _
  // Predicated region
  $region134: #{lskt_forward.1} parent=0 // pred_check
    _
  $region135: #{lskt_forward.1} parent=0 // pred_check_branch
    %141 = sbr.rel (0) target = $region137
  $region136: #{lskt_forward.1} parent=0 // pred_region
    _
  $region137: #{lskt_forward.1} parent=0 // pred_fallthru
    _
  %v142 = vld [vmem:[%s7] sm:$0xff]
  %v143 = vld [vmem:[%s7 + $0x8] sm:$0xff]
  %vm144 = vcmp.gt.f32.partialorder %v142, 0.5
  %vm145 = vcmp.gt.f32.partialorder %v143, 0.5
  %v146 = vlaneseq
  %v147 = vshrl.u32 %v146, 7
  %v148 = vadd.s32 %v147, 8
  %vm149 = vcmp.lt.s32.totalorder %v147, 0
  %v150 = vsub.s32 0, %v147
  %v151 = vsel %vm149, %v150, %v147
  %v152 = vshrl.u32 %v151, 3
  %v153 = vand.u32 %v151, 7
  %v154 = vsub.s32 0, %v153
  %v155 = vsel %vm149, %v154, %v153
  %vm156 = vcmp.lt.s32.totalorder %v148, 0
  %v157 = vsub.s32 0, %v148
  %v158 = vsel %vm156, %v157, %v148
  %v159 = vshrl.u32 %v158, 3
  %v160 = vand.u32 %v158, 7
  %v161 = vsub.s32 0, %v160
  %v162 = vsel %vm156, %v161, %v160
  %vm163 = vcmp.ne.s32.totalorder %v155, 0
  %vm164 = vcmp.ne.s32.totalorder %v162, 0
  %vm165 = vcmp.lt.s32.totalorder %v155, 0
  %vm166 = vcmp.lt.s32.totalorder %v162, 0
  %vm167 = vmand %vm165, %vm163
  %vm168 = vmand %vm166, %vm164
  %v169 = vadd.s32 %v155, 8
  %v170 = vadd.s32 %v162, 8
  %v171 = vsel %vm167, %v169, %v155
  %v172 = vsel %vm168, %v170, %v162
  %vm173 = vcmp.ge.s32.totalorder %v171, 1
  %vm174 = vcmp.ge.s32.totalorder %v172, 1
  %v175 = vsel %vm173, 1, 0
  %v176 = vsel %vm174, 1, 0
  %v177 = vcvt.s32.f32 %v175
  %v178 = vcvt.s32.f32 %v176
  %vm179 = vcmp.ge.s32.totalorder %v171, 2
  %vm180 = vcmp.ge.s32.totalorder %v172, 2
  %v181 = vsel %vm179, 1, 0
  %v182 = vsel %vm180, 1, 0
  %v183 = vcvt.s32.f32 %v181
  %v184 = vcvt.s32.f32 %v182
  %v185 = vld [vmem:[%s3] sm:$0xff]
  %v186 = vld [vmem:[%s3 + $0x8] sm:$0xff]
  %v187 = vrot.slane %v185, 7
  %v188 = vrot.slane %v186, 7
  %vm189 = vcmp.lt.s32.totalorder %v147, 1
  %v190 = vsel %vm189, %v187, %v188
  %v191 = vsel %vm189, %v188, %v187
  %v192 = vmul.f32 %v191, %v177
  %v193 = vmul.f32 %v190, %v178
  %v194 = vrot.slane %v185, 6
  %v195 = vrot.slane %v186, 6
  %vm196 = vcmp.lt.s32.totalorder %v147, 2
  %v197 = vsel %vm196, %v194, %v195
  %v198 = vsel %vm196, %v195, %v194
  %v199 = vmul.f32 %v198, %v183
  %v200 = vmul.f32 %v197, %v184
  %203 = vrot.lane.b32.xlu0 %v192, 32
  %v204 = vpop.permute.xlu0 %203
  %205 = vrot.lane.b32.xlu0 %v193, 32
  %v206 = vpop.permute.xlu0 %205
  %211 = vrot.lane.b32.xlu0 %v199, 64
  %v212 = vpop.permute.xlu0 %211
  %213 = vrot.lane.b32.xlu0 %v200, 64
  %v214 = vpop.permute.xlu0 %213
  %vm217 = vcmask 261120
  %v218 = vsel %vm217, %v185, %v204
  %v219 = vsel %vm217, %v186, %v206
  %vm220 = vcmask 523264
  %v221 = vsel %vm220, %v218, %v212
  %v222 = vsel %vm220, %v219, %v214
  %v223 = vld [vmem:[%s9] sm:$0xff]
  %v224 = vld [vmem:[%s9 + $0x8] sm:$0xff]
  %v225 = vld [vmem:[%s9 + $0x10] sm:$0xff]
  %v226 = vld [vmem:[%s9 + $0x18] sm:$0xff]
  %v227 = vld [vmem:[%s9 + $0x20] sm:$0xff]
  %v228 = vld [vmem:[%s9 + $0x28] sm:$0xff]
  %v229 = vld [vmem:[%s9 + $0x30] sm:$0xff]
  %v230 = vld [vmem:[%s9 + $0x38] sm:$0xff]
  %v231 = vld [vmem:[%s9 + $0x40] sm:$0xff]
  %v232 = vld [vmem:[%s9 + $0x48] sm:$0xff]
  %v233 = vld [vmem:[%s9 + $0x50] sm:$0xff]
  %v234 = vld [vmem:[%s9 + $0x58] sm:$0xff]
  %v235 = vld [vmem:[%s11] sm:$0x1]
  %v237 = vlaneseq
  %v238 = vshrl.u32 %v237, 7
  %v239 = vsub.s32 0, %v238
  %v240 = vrot.slane %v235, %v239
  %vm242 = vcmask 785408
  %v244 = vsel %vm242, %v221, 0
  %v247 = vsel %vm242, %v222, 0
  %249 = vmatprep.subr.mxu0 0.0
  %250 = vmatpush1.msra.mxu0 0.0
  %251 = vmatprep.subr.mxu0 0.0
  %252 = vmatpush1.msra.mxu0 0.0
  %253 = vmatprep.subr.mxu0 0.0
  %254 = vmatpush1.msra.mxu0 0.0
  %255 = vmatprep.subr.mxu0 0.0
  %256 = vmatpush1.msra.mxu0 0.0
  %257 = vmatprep.subr.mxu0 0.0
  %258 = vmatpush1.msra.mxu0 %v234
  %259 = vmatprep.subr.mxu0 0.0
  %260 = vmatpush1.msra.mxu0 %v233
  %261 = vmatprep.subr.mxu0 0.0
  %262 = vmatpush1.msra.mxu0 %v232
  %263 = vmatprep.subr.mxu0 0.0
  %264 = vmatpush1.msra.mxu0 %v231
  %265 = vmatprep.subr.mxu0 0.0
  %266 = vmatpush1.msra.mxu0 %v230
  %267 = vmatprep.subr.mxu0 0.0
  %268 = vmatpush1.msra.mxu0 %v229
  %269 = vmatprep.subr.mxu0 0.0
  %270 = vmatpush1.msra.mxu0 %v228
  %271 = vmatprep.subr.mxu0 0.0
  %272 = vmatpush1.msra.mxu0 %v227
  %273 = vmatprep.subr.mxu0 0.0
  %274 = vmatpush1.msra.mxu0 %v226
  %275 = vmatprep.subr.mxu0 0.0
  %276 = vmatpush1.msra.mxu0 %v225
  %277 = vmatprep.subr.mxu0 0.0
  %278 = vmatpush1.msra.mxu0 %v224
  %279 = vmatprep.subr.mxu0 0.0
  %280 = vmatpush1.msra.mxu0 %v223
  %281 = vmatprep.subr.mxu0 0.0
  %282 = vmatpush2.msra.mxu0 0.0
  %283 = vmatprep.subr.mxu0 0.0
  %284 = vmatpush2.msra.mxu0 0.0
  %285 = vmatprep.subr.mxu0 0.0
  %286 = vmatpush2.msra.mxu0 0.0
  %287 = vmatprep.subr.mxu0 0.0
  %288 = vmatpush2.msra.mxu0 0.0
  %289 = vmatprep.subr.mxu0 0.0
  %290 = vmatpush2.msra.mxu0 0.0
  %291 = vmatprep.subr.mxu0 0.0
  %292 = vmatpush2.msra.mxu0 0.0
  %293 = vmatprep.subr.mxu0 0.0
  %294 = vmatpush2.msra.mxu0 0.0
  %295 = vmatprep.subr.mxu0 0.0
  %296 = vmatpush2.msra.mxu0 0.0
  %297 = vmatprep.subr.mxu0 0.0
  %298 = vmatpush2.msra.mxu0 0.0
  %299 = vmatprep.subr.mxu0 0.0
  %300 = vmatpush2.msra.mxu0 0.0
  %301 = vmatprep.subr.mxu0 0.0
  %302 = vmatpush2.msra.mxu0 0.0
  %303 = vmatprep.subr.mxu0 0.0
  %304 = vmatpush2.msra.mxu0 0.0
  %305 = vmatprep.subr.mxu0 0.0
  %306 = vmatpush2.msra.mxu0 0.0
  %307 = vmatprep.subr.mxu0 0.0
  %308 = vmatpush2.msra.mxu0 0.0
  %309 = vmatprep.subr.mxu0 0.0
  %310 = vmatpush2.msra.mxu0 0.0
  %311 = vmatprep.subr.mxu0 0.0
  %312 = vmatpush2.msra.mxu0 0.0
  %313 = vmatprep.mubr.f32.mxu0 0.0
  %314 = vmatmul.mubr.f32.gmra.mxu0 %v244
  %v315 = vpop.f32.mrf.mxu0
  %v316 = vadd.f32 %v240, %v315
  %v317 = vpop.f32.mrf.mxu0
  %318 = vmatprep.mubr.f32.mxu0 0.0
  %319 = vmatmul.mubr.f32.gmra.mxu0 %v247
  %v320 = vpop.f32.mrf.mxu0
  %v321 = vadd.f32 %v240, %v320
  %v322 = vpop.f32.mrf.mxu0
  %323 = vdwg.mxu0
  %v324 = vmax.f32 %v316, 0.0
  %v325 = vmax.f32 %v321, 0.0
  %v326 = vld [vmem:[%s13] sm:$0xff]
  %v327 = vld [vmem:[%s13 + $0x8] sm:$0xff]
  %v328 = vld [vmem:[%s13 + $0x10] sm:$0xff]
  %v329 = vld [vmem:[%s13 + $0x18] sm:$0xff]
  %v330 = vld [vmem:[%s15] sm:$0x1]
  %v332 = vlaneseq
  %v333 = vshrl.u32 %v332, 7
  %v334 = vsub.s32 0, %v333
  %v335 = vrot.slane %v330, %v334
  %v338 = vsel %vm217, %v185, 0
  %v341 = vsel %vm217, %v186, 0
  %343 = vmatprep.subr.mxu0 0.0
  %344 = vmatpush1.msra.mxu0 0.0
  %345 = vmatprep.subr.mxu0 0.0
  %346 = vmatpush1.msra.mxu0 0.0
  %347 = vmatprep.subr.mxu0 0.0
  %348 = vmatpush1.msra.mxu0 0.0
  %349 = vmatprep.subr.mxu0 0.0
  %350 = vmatpush1.msra.mxu0 0.0
  %351 = vmatprep.subr.mxu0 0.0
  %352 = vmatpush1.msra.mxu0 0.0
  %353 = vmatprep.subr.mxu0 0.0
  %354 = vmatpush1.msra.mxu0 0.0
  %355 = vmatprep.subr.mxu0 0.0
  %356 = vmatpush1.msra.mxu0 0.0
  %357 = vmatprep.subr.mxu0 0.0
  %358 = vmatpush1.msra.mxu0 0.0
  %359 = vmatprep.subr.mxu0 0.0
  %360 = vmatpush1.msra.mxu0 0.0
  %361 = vmatprep.subr.mxu0 0.0
  %362 = vmatpush1.msra.mxu0 0.0
  %363 = vmatprep.subr.mxu0 0.0
  %364 = vmatpush1.msra.mxu0 0.0
  %365 = vmatprep.subr.mxu0 0.0
  %366 = vmatpush1.msra.mxu0 0.0
  %367 = vmatprep.subr.mxu0 0.0
  %368 = vmatpush1.msra.mxu0 %v329
  %369 = vmatprep.subr.mxu0 0.0
  %370 = vmatpush1.msra.mxu0 %v328
  %371 = vmatprep.subr.mxu0 0.0
  %372 = vmatpush1.msra.mxu0 %v327
  %373 = vmatprep.subr.mxu0 0.0
  %374 = vmatpush1.msra.mxu0 %v326
  %375 = vmatprep.subr.mxu0 0.0
  %376 = vmatpush2.msra.mxu0 0.0
  %377 = vmatprep.subr.mxu0 0.0
  %378 = vmatpush2.msra.mxu0 0.0
  %379 = vmatprep.subr.mxu0 0.0
  %380 = vmatpush2.msra.mxu0 0.0
  %381 = vmatprep.subr.mxu0 0.0
  %382 = vmatpush2.msra.mxu0 0.0
  %383 = vmatprep.subr.mxu0 0.0
  %384 = vmatpush2.msra.mxu0 0.0
  %385 = vmatprep.subr.mxu0 0.0
  %386 = vmatpush2.msra.mxu0 0.0
  %387 = vmatprep.subr.mxu0 0.0
  %388 = vmatpush2.msra.mxu0 0.0
  %389 = vmatprep.subr.mxu0 0.0
  %390 = vmatpush2.msra.mxu0 0.0
  %391 = vmatprep.subr.mxu0 0.0
  %392 = vmatpush2.msra.mxu0 0.0
  %393 = vmatprep.subr.mxu0 0.0
  %394 = vmatpush2.msra.mxu0 0.0
  %395 = vmatprep.subr.mxu0 0.0
  %396 = vmatpush2.msra.mxu0 0.0
  %397 = vmatprep.subr.mxu0 0.0
  %398 = vmatpush2.msra.mxu0 0.0
  %399 = vmatprep.subr.mxu0 0.0
  %400 = vmatpush2.msra.mxu0 0.0
  %401 = vmatprep.subr.mxu0 0.0
  %402 = vmatpush2.msra.mxu0 0.0
  %403 = vmatprep.subr.mxu0 0.0
  %404 = vmatpush2.msra.mxu0 0.0
  %405 = vmatprep.subr.mxu0 0.0
  %406 = vmatpush2.msra.mxu0 0.0
  %407 = vmatprep.mubr.f32.mxu0 0.0
  %408 = vmatmul.mubr.f32.gmra.mxu0 %v338
  %v409 = vpop.f32.mrf.mxu0
  %v410 = vadd.f32 %v335, %v409
  %v411 = vpop.f32.mrf.mxu0
  %412 = vmatprep.mubr.f32.mxu0 0.0
  %413 = vmatmul.mubr.f32.gmra.mxu0 %v341
  %v414 = vpop.f32.mrf.mxu0
  %v415 = vadd.f32 %v335, %v414
  %v416 = vpop.f32.mrf.mxu0
  %417 = vdwg.mxu0
  %v418 = vadd.f32 %v324, %v410
  %v419 = vadd.f32 %v325, %v415
  %v420 = vld [vmem:[%s17] sm:$0x1]
  %v422 = vlaneseq
  %v423 = vshrl.u32 %v422, 7
  %v424 = vsub.s32 0, %v423
  %v425 = vrot.slane %v420, %v424
  %v427 = vmul.f32 %v418, %v425
  %v428 = vmul.f32 %v419, %v425
  %v429 = vld [vmem:[%s19] sm:$0x1]
  %v431 = vlaneseq
  %v432 = vshrl.u32 %v431, 7
  %v433 = vsub.s32 0, %v432
  %v434 = vrot.slane %v429, %v433
  %v436 = vadd.f32 %v427, %v434
  %v437 = vadd.f32 %v428, %v434
  %v438 = vmax.f32 %v436, 0.0
  %v439 = vmax.f32 %v437, 0.0
  %v440 = vsel %vm220, %v438, 0.0
  %441 = vadd.xlane.f32.xlu0 %v440
  %v442 = vpop.xlane.xlu0 %441
  %v443 = vsel %vm220, %v439, 0.0
  %444 = vadd.xlane.f32.xlu0 %v443
  %v445 = vpop.xlane.xlu0 %444
  %v446 = vmax.f32 %v442, 1e-12
  %v447 = vmax.f32 %v445, 1e-12
  %v448 = vrcp.pop %v446
  %v449 = vrcp.pop %v447
  %v450 = vmul.f32 %v438, %v448
  %v451 = vmul.f32 %v439, %v449
  %v452 = vrot.slane %v438, 7
  %v453 = vrot.slane %v439, 7
  %v454 = vsel %vm189, %v452, %v453
  %v455 = vsel %vm189, %v453, %v452
  %v456 = vmul.f32 %v455, %v177
  %v457 = vmul.f32 %v454, %v178
  %v458 = vrot.slane %v438, 6
  %v459 = vrot.slane %v439, 6
  %v460 = vsel %vm196, %v458, %v459
  %v461 = vsel %vm196, %v459, %v458
  %v462 = vmul.f32 %v461, %v183
  %v463 = vmul.f32 %v460, %v184
  %466 = vrot.lane.b32.xlu0 %v456, 64
  %v467 = vpop.permute.xlu0 %466
  %468 = vrot.lane.b32.xlu0 %v457, 64
  %v469 = vpop.permute.xlu0 %468
  %v472 = vsel %vm220, %v438, %v467
  %v473 = vsel %vm220, %v439, %v469
  %v474 = vld [vmem:[%s21] sm:$0xff]
  %v475 = vld [vmem:[%s21 + $0x8] sm:$0xff]
  %v476 = vld [vmem:[%s21 + $0x10] sm:$0xff]
  %v477 = vld [vmem:[%s21 + $0x18] sm:$0xff]
  %v478 = vld [vmem:[%s21 + $0x20] sm:$0xff]
  %v479 = vld [vmem:[%s21 + $0x28] sm:$0xff]
  %v480 = vld [vmem:[%s21 + $0x30] sm:$0xff]
  %v481 = vld [vmem:[%s21 + $0x38] sm:$0xff]
  %v482 = vld [vmem:[%s21 + $0x40] sm:$0xff]
  %v483 = vld [vmem:[%s21 + $0x48] sm:$0xff]
  %v484 = vld [vmem:[%s21 + $0x50] sm:$0xff]
  %v485 = vld [vmem:[%s21 + $0x58] sm:$0xff]
  %v486 = vld [vmem:[%s21 + $0x60] sm:$0xff]
  %v487 = vld [vmem:[%s21 + $0x68] sm:$0xff]
  %v488 = vld [vmem:[%s21 + $0x70] sm:$0xff]
  %v489 = vld [vmem:[%s21 + $0x78] sm:$0xff]
  %v490 = vld [vmem:[%s21 + $0x80] sm:$0xff]
  %v491 = vld [vmem:[%s21 + $0x88] sm:$0xff]
  %v492 = vld [vmem:[%s21 + $0x90] sm:$0xff]
  %v493 = vld [vmem:[%s21 + $0x98] sm:$0xff]
  %v494 = vld [vmem:[%s21 + $0xa0] sm:$0xff]
  %v495 = vld [vmem:[%s21 + $0xa8] sm:$0xff]
  %v496 = vld [vmem:[%s21 + $0xb0] sm:$0xff]
  %v497 = vld [vmem:[%s21 + $0xb8] sm:$0xff]
  %v498 = vld [vmem:[%s23] sm:$0x1]
  %v500 = vlaneseq
  %v501 = vshrl.u32 %v500, 7
  %v502 = vsub.s32 0, %v501
  %v503 = vrot.slane %v498, %v502
  %v506 = vsel %vm220, %v462, 0
  %v509 = vsel %vm220, %v463, 0
  %511 = vmatprep.subr.mxu0 0.0
  %512 = vmatpush1.msra.mxu0 %v489
  %513 = vmatprep.subr.mxu0 0.0
  %514 = vmatpush1.msra.mxu0 %v488
  %515 = vmatprep.subr.mxu0 0.0
  %516 = vmatpush1.msra.mxu0 %v487
  %517 = vmatprep.subr.mxu0 0.0
  %518 = vmatpush1.msra.mxu0 %v486
  %519 = vmatprep.subr.mxu0 0.0
  %520 = vmatpush1.msra.mxu0 %v485
  %521 = vmatprep.subr.mxu0 0.0
  %522 = vmatpush1.msra.mxu0 %v484
  %523 = vmatprep.subr.mxu0 0.0
  %524 = vmatpush1.msra.mxu0 %v483
  %525 = vmatprep.subr.mxu0 0.0
  %526 = vmatpush1.msra.mxu0 %v482
  %527 = vmatprep.subr.mxu0 0.0
  %528 = vmatpush1.msra.mxu0 %v481
  %529 = vmatprep.subr.mxu0 0.0
  %530 = vmatpush1.msra.mxu0 %v480
  %531 = vmatprep.subr.mxu0 0.0
  %532 = vmatpush1.msra.mxu0 %v479
  %533 = vmatprep.subr.mxu0 0.0
  %534 = vmatpush1.msra.mxu0 %v478
  %535 = vmatprep.subr.mxu0 0.0
  %536 = vmatpush1.msra.mxu0 %v477
  %537 = vmatprep.subr.mxu0 0.0
  %538 = vmatpush1.msra.mxu0 %v476
  %539 = vmatprep.subr.mxu0 0.0
  %540 = vmatpush1.msra.mxu0 %v475
  %541 = vmatprep.subr.mxu0 0.0
  %542 = vmatpush1.msra.mxu0 %v474
  %543 = vmatprep.subr.mxu0 0.0
  %544 = vmatpush2.msra.mxu0 0.0
  %545 = vmatprep.subr.mxu0 0.0
  %546 = vmatpush2.msra.mxu0 0.0
  %547 = vmatprep.subr.mxu0 0.0
  %548 = vmatpush2.msra.mxu0 0.0
  %549 = vmatprep.subr.mxu0 0.0
  %550 = vmatpush2.msra.mxu0 0.0
  %551 = vmatprep.subr.mxu0 0.0
  %552 = vmatpush2.msra.mxu0 0.0
  %553 = vmatprep.subr.mxu0 0.0
  %554 = vmatpush2.msra.mxu0 0.0
  %555 = vmatprep.subr.mxu0 0.0
  %556 = vmatpush2.msra.mxu0 0.0
  %557 = vmatprep.subr.mxu0 0.0
  %558 = vmatpush2.msra.mxu0 0.0
  %559 = vmatprep.subr.mxu0 0.0
  %560 = vmatpush2.msra.mxu0 %v497
  %561 = vmatprep.subr.mxu0 0.0
  %562 = vmatpush2.msra.mxu0 %v496
  %563 = vmatprep.subr.mxu0 0.0
  %564 = vmatpush2.msra.mxu0 %v495
  %565 = vmatprep.subr.mxu0 0.0
  %566 = vmatpush2.msra.mxu0 %v494
  %567 = vmatprep.subr.mxu0 0.0
  %568 = vmatpush2.msra.mxu0 %v493
  %569 = vmatprep.subr.mxu0 0.0
  %570 = vmatpush2.msra.mxu0 %v492
  %571 = vmatprep.subr.mxu0 0.0
  %572 = vmatpush2.msra.mxu0 %v491
  %573 = vmatprep.subr.mxu0 0.0
  %574 = vmatpush2.msra.mxu0 %v490
  %575 = vmatprep.mubr.f32.mxu0 %v506
  %576 = vmatmul.mubr.f32.gmra.mxu0 %v472
  %v577 = vpop.f32.mrf.mxu0
  %v578 = vadd.f32 %v503, %v577
  %v579 = vpop.f32.mrf.mxu0
  %580 = vmatprep.mubr.f32.mxu0 %v509
  %581 = vmatmul.mubr.f32.gmra.mxu0 %v473
  %v582 = vpop.f32.mrf.mxu0
  %v583 = vadd.f32 %v503, %v582
  %v584 = vpop.f32.mrf.mxu0
  %585 = vdwg.mxu0
  %v586 = vmax.f32 %v578, 0.0
  %v587 = vmax.f32 %v583, 0.0
  %v588 = vadd.f32 %v586, %v438
  %v589 = vadd.f32 %v587, %v439
  %v590 = vld [vmem:[%s25] sm:$0x1]
  %v592 = vlaneseq
  %v593 = vshrl.u32 %v592, 7
  %v594 = vsub.s32 0, %v593
  %v595 = vrot.slane %v590, %v594
  %v597 = vmul.f32 %v588, %v595
  %v598 = vmul.f32 %v589, %v595
  %v599 = vld [vmem:[%s27] sm:$0x1]
  %v601 = vlaneseq
  %v602 = vshrl.u32 %v601, 7
  %v603 = vsub.s32 0, %v602
  %v604 = vrot.slane %v599, %v603
  %v606 = vadd.f32 %v597, %v604
  %v607 = vadd.f32 %v598, %v604
  %v608 = vmax.f32 %v606, 0.0
  %v609 = vmax.f32 %v607, 0.0
  %v610 = vsel %vm220, %v608, 0.0
  %611 = vadd.xlane.f32.xlu0 %v610
  %v612 = vpop.xlane.xlu0 %611
  %v613 = vsel %vm220, %v609, 0.0
  %614 = vadd.xlane.f32.xlu0 %v613
  %v615 = vpop.xlane.xlu0 %614
  %v616 = vmax.f32 %v612, 1e-12
  %v617 = vmax.f32 %v615, 1e-12
  %v618 = vrcp.pop %v616
  %v619 = vrcp.pop %v617
  %v620 = vmul.f32 %v608, %v618
  %v621 = vmul.f32 %v609, %v619
  %v622 = vrot.slane %v608, 7
  %v623 = vrot.slane %v609, 7
  %v624 = vsel %vm189, %v622, %v623
  %v625 = vsel %vm189, %v623, %v622
  %v626 = vmul.f32 %v625, %v177
  %v627 = vmul.f32 %v624, %v178
  %v628 = vrot.slane %v608, 6
  %v629 = vrot.slane %v609, 6
  %v630 = vsel %vm196, %v628, %v629
  %v631 = vsel %vm196, %v629, %v628
  %v632 = vmul.f32 %v631, %v183
  %v633 = vmul.f32 %v630, %v184
  %636 = vrot.lane.b32.xlu0 %v626, 64
  %v637 = vpop.permute.xlu0 %636
  %638 = vrot.lane.b32.xlu0 %v627, 64
  %v639 = vpop.permute.xlu0 %638
  %v642 = vsel %vm220, %v608, %v637
  %v643 = vsel %vm220, %v609, %v639
  %v644 = vld [vmem:[%s29] sm:$0xff]
  %v645 = vld [vmem:[%s29 + $0x8] sm:$0xff]
  %v646 = vld [vmem:[%s29 + $0x10] sm:$0xff]
  %v647 = vld [vmem:[%s29 + $0x18] sm:$0xff]
  %v648 = vld [vmem:[%s29 + $0x20] sm:$0xff]
  %v649 = vld [vmem:[%s29 + $0x28] sm:$0xff]
  %v650 = vld [vmem:[%s29 + $0x30] sm:$0xff]
  %v651 = vld [vmem:[%s29 + $0x38] sm:$0xff]
  %v652 = vld [vmem:[%s29 + $0x40] sm:$0xff]
  %v653 = vld [vmem:[%s29 + $0x48] sm:$0xff]
  %v654 = vld [vmem:[%s29 + $0x50] sm:$0xff]
  %v655 = vld [vmem:[%s29 + $0x58] sm:$0xff]
  %v656 = vld [vmem:[%s29 + $0x60] sm:$0xff]
  %v657 = vld [vmem:[%s29 + $0x68] sm:$0xff]
  %v658 = vld [vmem:[%s29 + $0x70] sm:$0xff]
  %v659 = vld [vmem:[%s29 + $0x78] sm:$0xff]
  %v660 = vld [vmem:[%s29 + $0x80] sm:$0xff]
  %v661 = vld [vmem:[%s29 + $0x88] sm:$0xff]
  %v662 = vld [vmem:[%s29 + $0x90] sm:$0xff]
  %v663 = vld [vmem:[%s29 + $0x98] sm:$0xff]
  %v664 = vld [vmem:[%s29 + $0xa0] sm:$0xff]
  %v665 = vld [vmem:[%s29 + $0xa8] sm:$0xff]
  %v666 = vld [vmem:[%s29 + $0xb0] sm:$0xff]
  %v667 = vld [vmem:[%s29 + $0xb8] sm:$0xff]
  %v668 = vld [vmem:[%s31] sm:$0x1]
  %v670 = vlaneseq
  %v671 = vshrl.u32 %v670, 7
  %v672 = vsub.s32 0, %v671
  %v673 = vrot.slane %v668, %v672
  %v676 = vsel %vm220, %v632, 0
  %v679 = vsel %vm220, %v633, 0
  %681 = vmatprep.subr.mxu0 0.0
  %682 = vmatpush1.msra.mxu0 %v659
  %683 = vmatprep.subr.mxu0 0.0
  %684 = vmatpush1.msra.mxu0 %v658
  %685 = vmatprep.subr.mxu0 0.0
  %686 = vmatpush1.msra.mxu0 %v657
  %687 = vmatprep.subr.mxu0 0.0
  %688 = vmatpush1.msra.mxu0 %v656
  %689 = vmatprep.subr.mxu0 0.0
  %690 = vmatpush1.msra.mxu0 %v655
  %691 = vmatprep.subr.mxu0 0.0
  %692 = vmatpush1.msra.mxu0 %v654
  %693 = vmatprep.subr.mxu0 0.0
  %694 = vmatpush1.msra.mxu0 %v653
  %695 = vmatprep.subr.mxu0 0.0
  %696 = vmatpush1.msra.mxu0 %v652
  %697 = vmatprep.subr.mxu0 0.0
  %698 = vmatpush1.msra.mxu0 %v651
  %699 = vmatprep.subr.mxu0 0.0
  %700 = vmatpush1.msra.mxu0 %v650
  %701 = vmatprep.subr.mxu0 0.0
  %702 = vmatpush1.msra.mxu0 %v649
  %703 = vmatprep.subr.mxu0 0.0
  %704 = vmatpush1.msra.mxu0 %v648
  %705 = vmatprep.subr.mxu0 0.0
  %706 = vmatpush1.msra.mxu0 %v647
  %707 = vmatprep.subr.mxu0 0.0
  %708 = vmatpush1.msra.mxu0 %v646
  %709 = vmatprep.subr.mxu0 0.0
  %710 = vmatpush1.msra.mxu0 %v645
  %711 = vmatprep.subr.mxu0 0.0
  %712 = vmatpush1.msra.mxu0 %v644
  %713 = vmatprep.subr.mxu0 0.0
  %714 = vmatpush2.msra.mxu0 0.0
  %715 = vmatprep.subr.mxu0 0.0
  %716 = vmatpush2.msra.mxu0 0.0
  %717 = vmatprep.subr.mxu0 0.0
  %718 = vmatpush2.msra.mxu0 0.0
  %719 = vmatprep.subr.mxu0 0.0
  %720 = vmatpush2.msra.mxu0 0.0
  %721 = vmatprep.subr.mxu0 0.0
  %722 = vmatpush2.msra.mxu0 0.0
  %723 = vmatprep.subr.mxu0 0.0
  %724 = vmatpush2.msra.mxu0 0.0
  %725 = vmatprep.subr.mxu0 0.0
  %726 = vmatpush2.msra.mxu0 0.0
  %727 = vmatprep.subr.mxu0 0.0
  %728 = vmatpush2.msra.mxu0 0.0
  %729 = vmatprep.subr.mxu0 0.0
  %730 = vmatpush2.msra.mxu0 %v667
  %731 = vmatprep.subr.mxu0 0.0
  %732 = vmatpush2.msra.mxu0 %v666
  %733 = vmatprep.subr.mxu0 0.0
  %734 = vmatpush2.msra.mxu0 %v665
  %735 = vmatprep.subr.mxu0 0.0
  %736 = vmatpush2.msra.mxu0 %v664
  %737 = vmatprep.subr.mxu0 0.0
  %738 = vmatpush2.msra.mxu0 %v663
  %739 = vmatprep.subr.mxu0 0.0
  %740 = vmatpush2.msra.mxu0 %v662
  %741 = vmatprep.subr.mxu0 0.0
  %742 = vmatpush2.msra.mxu0 %v661
  %743 = vmatprep.subr.mxu0 0.0
  %744 = vmatpush2.msra.mxu0 %v660
  %745 = vmatprep.mubr.f32.mxu0 %v676
  %746 = vmatmul.mubr.f32.gmra.mxu0 %v642
  %v747 = vpop.f32.mrf.mxu0
  %v748 = vadd.f32 %v673, %v747
  %v749 = vpop.f32.mrf.mxu0
  %750 = vmatprep.mubr.f32.mxu0 %v679
  %751 = vmatmul.mubr.f32.gmra.mxu0 %v643
  %v752 = vpop.f32.mrf.mxu0
  %v753 = vadd.f32 %v673, %v752
  %v754 = vpop.f32.mrf.mxu0
  %755 = vdwg.mxu0
  %v756 = vmax.f32 %v748, 0.0
  %v757 = vmax.f32 %v753, 0.0
  %v758 = vld [vmem:[%s33] sm:$0xff]
  %v759 = vld [vmem:[%s33 + $0x8] sm:$0xff]
  %v760 = vld [vmem:[%s33 + $0x10] sm:$0xff]
  %v761 = vld [vmem:[%s33 + $0x18] sm:$0xff]
  %v762 = vld [vmem:[%s33 + $0x20] sm:$0xff]
  %v763 = vld [vmem:[%s33 + $0x28] sm:$0xff]
  %v764 = vld [vmem:[%s33 + $0x30] sm:$0xff]
  %v765 = vld [vmem:[%s33 + $0x38] sm:$0xff]
  %v766 = vld [vmem:[%s35] sm:$0x1]
  %v768 = vlaneseq
  %v769 = vshrl.u32 %v768, 7
  %v770 = vsub.s32 0, %v769
  %v771 = vrot.slane %v766, %v770
  %v774 = vsel %vm220, %v608, 0
  %v777 = vsel %vm220, %v609, 0
  %779 = vmatprep.subr.mxu0 0.0
  %780 = vmatpush1.msra.mxu0 0.0
  %781 = vmatprep.subr.mxu0 0.0
  %782 = vmatpush1.msra.mxu0 0.0
  %783 = vmatprep.subr.mxu0 0.0
  %784 = vmatpush1.msra.mxu0 0.0
  %785 = vmatprep.subr.mxu0 0.0
  %786 = vmatpush1.msra.mxu0 0.0
  %787 = vmatprep.subr.mxu0 0.0
  %788 = vmatpush1.msra.mxu0 0.0
  %789 = vmatprep.subr.mxu0 0.0
  %790 = vmatpush1.msra.mxu0 0.0
  %791 = vmatprep.subr.mxu0 0.0
  %792 = vmatpush1.msra.mxu0 0.0
  %793 = vmatprep.subr.mxu0 0.0
  %794 = vmatpush1.msra.mxu0 0.0
  %795 = vmatprep.subr.mxu0 0.0
  %796 = vmatpush1.msra.mxu0 %v765
  %797 = vmatprep.subr.mxu0 0.0
  %798 = vmatpush1.msra.mxu0 %v764
  %799 = vmatprep.subr.mxu0 0.0
  %800 = vmatpush1.msra.mxu0 %v763
  %801 = vmatprep.subr.mxu0 0.0
  %802 = vmatpush1.msra.mxu0 %v762
  %803 = vmatprep.subr.mxu0 0.0
  %804 = vmatpush1.msra.mxu0 %v761
  %805 = vmatprep.subr.mxu0 0.0
  %806 = vmatpush1.msra.mxu0 %v760
  %807 = vmatprep.subr.mxu0 0.0
  %808 = vmatpush1.msra.mxu0 %v759
  %809 = vmatprep.subr.mxu0 0.0
  %810 = vmatpush1.msra.mxu0 %v758
  %811 = vmatprep.subr.mxu0 0.0
  %812 = vmatpush2.msra.mxu0 0.0
  %813 = vmatprep.subr.mxu0 0.0
  %814 = vmatpush2.msra.mxu0 0.0
  %815 = vmatprep.subr.mxu0 0.0
  %816 = vmatpush2.msra.mxu0 0.0
  %817 = vmatprep.subr.mxu0 0.0
  %818 = vmatpush2.msra.mxu0 0.0
  %819 = vmatprep.subr.mxu0 0.0
  %820 = vmatpush2.msra.mxu0 0.0
  %821 = vmatprep.subr.mxu0 0.0
  %822 = vmatpush2.msra.mxu0 0.0
  %823 = vmatprep.subr.mxu0 0.0
  %824 = vmatpush2.msra.mxu0 0.0
  %825 = vmatprep.subr.mxu0 0.0
  %826 = vmatpush2.msra.mxu0 0.0
  %827 = vmatprep.subr.mxu0 0.0
  %828 = vmatpush2.msra.mxu0 0.0
  %829 = vmatprep.subr.mxu0 0.0
  %830 = vmatpush2.msra.mxu0 0.0
  %831 = vmatprep.subr.mxu0 0.0
  %832 = vmatpush2.msra.mxu0 0.0
  %833 = vmatprep.subr.mxu0 0.0
  %834 = vmatpush2.msra.mxu0 0.0
  %835 = vmatprep.subr.mxu0 0.0
  %836 = vmatpush2.msra.mxu0 0.0
  %837 = vmatprep.subr.mxu0 0.0
  %838 = vmatpush2.msra.mxu0 0.0
  %839 = vmatprep.subr.mxu0 0.0
  %840 = vmatpush2.msra.mxu0 0.0
  %841 = vmatprep.subr.mxu0 0.0
  %842 = vmatpush2.msra.mxu0 0.0
  %843 = vmatprep.mubr.f32.mxu0 0.0
  %844 = vmatmul.mubr.f32.gmra.mxu0 %v774
  %v845 = vpop.f32.mrf.mxu0
  %v846 = vadd.f32 %v771, %v845
  %v847 = vpop.f32.mrf.mxu0
  %848 = vmatprep.mubr.f32.mxu0 0.0
  %849 = vmatmul.mubr.f32.gmra.mxu0 %v777
  %v850 = vpop.f32.mrf.mxu0
  %v851 = vadd.f32 %v771, %v850
  %v852 = vpop.f32.mrf.mxu0
  %853 = vdwg.mxu0
  %v854 = vadd.f32 %v756, %v846
  %v855 = vadd.f32 %v757, %v851
  %v856 = vld [vmem:[%s37] sm:$0x1]
  %v858 = vlaneseq
  %v859 = vshrl.u32 %v858, 7
  %v860 = vsub.s32 0, %v859
  %v861 = vrot.slane %v856, %v860
  %v863 = vmul.f32 %v854, %v861
  %v864 = vmul.f32 %v855, %v861
  %v865 = vld [vmem:[%s39] sm:$0x1]
  %v867 = vlaneseq
  %v868 = vshrl.u32 %v867, 7
  %v869 = vsub.s32 0, %v868
  %v870 = vrot.slane %v865, %v869
  %v872 = vadd.f32 %v863, %v870
  %v873 = vadd.f32 %v864, %v870
  %v874 = vmax.f32 %v872, 0.0
  %v875 = vmax.f32 %v873, 0.0
  %876 = vadd.xlane.f32.xlu0 %v874
  %v877 = vpop.xlane.xlu0 %876
  %878 = vadd.xlane.f32.xlu0 %v875
  %v879 = vpop.xlane.xlu0 %878
  %v880 = vmax.f32 %v877, 1e-12
  %v881 = vmax.f32 %v879, 1e-12
  %v882 = vrcp.pop %v880
  %v883 = vrcp.pop %v881
  %v884 = vmul.f32 %v874, %v882
  %v885 = vmul.f32 %v875, %v883
  %888 = vrot.lane.b32.xlu0 %v620, 64
  %v889 = vpop.permute.xlu0 %888
  %890 = vrot.lane.b32.xlu0 %v621, 64
  %v891 = vpop.permute.xlu0 %890
  %v894 = vsel %vm220, %v450, %v889
  %v895 = vsel %vm220, %v451, %v891
  %v896 = vld [vmem:[%s41] sm:$0xff]
  %v897 = vld [vmem:[%s41 + $0x8] sm:$0xff]
  %v898 = vld [vmem:[%s41 + $0x10] sm:$0xff]
  %v899 = vld [vmem:[%s41 + $0x18] sm:$0xff]
  %v900 = vld [vmem:[%s41 + $0x20] sm:$0xff]
  %v901 = vld [vmem:[%s41 + $0x28] sm:$0xff]
  %v902 = vld [vmem:[%s41 + $0x30] sm:$0xff]
  %v903 = vld [vmem:[%s41 + $0x38] sm:$0xff]
  %v904 = vld [vmem:[%s41 + $0x40] sm:$0xff]
  %v905 = vld [vmem:[%s41 + $0x48] sm:$0xff]
  %v906 = vld [vmem:[%s41 + $0x50] sm:$0xff]
  %v907 = vld [vmem:[%s41 + $0x58] sm:$0xff]
  %v908 = vld [vmem:[%s41 + $0x60] sm:$0xff]
  %v909 = vld [vmem:[%s41 + $0x68] sm:$0xff]
  %v910 = vld [vmem:[%s41 + $0x70] sm:$0xff]
  %v911 = vld [vmem:[%s41 + $0x78] sm:$0xff]
  %v912 = vld [vmem:[%s41 + $0x80] sm:$0xff]
  %v913 = vld [vmem:[%s41 + $0x88] sm:$0xff]
  %v914 = vld [vmem:[%s41 + $0x90] sm:$0xff]
  %v915 = vld [vmem:[%s41 + $0x98] sm:$0xff]
  %v916 = vld [vmem:[%s41 + $0xa0] sm:$0xff]
  %v917 = vld [vmem:[%s41 + $0xa8] sm:$0xff]
  %v918 = vld [vmem:[%s41 + $0xb0] sm:$0xff]
  %v919 = vld [vmem:[%s41 + $0xb8] sm:$0xff]
  %v920 = vld [vmem:[%s41 + $0xc0] sm:$0xff]
  %v921 = vld [vmem:[%s41 + $0xc8] sm:$0xff]
  %v922 = vld [vmem:[%s41 + $0xd0] sm:$0xff]
  %v923 = vld [vmem:[%s41 + $0xd8] sm:$0xff]
  %v924 = vld [vmem:[%s41 + $0xe0] sm:$0xff]
  %v925 = vld [vmem:[%s41 + $0xe8] sm:$0xff]
  %v926 = vld [vmem:[%s41 + $0xf0] sm:$0xff]
  %v927 = vld [vmem:[%s41 + $0xf8] sm:$0xff]
  %v928 = vld [vmem:[%s43] sm:$0x1]
  %v930 = vlaneseq
  %v931 = vshrl.u32 %v930, 7
  %v932 = vsub.s32 0, %v931
  %v933 = vrot.slane %v928, %v932
  %935 = vmatprep.subr.mxu0 0.0
  %936 = vmatpush1.msra.mxu0 %v911
  %937 = vmatprep.subr.mxu0 0.0
  %938 = vmatpush1.msra.mxu0 %v910
  %939 = vmatprep.subr.mxu0 0.0
  %940 = vmatpush1.msra.mxu0 %v909
  %941 = vmatprep.subr.mxu0 0.0
  %942 = vmatpush1.msra.mxu0 %v908
  %943 = vmatprep.subr.mxu0 0.0
  %944 = vmatpush1.msra.mxu0 %v907
  %945 = vmatprep.subr.mxu0 0.0
  %946 = vmatpush1.msra.mxu0 %v906
  %947 = vmatprep.subr.mxu0 0.0
  %948 = vmatpush1.msra.mxu0 %v905
  %949 = vmatprep.subr.mxu0 0.0
  %950 = vmatpush1.msra.mxu0 %v904
  %951 = vmatprep.subr.mxu0 0.0
  %952 = vmatpush1.msra.mxu0 %v903
  %953 = vmatprep.subr.mxu0 0.0
  %954 = vmatpush1.msra.mxu0 %v902
  %955 = vmatprep.subr.mxu0 0.0
  %956 = vmatpush1.msra.mxu0 %v901
  %957 = vmatprep.subr.mxu0 0.0
  %958 = vmatpush1.msra.mxu0 %v900
  %959 = vmatprep.subr.mxu0 0.0
  %960 = vmatpush1.msra.mxu0 %v899
  %961 = vmatprep.subr.mxu0 0.0
  %962 = vmatpush1.msra.mxu0 %v898
  %963 = vmatprep.subr.mxu0 0.0
  %964 = vmatpush1.msra.mxu0 %v897
  %965 = vmatprep.subr.mxu0 0.0
  %966 = vmatpush1.msra.mxu0 %v896
  %967 = vmatprep.subr.mxu0 0.0
  %968 = vmatpush2.msra.mxu0 %v927
  %969 = vmatprep.subr.mxu0 0.0
  %970 = vmatpush2.msra.mxu0 %v926
  %971 = vmatprep.subr.mxu0 0.0
  %972 = vmatpush2.msra.mxu0 %v925
  %973 = vmatprep.subr.mxu0 0.0
  %974 = vmatpush2.msra.mxu0 %v924
  %975 = vmatprep.subr.mxu0 0.0
  %976 = vmatpush2.msra.mxu0 %v923
  %977 = vmatprep.subr.mxu0 0.0
  %978 = vmatpush2.msra.mxu0 %v922
  %979 = vmatprep.subr.mxu0 0.0
  %980 = vmatpush2.msra.mxu0 %v921
  %981 = vmatprep.subr.mxu0 0.0
  %982 = vmatpush2.msra.mxu0 %v920
  %983 = vmatprep.subr.mxu0 0.0
  %984 = vmatpush2.msra.mxu0 %v919
  %985 = vmatprep.subr.mxu0 0.0
  %986 = vmatpush2.msra.mxu0 %v918
  %987 = vmatprep.subr.mxu0 0.0
  %988 = vmatpush2.msra.mxu0 %v917
  %989 = vmatprep.subr.mxu0 0.0
  %990 = vmatpush2.msra.mxu0 %v916
  %991 = vmatprep.subr.mxu0 0.0
  %992 = vmatpush2.msra.mxu0 %v915
  %993 = vmatprep.subr.mxu0 0.0
  %994 = vmatpush2.msra.mxu0 %v914
  %995 = vmatprep.subr.mxu0 0.0
  %996 = vmatpush2.msra.mxu0 %v913
  %997 = vmatprep.subr.mxu0 0.0
  %998 = vmatpush2.msra.mxu0 %v912
  %999 = vmatprep.mubr.f32.mxu0 %v884
  %1000 = vmatmul.mubr.f32.gmra.mxu0 %v894
  %v1001 = vpop.f32.mrf.mxu0
  %v1002 = vadd.f32 %v933, %v1001
  %v1003 = vpop.f32.mrf.mxu0
  %1004 = vmatprep.mubr.f32.mxu0 %v885
  %1005 = vmatmul.mubr.f32.gmra.mxu0 %v895
  %v1006 = vpop.f32.mrf.mxu0
  %v1007 = vadd.f32 %v933, %v1006
  %v1008 = vpop.f32.mrf.mxu0
  %1009 = vdwg.mxu0
  %v1010 = vld [vmem:[%s45] sm:$0xff]
  %v1011 = vld [vmem:[%s45 + $0x8] sm:$0xff]
  %v1012 = vld [vmem:[%s45 + $0x10] sm:$0xff]
  %v1013 = vld [vmem:[%s45 + $0x18] sm:$0xff]
  %v1014 = vmul.f32 %v1010, %v1010
  %v1015 = vmul.f32 %v1011, %v1011
  %v1016 = vmul.f32 %v1012, %v1012
  %v1017 = vmul.f32 %v1013, %v1013
  %vm1018 = vcmask 31744
  %v1019 = vsel %vm1018, %v1014, 0.0
  %v1020 = vsel %vm1018, %v1015, 0.0
  %v1021 = vadd.f32 %v1019, %v1020
  %v1022 = vsel %vm1018, %v1016, 0.0
  %v1023 = vadd.f32 %v1021, %v1022
  %v1024 = vsel %vm1018, %v1017, 0.0
  %v1025 = vadd.f32 %v1023, %v1024
  %v1026 = vrot.slane %v1025, 4
  %v1027 = vadd.f32 %v1025, %v1026
  %v1028 = vrot.slane %v1027, 2
  %v1029 = vadd.f32 %v1027, %v1028
  %v1030 = vrot.slane %v1029, 1
  %v1031 = vadd.f32 %v1029, %v1030
  %v1033 = vsel %vm217, %v1002, 0
  %v1036 = vsel %vm217, %v1007, 0
  %1038 = vmatprep.subr.mxu0 0.0
  %1039 = vmatpush1.msra.mxu0 0.0
  %1040 = vmatprep.subr.mxu0 0.0
  %1041 = vmatpush1.msra.mxu0 0.0
  %1042 = vmatprep.subr.mxu0 0.0
  %1043 = vmatpush1.msra.mxu0 0.0
  %1044 = vmatprep.subr.mxu0 0.0
  %1045 = vmatpush1.msra.mxu0 0.0
  %1046 = vmatprep.subr.mxu0 0.0
  %1047 = vmatpush1.msra.mxu0 0.0
  %1048 = vmatprep.subr.mxu0 0.0
  %1049 = vmatpush1.msra.mxu0 0.0
  %1050 = vmatprep.subr.mxu0 0.0
  %1051 = vmatpush1.msra.mxu0 0.0
  %1052 = vmatprep.subr.mxu0 0.0
  %1053 = vmatpush1.msra.mxu0 0.0
  %1054 = vmatprep.subr.mxu0 0.0
  %1055 = vmatpush1.msra.mxu0 0.0
  %1056 = vmatprep.subr.mxu0 0.0
  %1057 = vmatpush1.msra.mxu0 0.0
  %1058 = vmatprep.subr.mxu0 0.0
  %1059 = vmatpush1.msra.mxu0 0.0
  %1060 = vmatprep.subr.mxu0 0.0
  %1061 = vmatpush1.msra.mxu0 0.0
  %1062 = vmatprep.subr.mxu0 0.0
  %1063 = vmatpush1.msra.mxu0 %v1013
  %1064 = vmatprep.subr.mxu0 0.0
  %1065 = vmatpush1.msra.mxu0 %v1012
  %1066 = vmatprep.subr.mxu0 0.0
  %1067 = vmatpush1.msra.mxu0 %v1011
  %1068 = vmatprep.subr.mxu0 0.0
  %1069 = vmatpush1.msra.mxu0 %v1010
  %1070 = vmatprep.subr.mxu0 0.0
  %1071 = vmatpush2.msra.mxu0 0.0
  %1072 = vmatprep.subr.mxu0 0.0
  %1073 = vmatpush2.msra.mxu0 0.0
  %1074 = vmatprep.subr.mxu0 0.0
  %1075 = vmatpush2.msra.mxu0 0.0
  %1076 = vmatprep.subr.mxu0 0.0
  %1077 = vmatpush2.msra.mxu0 0.0
  %1078 = vmatprep.subr.mxu0 0.0
  %1079 = vmatpush2.msra.mxu0 0.0
  %1080 = vmatprep.subr.mxu0 0.0
  %1081 = vmatpush2.msra.mxu0 0.0
  %1082 = vmatprep.subr.mxu0 0.0
  %1083 = vmatpush2.msra.mxu0 0.0
  %1084 = vmatprep.subr.mxu0 0.0
  %1085 = vmatpush2.msra.mxu0 0.0
  %1086 = vmatprep.subr.mxu0 0.0
  %1087 = vmatpush2.msra.mxu0 0.0
  %1088 = vmatprep.subr.mxu0 0.0
  %1089 = vmatpush2.msra.mxu0 0.0
  %1090 = vmatprep.subr.mxu0 0.0
  %1091 = vmatpush2.msra.mxu0 0.0
  %1092 = vmatprep.subr.mxu0 0.0
  %1093 = vmatpush2.msra.mxu0 0.0
  %1094 = vmatprep.subr.mxu0 0.0
  %1095 = vmatpush2.msra.mxu0 0.0
  %1096 = vmatprep.subr.mxu0 0.0
  %1097 = vmatpush2.msra.mxu0 0.0
  %1098 = vmatprep.subr.mxu0 0.0
  %1099 = vmatpush2.msra.mxu0 0.0
  %1100 = vmatprep.subr.mxu0 0.0
  %1101 = vmatpush2.msra.mxu0 0.0
  %1102 = vmatprep.mubr.f32.mxu0 0.0
  %1103 = vmatmul.mubr.f32.gmra.mxu0 %v1033
  %v1104 = vpop.f32.mrf.mxu0
  %v1105 = vadd.f32 0.0, %v1104
  %v1106 = vpop.f32.mrf.mxu0
  %1107 = vmatprep.mubr.f32.mxu0 0.0
  %1108 = vmatmul.mubr.f32.gmra.mxu0 %v1036
  %v1109 = vpop.f32.mrf.mxu0
  %v1110 = vadd.f32 0.0, %v1109
  %v1111 = vpop.f32.mrf.mxu0
  %1112 = vdwg.mxu0
  %v1113 = vmul.f32 %v1105, 2.0
  %v1114 = vmul.f32 %v1110, 2.0
  %v1115 = vsub.f32 %v1031, %v1113
  %v1116 = vsub.f32 %v1031, %v1114
  %v1117 = vlaneseq
  %v1118 = vand.u32 %v1117, 127
  %v1119 = vsel %vm1018, %v1115, inf
  %1120 = vmin.xlane.f32.xlu0 %v1119
  %v1121 = vpop.xlane.xlu0 %1120
  %v1122 = vsel %vm1018, %v1116, inf
  %1123 = vmin.xlane.f32.xlu0 %v1122
  %v1124 = vpop.xlane.xlu0 %1123
  %vm1125 = vcmp.le.f32.partialorder %v1115, %v1121
  %vm1126 = vcmp.le.f32.partialorder %v1116, %v1124
  %v1127 = vsel %vm1125, %v1118, 4
  %v1128 = vsel %vm1126, %v1118, 4
  %v1129 = vsel %vm1018, %v1127, 2147483647
  %v1130 = vand.u32 %v1129, 65535
  %v1131 = vshra.s32 %v1129, 16
  %v1132 = vcvt.s32.f32 %v1130
  %v1133 = vcvt.s32.f32 %v1131
  %1134 = vmin.xlane.f32.xlu0 %v1133
  %v1135 = vpop.xlane.xlu0 %1134
  %vm1136 = vcmp.eq.f32.partialorder %v1133, %v1135
  %v1137 = vsel %vm1136, %v1132, inf
  %1138 = vmin.xlane.f32.xlu0 %v1137
  %v1139 = vpop.xlane.xlu0 %1138
  %v1140 = vcvt.f32.s32 %v1139
  %v1141 = vcvt.f32.s32 %v1135
  %v1142 = vshll.u32 %v1141, 16
  %v1143 = vadd.s32 %v1142, %v1140
  %v1144 = vsel %vm1018, %v1128, 2147483647
  %v1145 = vand.u32 %v1144, 65535
  %v1146 = vshra.s32 %v1144, 16
  %v1147 = vcvt.s32.f32 %v1145
  %v1148 = vcvt.s32.f32 %v1146
  %1149 = vmin.xlane.f32.xlu0 %v1148
  %v1150 = vpop.xlane.xlu0 %1149
  %vm1151 = vcmp.eq.f32.partialorder %v1148, %v1150
  %v1152 = vsel %vm1151, %v1147, inf
  %1153 = vmin.xlane.f32.xlu0 %v1152
  %v1154 = vpop.xlane.xlu0 %1153
  %v1155 = vcvt.f32.s32 %v1154
  %v1156 = vcvt.f32.s32 %v1150
  %v1157 = vshll.u32 %v1156, 16
  %v1158 = vadd.s32 %v1157, %v1155
  %vm1159 = vcmp.eq.s32.totalorder %v1143, %v1118
  %vm1160 = vcmp.eq.s32.totalorder %v1158, %v1118
  %v1161 = vsel %vm1159, 1, 0
  %v1162 = vsel %vm1160, 1, 0
  %v1163 = vcvt.s32.f32 %v1161
  %v1164 = vcvt.s32.f32 %v1162
  %v1166 = vsel %vm1018, %v1163, 0
  %v1169 = vsel %vm1018, %v1164, 0
  %1171 = vmatprep.subr.mxu0 0.0
  %1172 = vmatpush1.xpose.msra.mxu0 0.0
  %1173 = vmatprep.subr.mxu0 0.0
  %1174 = vmatpush1.xpose.msra.mxu0 0.0
  %1175 = vmatprep.subr.mxu0 0.0
  %1176 = vmatpush1.xpose.msra.mxu0 0.0
  %1177 = vmatprep.subr.mxu0 0.0
  %1178 = vmatpush1.xpose.msra.mxu0 0.0
  %1179 = vmatprep.subr.mxu0 0.0
  %1180 = vmatpush1.xpose.msra.mxu0 0.0
  %1181 = vmatprep.subr.mxu0 0.0
  %1182 = vmatpush1.xpose.msra.mxu0 0.0
  %1183 = vmatprep.subr.mxu0 0.0
  %1184 = vmatpush1.xpose.msra.mxu0 0.0
  %1185 = vmatprep.subr.mxu0 0.0
  %1186 = vmatpush1.xpose.msra.mxu0 0.0
  %1187 = vmatprep.subr.mxu0 0.0
  %1188 = vmatpush1.xpose.msra.mxu0 0.0
  %1189 = vmatprep.subr.mxu0 0.0
  %1190 = vmatpush1.xpose.msra.mxu0 0.0
  %1191 = vmatprep.subr.mxu0 0.0
  %1192 = vmatpush1.xpose.msra.mxu0 0.0
  %1193 = vmatprep.subr.mxu0 0.0
  %1194 = vmatpush1.xpose.msra.mxu0 0.0
  %1195 = vmatprep.subr.mxu0 0.0
  %1196 = vmatpush1.xpose.msra.mxu0 0.0
  %1197 = vmatprep.subr.mxu0 0.0
  %1198 = vmatpush1.xpose.msra.mxu0 0.0
  %1199 = vmatprep.subr.mxu0 0.0
  %1200 = vmatpush1.xpose.msra.mxu0 %v1169
  %1201 = vmatprep.subr.mxu0 0.0
  %1202 = vmatpush1.xpose.msra.mxu0 %v1166
  %1203 = vmatprep.subr.mxu0 0.0
  %1204 = vmatpush2.xpose.msra.mxu0 0.0
  %1205 = vmatprep.subr.mxu0 0.0
  %1206 = vmatpush2.xpose.msra.mxu0 0.0
  %1207 = vmatprep.subr.mxu0 0.0
  %1208 = vmatpush2.xpose.msra.mxu0 0.0
  %1209 = vmatprep.subr.mxu0 0.0
  %1210 = vmatpush2.xpose.msra.mxu0 0.0
  %1211 = vmatprep.subr.mxu0 0.0
  %1212 = vmatpush2.xpose.msra.mxu0 0.0
  %1213 = vmatprep.subr.mxu0 0.0
  %1214 = vmatpush2.xpose.msra.mxu0 0.0
  %1215 = vmatprep.subr.mxu0 0.0
  %1216 = vmatpush2.xpose.msra.mxu0 0.0
  %1217 = vmatprep.subr.mxu0 0.0
  %1218 = vmatpush2.xpose.msra.mxu0 0.0
  %1219 = vmatprep.subr.mxu0 0.0
  %1220 = vmatpush2.xpose.msra.mxu0 0.0
  %1221 = vmatprep.subr.mxu0 0.0
  %1222 = vmatpush2.xpose.msra.mxu0 0.0
  %1223 = vmatprep.subr.mxu0 0.0
  %1224 = vmatpush2.xpose.msra.mxu0 0.0
  %1225 = vmatprep.subr.mxu0 0.0
  %1226 = vmatpush2.xpose.msra.mxu0 0.0
  %1227 = vmatprep.subr.mxu0 0.0
  %1228 = vmatpush2.xpose.msra.mxu0 0.0
  %1229 = vmatprep.subr.mxu0 0.0
  %1230 = vmatpush2.xpose.msra.mxu0 0.0
  %1231 = vmatprep.subr.mxu0 0.0
  %1232 = vmatpush2.xpose.msra.mxu0 0.0
  %1233 = vmatprep.subr.mxu0 0.0
  %1234 = vmatpush2.xpose.msra.mxu0 0.0
  %1235 = vmatprep.mubr.f32.mxu0 0.0
  %1236 = vmatmul.mubr.f32.gmra.mxu0 %v1166
  %v1237 = vpop.f32.mrf.mxu0
  %v1238 = vadd.f32 0.0, %v1237
  %v1239 = vpop.f32.mrf.mxu0
  %1240 = vmatprep.mubr.f32.mxu0 0.0
  %1241 = vmatmul.mubr.f32.gmra.mxu0 %v1169
  %v1242 = vpop.f32.mrf.mxu0
  %v1243 = vadd.f32 0.0, %v1242
  %v1244 = vpop.f32.mrf.mxu0
  %1245 = vdwg.mxu0
  %vm1246 = vcmp.gt.f32.partialorder %v1238, 0.5
  %vm1247 = vcmp.gt.f32.partialorder %v1243, 0.5
  %vm1248 = vmand %vm1246, %vm144
  %vm1249 = vmand %vm1247, %vm145
  %v1250 = vld [vmem:[%s47] sm:$0x1]
  %v1251 = vmax.f32 %v1250, 0.0
  %vm1252 = vcmp.ne.f32.partialorder %v1250, %v1250
  %v1253 = vadd.f32 %v1250, 0.0
  %v1254 = vand.u32 2147483647, %v1250
  %v1255 = vsub.f32 0.0, %v1254
  %v1256 = vmul.f32 %v1255, 1.442695
  %v1257 = vpow.pop %v1256
  %v1258 = vadd.f32 %v1257, 1.0
  %v1259 = vlog2.pop %v1258
  %v1260 = vmul.f32 %v1259, 0.6931472
  %v1261 = vmul.f32 -0.5, %v1257
  %v1262 = vadd.f32 %v1261, 1.0
  %v1263 = vmul.f32 %v1262, %v1257
  %v1264 = vand.u32 2147483647, %v1257
  %vm1265 = vcmp.lt.f32.partialorder %v1264, 0.0004427343
  %v1266 = vsel %vm1265, %v1263, %v1260
  %v1267 = vadd.f32 %v1251, %v1266
  %v1268 = vsel %vm1252, %v1253, %v1267
  %v1269 = vsub.f32 0.0, %v1268
  %v1270 = vmul.f32 %v1269, 1.442695
  %v1271 = vpow.pop %v1270
  %v1272 = vmax.f32 %v1271, 1e-05
  %v1273 = vmin.f32 %v1272, 100000.0
  %v1274 = vld [vmem:[%s5] sm:$0xff]
  %v1275 = vld [vmem:[%s5 + $0x8] sm:$0xff]
  %v1276 = vld [vmem:[%s1] sm:$0xff]
  %v1277 = vld [vmem:[%s1 + $0x8] sm:$0xff]
  %v1278 = vld [vmem:[%s49] sm:$0xff]
  %v1279 = vld [vmem:[%s49 + $0x8] sm:$0xff]
  %v1280 = vld [vmem:[%s49 + $0x10] sm:$0xff]
  %v1281 = vld [vmem:[%s49 + $0x18] sm:$0xff]
  %v1282 = vld [vmem:[%s51] sm:$0x1]
  %v1284 = vlaneseq
  %v1285 = vshrl.u32 %v1284, 7
  %v1286 = vsub.s32 0, %v1285
  %v1287 = vrot.slane %v1282, %v1286
  %v1290 = vsel %vm217, %v1274, 0
  %v1293 = vsel %vm217, %v1275, 0
  %v1296 = vsel %vm217, %v1276, 0
  %v1299 = vsel %vm217, %v1277, 0
  %1301 = vmatprep.subr.mxu0 0.0
  %1302 = vmatpush1.msra.mxu0 0.0
  %1303 = vmatprep.subr.mxu0 0.0
  %1304 = vmatpush1.msra.mxu0 0.0
  %1305 = vmatprep.subr.mxu0 0.0
  %1306 = vmatpush1.msra.mxu0 0.0
  %1307 = vmatprep.subr.mxu0 0.0
  %1308 = vmatpush1.msra.mxu0 0.0
  %1309 = vmatprep.subr.mxu0 0.0
  %1310 = vmatpush1.msra.mxu0 0.0
  %1311 = vmatprep.subr.mxu0 0.0
  %1312 = vmatpush1.msra.mxu0 0.0
  %1313 = vmatprep.subr.mxu0 0.0
  %1314 = vmatpush1.msra.mxu0 0.0
  %1315 = vmatprep.subr.mxu0 0.0
  %1316 = vmatpush1.msra.mxu0 0.0
  %1317 = vmatprep.subr.mxu0 0.0
  %1318 = vmatpush1.msra.mxu0 0.0
  %1319 = vmatprep.subr.mxu0 0.0
  %1320 = vmatpush1.msra.mxu0 0.0
  %1321 = vmatprep.subr.mxu0 0.0
  %1322 = vmatpush1.msra.mxu0 0.0
  %1323 = vmatprep.subr.mxu0 0.0
  %1324 = vmatpush1.msra.mxu0 0.0
  %1325 = vmatprep.subr.mxu0 0.0
  %1326 = vmatpush1.msra.mxu0 %v1281
  %1327 = vmatprep.subr.mxu0 0.0
  %1328 = vmatpush1.msra.mxu0 %v1280
  %1329 = vmatprep.subr.mxu0 0.0
  %1330 = vmatpush1.msra.mxu0 %v1279
  %1331 = vmatprep.subr.mxu0 0.0
  %1332 = vmatpush1.msra.mxu0 %v1278
  %1333 = vmatprep.subr.mxu0 0.0
  %1334 = vmatpush2.msra.mxu0 0.0
  %1335 = vmatprep.subr.mxu0 0.0
  %1336 = vmatpush2.msra.mxu0 0.0
  %1337 = vmatprep.subr.mxu0 0.0
  %1338 = vmatpush2.msra.mxu0 0.0
  %1339 = vmatprep.subr.mxu0 0.0
  %1340 = vmatpush2.msra.mxu0 0.0
  %1341 = vmatprep.subr.mxu0 0.0
  %1342 = vmatpush2.msra.mxu0 0.0
  %1343 = vmatprep.subr.mxu0 0.0
  %1344 = vmatpush2.msra.mxu0 0.0
  %1345 = vmatprep.subr.mxu0 0.0
  %1346 = vmatpush2.msra.mxu0 0.0
  %1347 = vmatprep.subr.mxu0 0.0
  %1348 = vmatpush2.msra.mxu0 0.0
  %1349 = vmatprep.subr.mxu0 0.0
  %1350 = vmatpush2.msra.mxu0 0.0
  %1351 = vmatprep.subr.mxu0 0.0
  %1352 = vmatpush2.msra.mxu0 0.0
  %1353 = vmatprep.subr.mxu0 0.0
  %1354 = vmatpush2.msra.mxu0 0.0
  %1355 = vmatprep.subr.mxu0 0.0
  %1356 = vmatpush2.msra.mxu0 0.0
  %1357 = vmatprep.subr.mxu0 0.0
  %1358 = vmatpush2.msra.mxu0 0.0
  %1359 = vmatprep.subr.mxu0 0.0
  %1360 = vmatpush2.msra.mxu0 0.0
  %1361 = vmatprep.subr.mxu0 0.0
  %1362 = vmatpush2.msra.mxu0 0.0
  %1363 = vmatprep.subr.mxu0 0.0
  %1364 = vmatpush2.msra.mxu0 0.0
  %1365 = vmatprep.mubr.f32.mxu0 0.0
  %1366 = vmatmul.mubr.f32.gmra.mxu0 %v1290
  %v1367 = vpop.f32.mrf.mxu0
  %v1368 = vadd.f32 %v1287, %v1367
  %v1369 = vpop.f32.mrf.mxu0
  %1370 = vmatprep.mubr.f32.mxu0 0.0
  %1371 = vmatmul.mubr.f32.gmra.mxu0 %v1293
  %v1372 = vpop.f32.mrf.mxu0
  %v1373 = vadd.f32 %v1287, %v1372
  %v1374 = vpop.f32.mrf.mxu0
  %1375 = vmatprep.mubr.f32.mxu0 0.0
  %1376 = vmatmul.mubr.f32.gmra.mxu0 %v1296
  %v1377 = vpop.f32.mrf.mxu0
  %v1378 = vadd.f32 %v1287, %v1377
  %v1379 = vpop.f32.mrf.mxu0
  %1380 = vmatprep.mubr.f32.mxu0 0.0
  %1381 = vmatmul.mubr.f32.gmra.mxu0 %v1299
  %v1382 = vpop.f32.mrf.mxu0
  %v1383 = vadd.f32 %v1287, %v1382
  %v1384 = vpop.f32.mrf.mxu0
  %1385 = vdwg.mxu0
  %v1386 = vld [vmem:[%s53] sm:$0xff]
  %v1387 = vld [vmem:[%s53 + $0x8] sm:$0xff]
  %v1388 = vld [vmem:[%s53 + $0x10] sm:$0xff]
  %v1389 = vld [vmem:[%s53 + $0x18] sm:$0xff]
  %v1390 = vld [vmem:[%s55] sm:$0x1]
  %v1392 = vlaneseq
  %v1393 = vshrl.u32 %v1392, 7
  %v1394 = vsub.s32 0, %v1393
  %v1395 = vrot.slane %v1390, %v1394
  %1397 = vmatprep.subr.mxu0 0.0
  %1398 = vmatpush1.msra.mxu0 0.0
  %1399 = vmatprep.subr.mxu0 0.0
  %1400 = vmatpush1.msra.mxu0 0.0
  %1401 = vmatprep.subr.mxu0 0.0
  %1402 = vmatpush1.msra.mxu0 0.0
  %1403 = vmatprep.subr.mxu0 0.0
  %1404 = vmatpush1.msra.mxu0 0.0
  %1405 = vmatprep.subr.mxu0 0.0
  %1406 = vmatpush1.msra.mxu0 0.0
  %1407 = vmatprep.subr.mxu0 0.0
  %1408 = vmatpush1.msra.mxu0 0.0
  %1409 = vmatprep.subr.mxu0 0.0
  %1410 = vmatpush1.msra.mxu0 0.0
  %1411 = vmatprep.subr.mxu0 0.0
  %1412 = vmatpush1.msra.mxu0 0.0
  %1413 = vmatprep.subr.mxu0 0.0
  %1414 = vmatpush1.msra.mxu0 0.0
  %1415 = vmatprep.subr.mxu0 0.0
  %1416 = vmatpush1.msra.mxu0 0.0
  %1417 = vmatprep.subr.mxu0 0.0
  %1418 = vmatpush1.msra.mxu0 0.0
  %1419 = vmatprep.subr.mxu0 0.0
  %1420 = vmatpush1.msra.mxu0 0.0
  %1421 = vmatprep.subr.mxu0 0.0
  %1422 = vmatpush1.msra.mxu0 %v1389
  %1423 = vmatprep.subr.mxu0 0.0
  %1424 = vmatpush1.msra.mxu0 %v1388
  %1425 = vmatprep.subr.mxu0 0.0
  %1426 = vmatpush1.msra.mxu0 %v1387
  %1427 = vmatprep.subr.mxu0 0.0
  %1428 = vmatpush1.msra.mxu0 %v1386
  %1429 = vmatprep.subr.mxu0 0.0
  %1430 = vmatpush2.msra.mxu0 0.0
  %1431 = vmatprep.subr.mxu0 0.0
  %1432 = vmatpush2.msra.mxu0 0.0
  %1433 = vmatprep.subr.mxu0 0.0
  %1434 = vmatpush2.msra.mxu0 0.0
  %1435 = vmatprep.subr.mxu0 0.0
  %1436 = vmatpush2.msra.mxu0 0.0
  %1437 = vmatprep.subr.mxu0 0.0
  %1438 = vmatpush2.msra.mxu0 0.0
  %1439 = vmatprep.subr.mxu0 0.0
  %1440 = vmatpush2.msra.mxu0 0.0
  %1441 = vmatprep.subr.mxu0 0.0
  %1442 = vmatpush2.msra.mxu0 0.0
  %1443 = vmatprep.subr.mxu0 0.0
  %1444 = vmatpush2.msra.mxu0 0.0
  %1445 = vmatprep.subr.mxu0 0.0
  %1446 = vmatpush2.msra.mxu0 0.0
  %1447 = vmatprep.subr.mxu0 0.0
  %1448 = vmatpush2.msra.mxu0 0.0
  %1449 = vmatprep.subr.mxu0 0.0
  %1450 = vmatpush2.msra.mxu0 0.0
  %1451 = vmatprep.subr.mxu0 0.0
  %1452 = vmatpush2.msra.mxu0 0.0
  %1453 = vmatprep.subr.mxu0 0.0
  %1454 = vmatpush2.msra.mxu0 0.0
  %1455 = vmatprep.subr.mxu0 0.0
  %1456 = vmatpush2.msra.mxu0 0.0
  %1457 = vmatprep.subr.mxu0 0.0
  %1458 = vmatpush2.msra.mxu0 0.0
  %1459 = vmatprep.subr.mxu0 0.0
  %1460 = vmatpush2.msra.mxu0 0.0
  %1461 = vmatprep.mubr.f32.mxu0 0.0
  %1462 = vmatmul.mubr.f32.gmra.mxu0 %v338
  %v1463 = vpop.f32.mrf.mxu0
  %v1464 = vadd.f32 %v1395, %v1463
  %v1465 = vpop.f32.mrf.mxu0
  %1466 = vmatprep.mubr.f32.mxu0 0.0
  %1467 = vmatmul.mubr.f32.gmra.mxu0 %v341
  %v1468 = vpop.f32.mrf.mxu0
  %v1469 = vadd.f32 %v1395, %v1468
  %v1470 = vpop.f32.mrf.mxu0
  %1471 = vdwg.mxu0
  %vm1472 = vcmask 64512
  %v1473 = vsel %vm1472, %v1002, 0
  %v1475 = vsel %vm1472, %v1007, 0
  %1477 = vmatprep.subr.mxu0 0.0
  %1478 = vmatpush1.xpose.msra.mxu0 0.0
  %1479 = vmatprep.subr.mxu0 0.0
  %1480 = vmatpush1.xpose.msra.mxu0 0.0
  %1481 = vmatprep.subr.mxu0 0.0
  %1482 = vmatpush1.xpose.msra.mxu0 0.0
  %1483 = vmatprep.subr.mxu0 0.0
  %1484 = vmatpush1.xpose.msra.mxu0 0.0
  %1485 = vmatprep.subr.mxu0 0.0
  %1486 = vmatpush1.xpose.msra.mxu0 0.0
  %1487 = vmatprep.subr.mxu0 0.0
  %1488 = vmatpush1.xpose.msra.mxu0 0.0
  %1489 = vmatprep.subr.mxu0 0.0
  %1490 = vmatpush1.xpose.msra.mxu0 0.0
  %1491 = vmatprep.subr.mxu0 0.0
  %1492 = vmatpush1.xpose.msra.mxu0 0.0
  %1493 = vmatprep.subr.mxu0 0.0
  %1494 = vmatpush1.xpose.msra.mxu0 0.0
  %1495 = vmatprep.subr.mxu0 0.0
  %1496 = vmatpush1.xpose.msra.mxu0 0.0
  %1497 = vmatprep.subr.mxu0 0.0
  %1498 = vmatpush1.xpose.msra.mxu0 0.0
  %1499 = vmatprep.subr.mxu0 0.0
  %1500 = vmatpush1.xpose.msra.mxu0 0.0
  %1501 = vmatprep.subr.mxu0 0.0
  %1502 = vmatpush1.xpose.msra.mxu0 0.0
  %1503 = vmatprep.subr.mxu0 0.0
  %1504 = vmatpush1.xpose.msra.mxu0 0.0
  %1505 = vmatprep.subr.mxu0 0.0
  %1506 = vmatpush1.xpose.msra.mxu0 %v1475
  %1507 = vmatprep.subr.mxu0 0.0
  %1508 = vmatpush1.xpose.msra.mxu0 %v1473
  %1509 = vmatprep.subr.mxu0 0.0
  %1510 = vmatpush2.xpose.msra.mxu0 0.0
  %1511 = vmatprep.subr.mxu0 0.0
  %1512 = vmatpush2.xpose.msra.mxu0 0.0
  %1513 = vmatprep.subr.mxu0 0.0
  %1514 = vmatpush2.xpose.msra.mxu0 0.0
  %1515 = vmatprep.subr.mxu0 0.0
  %1516 = vmatpush2.xpose.msra.mxu0 0.0
  %1517 = vmatprep.subr.mxu0 0.0
  %1518 = vmatpush2.xpose.msra.mxu0 0.0
  %1519 = vmatprep.subr.mxu0 0.0
  %1520 = vmatpush2.xpose.msra.mxu0 0.0
  %1521 = vmatprep.subr.mxu0 0.0
  %1522 = vmatpush2.xpose.msra.mxu0 0.0
  %1523 = vmatprep.subr.mxu0 0.0
  %1524 = vmatpush2.xpose.msra.mxu0 0.0
  %1525 = vmatprep.subr.mxu0 0.0
  %1526 = vmatpush2.xpose.msra.mxu0 0.0
  %1527 = vmatprep.subr.mxu0 0.0
  %1528 = vmatpush2.xpose.msra.mxu0 0.0
  %1529 = vmatprep.subr.mxu0 0.0
  %1530 = vmatpush2.xpose.msra.mxu0 0.0
  %1531 = vmatprep.subr.mxu0 0.0
  %1532 = vmatpush2.xpose.msra.mxu0 0.0
  %1533 = vmatprep.subr.mxu0 0.0
  %1534 = vmatpush2.xpose.msra.mxu0 0.0
  %1535 = vmatprep.subr.mxu0 0.0
  %1536 = vmatpush2.xpose.msra.mxu0 0.0
  %1537 = vmatprep.subr.mxu0 0.0
  %1538 = vmatpush2.xpose.msra.mxu0 0.0
  %1539 = vmatprep.subr.mxu0 0.0
  %1540 = vmatpush2.xpose.msra.mxu0 0.0
  %1541 = vmatprep.mubr.f32.mxu0 0.0
  %1542 = vmatmul.mubr.f32.gmra.mxu0 %v1473
  %v1543 = vpop.f32.mrf.mxu0
  %v1544 = vadd.f32 0.0, %v1543
  %v1545 = vpop.f32.mrf.mxu0
  %1546 = vmatprep.mubr.f32.mxu0 0.0
  %1547 = vmatmul.mubr.f32.gmra.mxu0 %v1475
  %v1548 = vpop.f32.mrf.mxu0
  %v1549 = vadd.f32 0.0, %v1548
  %v1550 = vpop.f32.mrf.mxu0
  %1551 = vdwg.mxu0
  %v1552 = vmul.f32 %v1544, 0.17677669
  %v1553 = vmul.f32 %v1549, 0.17677669
  %v1555 = vlaneseq
  %v1556 = vshrl.u32 %v1555, 7
  %v1557 = vsub.s32 0, %v1556
  %v1558 = vrot.slane %v1273, %v1557
  %1559 = vset.pattern.permute.xlu0 0
  %1560 = vperm.xlu0 %1559, %v1558
  %v1561 = vpop.permute.xlu0 %1560
  %v1563 = vmul.f32 %v1552, %v1561
  %v1564 = vmul.f32 %v1553, %v1561
  %v1565 = vsel %vm1248, %v1563, 0.0
  %v1566 = vsel %vm1249, %v1564, 0.0
  %v1568 = vsel %vm1472, %v1368, 0
  %v1571 = vsel %vm1472, %v1373, 0
  %v1574 = vsel %vm1472, %v1378, 0
  %v1577 = vsel %vm1472, %v1383, 0
  %1579 = vmatprep.subr.mxu0 0.0
  %1580 = vmatpush1.xpose.msra.mxu0 0.0
  %1581 = vmatprep.subr.mxu0 0.0
  %1582 = vmatpush1.xpose.msra.mxu0 0.0
  %1583 = vmatprep.subr.mxu0 0.0
  %1584 = vmatpush1.xpose.msra.mxu0 0.0
  %1585 = vmatprep.subr.mxu0 0.0
  %1586 = vmatpush1.xpose.msra.mxu0 0.0
  %1587 = vmatprep.subr.mxu0 0.0
  %1588 = vmatpush1.xpose.msra.mxu0 0.0
  %1589 = vmatprep.subr.mxu0 0.0
  %1590 = vmatpush1.xpose.msra.mxu0 0.0
  %1591 = vmatprep.subr.mxu0 0.0
  %1592 = vmatpush1.xpose.msra.mxu0 0.0
  %1593 = vmatprep.subr.mxu0 0.0
  %1594 = vmatpush1.xpose.msra.mxu0 0.0
  %1595 = vmatprep.subr.mxu0 0.0
  %1596 = vmatpush1.xpose.msra.mxu0 0.0
  %1597 = vmatprep.subr.mxu0 0.0
  %1598 = vmatpush1.xpose.msra.mxu0 0.0
  %1599 = vmatprep.subr.mxu0 0.0
  %1600 = vmatpush1.xpose.msra.mxu0 0.0
  %1601 = vmatprep.subr.mxu0 0.0
  %1602 = vmatpush1.xpose.msra.mxu0 0.0
  %1603 = vmatprep.subr.mxu0 0.0
  %1604 = vmatpush1.xpose.msra.mxu0 0.0
  %1605 = vmatprep.subr.mxu0 0.0
  %1606 = vmatpush1.xpose.msra.mxu0 0.0
  %1607 = vmatprep.subr.mxu0 0.0
  %1608 = vmatpush1.xpose.msra.mxu0 %v1577
  %1609 = vmatprep.subr.mxu0 0.0
  %1610 = vmatpush1.xpose.msra.mxu0 %v1574
  %1611 = vmatprep.subr.mxu0 0.0
  %1612 = vmatpush2.xpose.msra.mxu0 0.0
  %1613 = vmatprep.subr.mxu0 0.0
  %1614 = vmatpush2.xpose.msra.mxu0 0.0
  %1615 = vmatprep.subr.mxu0 0.0
  %1616 = vmatpush2.xpose.msra.mxu0 0.0
  %1617 = vmatprep.subr.mxu0 0.0
  %1618 = vmatpush2.xpose.msra.mxu0 0.0
  %1619 = vmatprep.subr.mxu0 0.0
  %1620 = vmatpush2.xpose.msra.mxu0 0.0
  %1621 = vmatprep.subr.mxu0 0.0
  %1622 = vmatpush2.xpose.msra.mxu0 0.0
  %1623 = vmatprep.subr.mxu0 0.0
  %1624 = vmatpush2.xpose.msra.mxu0 0.0
  %1625 = vmatprep.subr.mxu0 0.0
  %1626 = vmatpush2.xpose.msra.mxu0 0.0
  %1627 = vmatprep.subr.mxu0 0.0
  %1628 = vmatpush2.xpose.msra.mxu0 0.0
  %1629 = vmatprep.subr.mxu0 0.0
  %1630 = vmatpush2.xpose.msra.mxu0 0.0
  %1631 = vmatprep.subr.mxu0 0.0
  %1632 = vmatpush2.xpose.msra.mxu0 0.0
  %1633 = vmatprep.subr.mxu0 0.0
  %1634 = vmatpush2.xpose.msra.mxu0 0.0
  %1635 = vmatprep.subr.mxu0 0.0
  %1636 = vmatpush2.xpose.msra.mxu0 0.0
  %1637 = vmatprep.subr.mxu0 0.0
  %1638 = vmatpush2.xpose.msra.mxu0 0.0
  %1639 = vmatprep.subr.mxu0 0.0
  %1640 = vmatpush2.xpose.msra.mxu0 0.0
  %1641 = vmatprep.subr.mxu0 0.0
  %1642 = vmatpush2.xpose.msra.mxu0 0.0
  %1643 = vmatprep.mubr.f32.mxu0 0.0
  %1644 = vmatmul.mubr.f32.gmra.mxu0 %v1568
  %v1645 = vpop.f32.mrf.mxu0
  %v1646 = vadd.f32 0.0, %v1645
  %v1647 = vpop.f32.mrf.mxu0
  %1648 = vmatprep.mubr.f32.mxu0 0.0
  %1649 = vmatmul.mubr.f32.gmra.mxu0 %v1571
  %v1650 = vpop.f32.mrf.mxu0
  %v1651 = vadd.f32 0.0, %v1650
  %v1652 = vpop.f32.mrf.mxu0
  %1653 = vdwg.mxu0
  %v1654 = vmul.f32 %v1646, 0.35355338
  %v1655 = vmul.f32 %v1651, 0.35355338
  %v1656 = vadd.f32 %v1654, %v1565
  %v1657 = vadd.f32 %v1655, %v1566
  %v1658 = vsel %vm144, %v1656, -1e+32
  %v1659 = vsel %vm145, %v1657, -1e+32
  %vm1660 = vcmask 130048
  %v1661 = vsel %vm1660, %v1658, -inf
  %1662 = vmax.xlane.f32.xlu0 %v1661
  %v1663 = vpop.xlane.xlu0 %1662
  %v1664 = vsel %vm1660, %v1659, -inf
  %1665 = vmax.xlane.f32.xlu0 %v1664
  %v1666 = vpop.xlane.xlu0 %1665
  %v1667 = vsub.f32 %v1658, %v1663
  %v1668 = vsub.f32 %v1659, %v1666
  %v1669 = vmul.f32 %v1667, 1.442695
  %v1670 = vpow.pop %v1669
  %v1671 = vmul.f32 %v1668, 1.442695
  %v1672 = vpow.pop %v1671
  %v1673 = vsel %vm1660, %v1670, 0.0
  %1674 = vadd.xlane.f32.xlu0 %v1673
  %v1675 = vpop.xlane.xlu0 %1674
  %v1676 = vsel %vm1660, %v1672, 0.0
  %1677 = vadd.xlane.f32.xlu0 %v1676
  %v1678 = vpop.xlane.xlu0 %1677
  %v1679 = vrcp.pop %v1675
  %v1680 = vrcp.pop %v1678
  %v1681 = vmul.f32 %v1670, %v1679
  %v1682 = vmul.f32 %v1672, %v1680
  %v1683 = vsel %vm144, %v1681, 0.0
  %v1684 = vsel %vm145, %v1682, 0.0
  %v1686 = vsel %vm1660, %v1683, 0
  %v1689 = vsel %vm1660, %v1684, 0
  %1691 = vmatprep.subr.mxu0 0.0
  %1692 = vmatpush1.msra.mxu0 0.0
  %1693 = vmatprep.subr.mxu0 0.0
  %1694 = vmatpush1.msra.mxu0 0.0
  %1695 = vmatprep.subr.mxu0 0.0
  %1696 = vmatpush1.msra.mxu0 0.0
  %1697 = vmatprep.subr.mxu0 0.0
  %1698 = vmatpush1.msra.mxu0 0.0
  %1699 = vmatprep.subr.mxu0 0.0
  %1700 = vmatpush1.msra.mxu0 0.0
  %1701 = vmatprep.subr.mxu0 0.0
  %1702 = vmatpush1.msra.mxu0 0.0
  %1703 = vmatprep.subr.mxu0 0.0
  %1704 = vmatpush1.msra.mxu0 0.0
  %1705 = vmatprep.subr.mxu0 0.0
  %1706 = vmatpush1.msra.mxu0 0.0
  %1707 = vmatprep.subr.mxu0 0.0
  %1708 = vmatpush1.msra.mxu0 0.0
  %1709 = vmatprep.subr.mxu0 0.0
  %1710 = vmatpush1.msra.mxu0 0.0
  %1711 = vmatprep.subr.mxu0 0.0
  %1712 = vmatpush1.msra.mxu0 0.0
  %1713 = vmatprep.subr.mxu0 0.0
  %1714 = vmatpush1.msra.mxu0 0.0
  %1715 = vmatprep.subr.mxu0 0.0
  %1716 = vmatpush1.msra.mxu0 0.0
  %1717 = vmatprep.subr.mxu0 0.0
  %1718 = vmatpush1.msra.mxu0 0.0
  %1719 = vmatprep.subr.mxu0 0.0
  %1720 = vmatpush1.msra.mxu0 %v1469
  %1721 = vmatprep.subr.mxu0 0.0
  %1722 = vmatpush1.msra.mxu0 %v1464
  %1723 = vmatprep.subr.mxu0 0.0
  %1724 = vmatpush2.msra.mxu0 0.0
  %1725 = vmatprep.subr.mxu0 0.0
  %1726 = vmatpush2.msra.mxu0 0.0
  %1727 = vmatprep.subr.mxu0 0.0
  %1728 = vmatpush2.msra.mxu0 0.0
  %1729 = vmatprep.subr.mxu0 0.0
  %1730 = vmatpush2.msra.mxu0 0.0
  %1731 = vmatprep.subr.mxu0 0.0
  %1732 = vmatpush2.msra.mxu0 0.0
  %1733 = vmatprep.subr.mxu0 0.0
  %1734 = vmatpush2.msra.mxu0 0.0
  %1735 = vmatprep.subr.mxu0 0.0
  %1736 = vmatpush2.msra.mxu0 0.0
  %1737 = vmatprep.subr.mxu0 0.0
  %1738 = vmatpush2.msra.mxu0 0.0
  %1739 = vmatprep.subr.mxu0 0.0
  %1740 = vmatpush2.msra.mxu0 0.0
  %1741 = vmatprep.subr.mxu0 0.0
  %1742 = vmatpush2.msra.mxu0 0.0
  %1743 = vmatprep.subr.mxu0 0.0
  %1744 = vmatpush2.msra.mxu0 0.0
  %1745 = vmatprep.subr.mxu0 0.0
  %1746 = vmatpush2.msra.mxu0 0.0
  %1747 = vmatprep.subr.mxu0 0.0
  %1748 = vmatpush2.msra.mxu0 0.0
  %1749 = vmatprep.subr.mxu0 0.0
  %1750 = vmatpush2.msra.mxu0 0.0
  %1751 = vmatprep.subr.mxu0 0.0
  %1752 = vmatpush2.msra.mxu0 0.0
  %1753 = vmatprep.subr.mxu0 0.0
  %1754 = vmatpush2.msra.mxu0 0.0
  %1755 = vmatprep.mubr.f32.mxu0 0.0
  %1756 = vmatmul.mubr.f32.gmra.mxu0 %v1686
  %v1757 = vpop.f32.mrf.mxu0
  %v1758 = vadd.f32 0.0, %v1757
  %v1759 = vpop.f32.mrf.mxu0
  %1760 = vmatprep.mubr.f32.mxu0 0.0
  %1761 = vmatmul.mubr.f32.gmra.mxu0 %v1689
  %v1762 = vpop.f32.mrf.mxu0
  %v1763 = vadd.f32 0.0, %v1762
  %v1764 = vpop.f32.mrf.mxu0
  %1765 = vdwg.mxu0
  %1766 = vrot.lane.b32.xlu0 %v1002, 120
  %v1767 = vpop.permute.xlu0 %1766
  %1768 = vrot.lane.b32.xlu0 %v1007, 120
  %v1769 = vpop.permute.xlu0 %1768
  %v1770 = vsel %vm1472, %v1767, 0
  %v1772 = vsel %vm1472, %v1769, 0
  %1774 = vmatprep.subr.mxu0 0.0
  %1775 = vmatpush1.xpose.msra.mxu0 0.0
  %1776 = vmatprep.subr.mxu0 0.0
  %1777 = vmatpush1.xpose.msra.mxu0 0.0
  %1778 = vmatprep.subr.mxu0 0.0
  %1779 = vmatpush1.xpose.msra.mxu0 0.0
  %1780 = vmatprep.subr.mxu0 0.0
  %1781 = vmatpush1.xpose.msra.mxu0 0.0
  %1782 = vmatprep.subr.mxu0 0.0
  %1783 = vmatpush1.xpose.msra.mxu0 0.0
  %1784 = vmatprep.subr.mxu0 0.0
  %1785 = vmatpush1.xpose.msra.mxu0 0.0
  %1786 = vmatprep.subr.mxu0 0.0
  %1787 = vmatpush1.xpose.msra.mxu0 0.0
  %1788 = vmatprep.subr.mxu0 0.0
  %1789 = vmatpush1.xpose.msra.mxu0 0.0
  %1790 = vmatprep.subr.mxu0 0.0
  %1791 = vmatpush1.xpose.msra.mxu0 0.0
  %1792 = vmatprep.subr.mxu0 0.0
  %1793 = vmatpush1.xpose.msra.mxu0 0.0
  %1794 = vmatprep.subr.mxu0 0.0
  %1795 = vmatpush1.xpose.msra.mxu0 0.0
  %1796 = vmatprep.subr.mxu0 0.0
  %1797 = vmatpush1.xpose.msra.mxu0 0.0
  %1798 = vmatprep.subr.mxu0 0.0
  %1799 = vmatpush1.xpose.msra.mxu0 0.0
  %1800 = vmatprep.subr.mxu0 0.0
  %1801 = vmatpush1.xpose.msra.mxu0 0.0
  %1802 = vmatprep.subr.mxu0 0.0
  %1803 = vmatpush1.xpose.msra.mxu0 %v1772
  %1804 = vmatprep.subr.mxu0 0.0
  %1805 = vmatpush1.xpose.msra.mxu0 %v1770
  %1806 = vmatprep.subr.mxu0 0.0
  %1807 = vmatpush2.xpose.msra.mxu0 0.0
  %1808 = vmatprep.subr.mxu0 0.0
  %1809 = vmatpush2.xpose.msra.mxu0 0.0
  %1810 = vmatprep.subr.mxu0 0.0
  %1811 = vmatpush2.xpose.msra.mxu0 0.0
  %1812 = vmatprep.subr.mxu0 0.0
  %1813 = vmatpush2.xpose.msra.mxu0 0.0
  %1814 = vmatprep.subr.mxu0 0.0
  %1815 = vmatpush2.xpose.msra.mxu0 0.0
  %1816 = vmatprep.subr.mxu0 0.0
  %1817 = vmatpush2.xpose.msra.mxu0 0.0
  %1818 = vmatprep.subr.mxu0 0.0
  %1819 = vmatpush2.xpose.msra.mxu0 0.0
  %1820 = vmatprep.subr.mxu0 0.0
  %1821 = vmatpush2.xpose.msra.mxu0 0.0
  %1822 = vmatprep.subr.mxu0 0.0
  %1823 = vmatpush2.xpose.msra.mxu0 0.0
  %1824 = vmatprep.subr.mxu0 0.0
  %1825 = vmatpush2.xpose.msra.mxu0 0.0
  %1826 = vmatprep.subr.mxu0 0.0
  %1827 = vmatpush2.xpose.msra.mxu0 0.0
  %1828 = vmatprep.subr.mxu0 0.0
  %1829 = vmatpush2.xpose.msra.mxu0 0.0
  %1830 = vmatprep.subr.mxu0 0.0
  %1831 = vmatpush2.xpose.msra.mxu0 0.0
  %1832 = vmatprep.subr.mxu0 0.0
  %1833 = vmatpush2.xpose.msra.mxu0 0.0
  %1834 = vmatprep.subr.mxu0 0.0
  %1835 = vmatpush2.xpose.msra.mxu0 0.0
  %1836 = vmatprep.subr.mxu0 0.0
  %1837 = vmatpush2.xpose.msra.mxu0 0.0
  %1838 = vmatprep.mubr.f32.mxu0 0.0
  %1839 = vmatmul.mubr.f32.gmra.mxu0 %v1770
  %v1840 = vpop.f32.mrf.mxu0
  %v1841 = vadd.f32 0.0, %v1840
  %v1842 = vpop.f32.mrf.mxu0
  %1843 = vmatprep.mubr.f32.mxu0 0.0
  %1844 = vmatmul.mubr.f32.gmra.mxu0 %v1772
  %v1845 = vpop.f32.mrf.mxu0
  %v1846 = vadd.f32 0.0, %v1845
  %v1847 = vpop.f32.mrf.mxu0
  %1848 = vdwg.mxu0
  %v1849 = vmul.f32 %v1841, 0.17677669
  %v1850 = vmul.f32 %v1846, 0.17677669
  %1851 = vset.pattern.permute.xlu0 1
  %1852 = vperm.xlu0 %1851, %v1558
  %v1853 = vpop.permute.xlu0 %1852
  %v1855 = vmul.f32 %v1849, %v1853
  %v1856 = vmul.f32 %v1850, %v1853
  %v1857 = vsel %vm1248, %v1855, 0.0
  %v1858 = vsel %vm1249, %v1856, 0.0
  %1859 = vrot.lane.b32.xlu0 %v1368, 120
  %v1860 = vpop.permute.xlu0 %1859
  %1861 = vrot.lane.b32.xlu0 %v1373, 120
  %v1862 = vpop.permute.xlu0 %1861
  %1863 = vrot.lane.b32.xlu0 %v1378, 120
  %v1864 = vpop.permute.xlu0 %1863
  %1865 = vrot.lane.b32.xlu0 %v1383, 120
  %v1866 = vpop.permute.xlu0 %1865
  %v1867 = vsel %vm1472, %v1860, 0
  %v1869 = vsel %vm1472, %v1862, 0
  %v1871 = vsel %vm1472, %v1864, 0
  %v1873 = vsel %vm1472, %v1866, 0
  %1875 = vmatprep.subr.mxu0 0.0
  %1876 = vmatpush1.xpose.msra.mxu0 0.0
  %1877 = vmatprep.subr.mxu0 0.0
  %1878 = vmatpush1.xpose.msra.mxu0 0.0
  %1879 = vmatprep.subr.mxu0 0.0
  %1880 = vmatpush1.xpose.msra.mxu0 0.0
  %1881 = vmatprep.subr.mxu0 0.0
  %1882 = vmatpush1.xpose.msra.mxu0 0.0
  %1883 = vmatprep.subr.mxu0 0.0
  %1884 = vmatpush1.xpose.msra.mxu0 0.0
  %1885 = vmatprep.subr.mxu0 0.0
  %1886 = vmatpush1.xpose.msra.mxu0 0.0
  %1887 = vmatprep.subr.mxu0 0.0
  %1888 = vmatpush1.xpose.msra.mxu0 0.0
  %1889 = vmatprep.subr.mxu0 0.0
  %1890 = vmatpush1.xpose.msra.mxu0 0.0
  %1891 = vmatprep.subr.mxu0 0.0
  %1892 = vmatpush1.xpose.msra.mxu0 0.0
  %1893 = vmatprep.subr.mxu0 0.0
  %1894 = vmatpush1.xpose.msra.mxu0 0.0
  %1895 = vmatprep.subr.mxu0 0.0
  %1896 = vmatpush1.xpose.msra.mxu0 0.0
  %1897 = vmatprep.subr.mxu0 0.0
  %1898 = vmatpush1.xpose.msra.mxu0 0.0
  %1899 = vmatprep.subr.mxu0 0.0
  %1900 = vmatpush1.xpose.msra.mxu0 0.0
  %1901 = vmatprep.subr.mxu0 0.0
  %1902 = vmatpush1.xpose.msra.mxu0 0.0
  %1903 = vmatprep.subr.mxu0 0.0
  %1904 = vmatpush1.xpose.msra.mxu0 %v1873
  %1905 = vmatprep.subr.mxu0 0.0
  %1906 = vmatpush1.xpose.msra.mxu0 %v1871
  %1907 = vmatprep.subr.mxu0 0.0
  %1908 = vmatpush2.xpose.msra.mxu0 0.0
  %1909 = vmatprep.subr.mxu0 0.0
  %1910 = vmatpush2.xpose.msra.mxu0 0.0
  %1911 = vmatprep.subr.mxu0 0.0
  %1912 = vmatpush2.xpose.msra.mxu0 0.0
  %1913 = vmatprep.subr.mxu0 0.0
  %1914 = vmatpush2.xpose.msra.mxu0 0.0
  %1915 = vmatprep.subr.mxu0 0.0
  %1916 = vmatpush2.xpose.msra.mxu0 0.0
  %1917 = vmatprep.subr.mxu0 0.0
  %1918 = vmatpush2.xpose.msra.mxu0 0.0
  %1919 = vmatprep.subr.mxu0 0.0
  %1920 = vmatpush2.xpose.msra.mxu0 0.0
  %1921 = vmatprep.subr.mxu0 0.0
  %1922 = vmatpush2.xpose.msra.mxu0 0.0
  %1923 = vmatprep.subr.mxu0 0.0
  %1924 = vmatpush2.xpose.msra.mxu0 0.0
  %1925 = vmatprep.subr.mxu0 0.0
  %1926 = vmatpush2.xpose.msra.mxu0 0.0
  %1927 = vmatprep.subr.mxu0 0.0
  %1928 = vmatpush2.xpose.msra.mxu0 0.0
  %1929 = vmatprep.subr.mxu0 0.0
  %1930 = vmatpush2.xpose.msra.mxu0 0.0
  %1931 = vmatprep.subr.mxu0 0.0
  %1932 = vmatpush2.xpose.msra.mxu0 0.0
  %1933 = vmatprep.subr.mxu0 0.0
  %1934 = vmatpush2.xpose.msra.mxu0 0.0
  %1935 = vmatprep.subr.mxu0 0.0
  %1936 = vmatpush2.xpose.msra.mxu0 0.0
  %1937 = vmatprep.subr.mxu0 0.0
  %1938 = vmatpush2.xpose.msra.mxu0 0.0
  %1939 = vmatprep.mubr.f32.mxu0 0.0
  %1940 = vmatmul.mubr.f32.gmra.mxu0 %v1867
  %v1941 = vpop.f32.mrf.mxu0
  %v1942 = vadd.f32 0.0, %v1941
  %v1943 = vpop.f32.mrf.mxu0
  %1944 = vmatprep.mubr.f32.mxu0 0.0
  %1945 = vmatmul.mubr.f32.gmra.mxu0 %v1869
  %v1946 = vpop.f32.mrf.mxu0
  %v1947 = vadd.f32 0.0, %v1946
  %v1948 = vpop.f32.mrf.mxu0
  %1949 = vdwg.mxu0
  %v1950 = vmul.f32 %v1942, 0.35355338
  %v1951 = vmul.f32 %v1947, 0.35355338
  %v1952 = vadd.f32 %v1950, %v1857
  %v1953 = vadd.f32 %v1951, %v1858
  %v1954 = vsel %vm144, %v1952, -1e+32
  %v1955 = vsel %vm145, %v1953, -1e+32
  %v1956 = vsel %vm1660, %v1954, -inf
  %1957 = vmax.xlane.f32.xlu0 %v1956
  %v1958 = vpop.xlane.xlu0 %1957
  %v1959 = vsel %vm1660, %v1955, -inf
  %1960 = vmax.xlane.f32.xlu0 %v1959
  %v1961 = vpop.xlane.xlu0 %1960
  %v1962 = vsub.f32 %v1954, %v1958
  %v1963 = vsub.f32 %v1955, %v1961
  %v1964 = vmul.f32 %v1962, 1.442695
  %v1965 = vpow.pop %v1964
  %v1966 = vmul.f32 %v1963, 1.442695
  %v1967 = vpow.pop %v1966
  %v1968 = vsel %vm1660, %v1965, 0.0
  %1969 = vadd.xlane.f32.xlu0 %v1968
  %v1970 = vpop.xlane.xlu0 %1969
  %v1971 = vsel %vm1660, %v1967, 0.0
  %1972 = vadd.xlane.f32.xlu0 %v1971
  %v1973 = vpop.xlane.xlu0 %1972
  %v1974 = vrcp.pop %v1970
  %v1975 = vrcp.pop %v1973
  %v1976 = vmul.f32 %v1965, %v1974
  %v1977 = vmul.f32 %v1967, %v1975
  %v1978 = vsel %vm144, %v1976, 0.0
  %v1979 = vsel %vm145, %v1977, 0.0
  %1982 = vrot.lane.b32.xlu0 %v1464, 120
  %v1983 = vpop.permute.xlu0 %1982
  %1984 = vrot.lane.b32.xlu0 %v1469, 120
  %v1985 = vpop.permute.xlu0 %1984
  %v1989 = vsel %vm1660, %v1978, 0
  %v1992 = vsel %vm1660, %v1979, 0
  %1994 = vmatprep.subr.mxu0 0.0
  %1995 = vmatpush1.msra.mxu0 0.0
  %1996 = vmatprep.subr.mxu0 0.0
  %1997 = vmatpush1.msra.mxu0 0.0
  %1998 = vmatprep.subr.mxu0 0.0
  %1999 = vmatpush1.msra.mxu0 0.0
  %2000 = vmatprep.subr.mxu0 0.0
  %2001 = vmatpush1.msra.mxu0 0.0
  %2002 = vmatprep.subr.mxu0 0.0
  %2003 = vmatpush1.msra.mxu0 0.0
  %2004 = vmatprep.subr.mxu0 0.0
  %2005 = vmatpush1.msra.mxu0 0.0
  %2006 = vmatprep.subr.mxu0 0.0
  %2007 = vmatpush1.msra.mxu0 0.0
  %2008 = vmatprep.subr.mxu0 0.0
  %2009 = vmatpush1.msra.mxu0 0.0
  %2010 = vmatprep.subr.mxu0 0.0
  %2011 = vmatpush1.msra.mxu0 0.0
  %2012 = vmatprep.subr.mxu0 0.0
  %2013 = vmatpush1.msra.mxu0 0.0
  %2014 = vmatprep.subr.mxu0 0.0
  %2015 = vmatpush1.msra.mxu0 0.0
  %2016 = vmatprep.subr.mxu0 0.0
  %2017 = vmatpush1.msra.mxu0 0.0
  %2018 = vmatprep.subr.mxu0 0.0
  %2019 = vmatpush1.msra.mxu0 0.0
  %2020 = vmatprep.subr.mxu0 0.0
  %2021 = vmatpush1.msra.mxu0 0.0
  %2022 = vmatprep.subr.mxu0 0.0
  %2023 = vmatpush1.msra.mxu0 %v1985
  %2024 = vmatprep.subr.mxu0 0.0
  %2025 = vmatpush1.msra.mxu0 %v1983
  %2026 = vmatprep.subr.mxu0 0.0
  %2027 = vmatpush2.msra.mxu0 0.0
  %2028 = vmatprep.subr.mxu0 0.0
  %2029 = vmatpush2.msra.mxu0 0.0
  %2030 = vmatprep.subr.mxu0 0.0
  %2031 = vmatpush2.msra.mxu0 0.0
  %2032 = vmatprep.subr.mxu0 0.0
  %2033 = vmatpush2.msra.mxu0 0.0
  %2034 = vmatprep.subr.mxu0 0.0
  %2035 = vmatpush2.msra.mxu0 0.0
  %2036 = vmatprep.subr.mxu0 0.0
  %2037 = vmatpush2.msra.mxu0 0.0
  %2038 = vmatprep.subr.mxu0 0.0
  %2039 = vmatpush2.msra.mxu0 0.0
  %2040 = vmatprep.subr.mxu0 0.0
  %2041 = vmatpush2.msra.mxu0 0.0
  %2042 = vmatprep.subr.mxu0 0.0
  %2043 = vmatpush2.msra.mxu0 0.0
  %2044 = vmatprep.subr.mxu0 0.0
  %2045 = vmatpush2.msra.mxu0 0.0
  %2046 = vmatprep.subr.mxu0 0.0
  %2047 = vmatpush2.msra.mxu0 0.0
  %2048 = vmatprep.subr.mxu0 0.0
  %2049 = vmatpush2.msra.mxu0 0.0
  %2050 = vmatprep.subr.mxu0 0.0
  %2051 = vmatpush2.msra.mxu0 0.0
  %2052 = vmatprep.subr.mxu0 0.0
  %2053 = vmatpush2.msra.mxu0 0.0
  %2054 = vmatprep.subr.mxu0 0.0
  %2055 = vmatpush2.msra.mxu0 0.0
  %2056 = vmatprep.subr.mxu0 0.0
  %2057 = vmatpush2.msra.mxu0 0.0
  %2058 = vmatprep.mubr.f32.mxu0 0.0
  %2059 = vmatmul.mubr.f32.gmra.mxu0 %v1989
  %v2060 = vpop.f32.mrf.mxu0
  %v2061 = vadd.f32 0.0, %v2060
  %v2062 = vpop.f32.mrf.mxu0
  %2063 = vmatprep.mubr.f32.mxu0 0.0
  %2064 = vmatmul.mubr.f32.gmra.mxu0 %v1992
  %v2065 = vpop.f32.mrf.mxu0
  %v2066 = vadd.f32 0.0, %v2065
  %v2067 = vpop.f32.mrf.mxu0
  %2068 = vdwg.mxu0
  %2069 = vrot.lane.b32.xlu0 %v1002, 112
  %v2070 = vpop.permute.xlu0 %2069
  %2071 = vrot.lane.b32.xlu0 %v1007, 112
  %v2072 = vpop.permute.xlu0 %2071
  %v2073 = vsel %vm1472, %v2070, 0
  %v2075 = vsel %vm1472, %v2072, 0
  %2077 = vmatprep.subr.mxu0 0.0
  %2078 = vmatpush1.xpose.msra.mxu0 0.0
  %2079 = vmatprep.subr.mxu0 0.0
  %2080 = vmatpush1.xpose.msra.mxu0 0.0
  %2081 = vmatprep.subr.mxu0 0.0
  %2082 = vmatpush1.xpose.msra.mxu0 0.0
  %2083 = vmatprep.subr.mxu0 0.0
  %2084 = vmatpush1.xpose.msra.mxu0 0.0
  %2085 = vmatprep.subr.mxu0 0.0
  %2086 = vmatpush1.xpose.msra.mxu0 0.0
  %2087 = vmatprep.subr.mxu0 0.0
  %2088 = vmatpush1.xpose.msra.mxu0 0.0
  %2089 = vmatprep.subr.mxu0 0.0
  %2090 = vmatpush1.xpose.msra.mxu0 0.0
  %2091 = vmatprep.subr.mxu0 0.0
  %2092 = vmatpush1.xpose.msra.mxu0 0.0
  %2093 = vmatprep.subr.mxu0 0.0
  %2094 = vmatpush1.xpose.msra.mxu0 0.0
  %2095 = vmatprep.subr.mxu0 0.0
  %2096 = vmatpush1.xpose.msra.mxu0 0.0
  %2097 = vmatprep.subr.mxu0 0.0
  %2098 = vmatpush1.xpose.msra.mxu0 0.0
  %2099 = vmatprep.subr.mxu0 0.0
  %2100 = vmatpush1.xpose.msra.mxu0 0.0
  %2101 = vmatprep.subr.mxu0 0.0
  %2102 = vmatpush1.xpose.msra.mxu0 0.0
  %2103 = vmatprep.subr.mxu0 0.0
  %2104 = vmatpush1.xpose.msra.mxu0 0.0
  %2105 = vmatprep.subr.mxu0 0.0
  %2106 = vmatpush1.xpose.msra.mxu0 %v2075
  %2107 = vmatprep.subr.mxu0 0.0
  %2108 = vmatpush1.xpose.msra.mxu0 %v2073
  %2109 = vmatprep.subr.mxu0 0.0
  %2110 = vmatpush2.xpose.msra.mxu0 0.0
  %2111 = vmatprep.subr.mxu0 0.0
  %2112 = vmatpush2.xpose.msra.mxu0 0.0
  %2113 = vmatprep.subr.mxu0 0.0
  %2114 = vmatpush2.xpose.msra.mxu0 0.0
  %2115 = vmatprep.subr.mxu0 0.0
  %2116 = vmatpush2.xpose.msra.mxu0 0.0
  %2117 = vmatprep.subr.mxu0 0.0
  %2118 = vmatpush2.xpose.msra.mxu0 0.0
  %2119 = vmatprep.subr.mxu0 0.0
  %2120 = vmatpush2.xpose.msra.mxu0 0.0
  %2121 = vmatprep.subr.mxu0 0.0
  %2122 = vmatpush2.xpose.msra.mxu0 0.0
  %2123 = vmatprep.subr.mxu0 0.0
  %2124 = vmatpush2.xpose.msra.mxu0 0.0
  %2125 = vmatprep.subr.mxu0 0.0
  %2126 = vmatpush2.xpose.msra.mxu0 0.0
  %2127 = vmatprep.subr.mxu0 0.0
  %2128 = vmatpush2.xpose.msra.mxu0 0.0
  %2129 = vmatprep.subr.mxu0 0.0
  %2130 = vmatpush2.xpose.msra.mxu0 0.0
  %2131 = vmatprep.subr.mxu0 0.0
  %2132 = vmatpush2.xpose.msra.mxu0 0.0
  %2133 = vmatprep.subr.mxu0 0.0
  %2134 = vmatpush2.xpose.msra.mxu0 0.0
  %2135 = vmatprep.subr.mxu0 0.0
  %2136 = vmatpush2.xpose.msra.mxu0 0.0
  %2137 = vmatprep.subr.mxu0 0.0
  %2138 = vmatpush2.xpose.msra.mxu0 0.0
  %2139 = vmatprep.subr.mxu0 0.0
  %2140 = vmatpush2.xpose.msra.mxu0 0.0
  %2141 = vmatprep.mubr.f32.mxu0 0.0
  %2142 = vmatmul.mubr.f32.gmra.mxu0 %v2073
  %v2143 = vpop.f32.mrf.mxu0
  %v2144 = vadd.f32 0.0, %v2143
  %v2145 = vpop.f32.mrf.mxu0
  %2146 = vmatprep.mubr.f32.mxu0 0.0
  %2147 = vmatmul.mubr.f32.gmra.mxu0 %v2075
  %v2148 = vpop.f32.mrf.mxu0
  %v2149 = vadd.f32 0.0, %v2148
  %v2150 = vpop.f32.mrf.mxu0
  %2151 = vdwg.mxu0
  %v2152 = vmul.f32 %v2144, 0.17677669
  %v2153 = vmul.f32 %v2149, 0.17677669
  %2154 = vset.pattern.permute.xlu0 2
  %2155 = vperm.xlu0 %2154, %v1558
  %v2156 = vpop.permute.xlu0 %2155
  %v2158 = vmul.f32 %v2152, %v2156
  %v2159 = vmul.f32 %v2153, %v2156
  %v2160 = vsel %vm1248, %v2158, 0.0
  %v2161 = vsel %vm1249, %v2159, 0.0
  %2162 = vrot.lane.b32.xlu0 %v1368, 112
  %v2163 = vpop.permute.xlu0 %2162
  %2164 = vrot.lane.b32.xlu0 %v1373, 112
  %v2165 = vpop.permute.xlu0 %2164
  %2166 = vrot.lane.b32.xlu0 %v1378, 112
  %v2167 = vpop.permute.xlu0 %2166
  %2168 = vrot.lane.b32.xlu0 %v1383, 112
  %v2169 = vpop.permute.xlu0 %2168
  %v2170 = vsel %vm1472, %v2163, 0
  %v2172 = vsel %vm1472, %v2165, 0
  %v2174 = vsel %vm1472, %v2167, 0
  %v2176 = vsel %vm1472, %v2169, 0
  %2178 = vmatprep.subr.mxu0 0.0
  %2179 = vmatpush1.xpose.msra.mxu0 0.0
  %2180 = vmatprep.subr.mxu0 0.0
  %2181 = vmatpush1.xpose.msra.mxu0 0.0
  %2182 = vmatprep.subr.mxu0 0.0
  %2183 = vmatpush1.xpose.msra.mxu0 0.0
  %2184 = vmatprep.subr.mxu0 0.0
  %2185 = vmatpush1.xpose.msra.mxu0 0.0
  %2186 = vmatprep.subr.mxu0 0.0
  %2187 = vmatpush1.xpose.msra.mxu0 0.0
  %2188 = vmatprep.subr.mxu0 0.0
  %2189 = vmatpush1.xpose.msra.mxu0 0.0
  %2190 = vmatprep.subr.mxu0 0.0
  %2191 = vmatpush1.xpose.msra.mxu0 0.0
  %2192 = vmatprep.subr.mxu0 0.0
  %2193 = vmatpush1.xpose.msra.mxu0 0.0
  %2194 = vmatprep.subr.mxu0 0.0
  %2195 = vmatpush1.xpose.msra.mxu0 0.0
  %2196 = vmatprep.subr.mxu0 0.0
  %2197 = vmatpush1.xpose.msra.mxu0 0.0
  %2198 = vmatprep.subr.mxu0 0.0
  %2199 = vmatpush1.xpose.msra.mxu0 0.0
  %2200 = vmatprep.subr.mxu0 0.0
  %2201 = vmatpush1.xpose.msra.mxu0 0.0
  %2202 = vmatprep.subr.mxu0 0.0
  %2203 = vmatpush1.xpose.msra.mxu0 0.0
  %2204 = vmatprep.subr.mxu0 0.0
  %2205 = vmatpush1.xpose.msra.mxu0 0.0
  %2206 = vmatprep.subr.mxu0 0.0
  %2207 = vmatpush1.xpose.msra.mxu0 %v2176
  %2208 = vmatprep.subr.mxu0 0.0
  %2209 = vmatpush1.xpose.msra.mxu0 %v2174
  %2210 = vmatprep.subr.mxu0 0.0
  %2211 = vmatpush2.xpose.msra.mxu0 0.0
  %2212 = vmatprep.subr.mxu0 0.0
  %2213 = vmatpush2.xpose.msra.mxu0 0.0
  %2214 = vmatprep.subr.mxu0 0.0
  %2215 = vmatpush2.xpose.msra.mxu0 0.0
  %2216 = vmatprep.subr.mxu0 0.0
  %2217 = vmatpush2.xpose.msra.mxu0 0.0
  %2218 = vmatprep.subr.mxu0 0.0
  %2219 = vmatpush2.xpose.msra.mxu0 0.0
  %2220 = vmatprep.subr.mxu0 0.0
  %2221 = vmatpush2.xpose.msra.mxu0 0.0
  %2222 = vmatprep.subr.mxu0 0.0
  %2223 = vmatpush2.xpose.msra.mxu0 0.0
  %2224 = vmatprep.subr.mxu0 0.0
  %2225 = vmatpush2.xpose.msra.mxu0 0.0
  %2226 = vmatprep.subr.mxu0 0.0
  %2227 = vmatpush2.xpose.msra.mxu0 0.0
  %2228 = vmatprep.subr.mxu0 0.0
  %2229 = vmatpush2.xpose.msra.mxu0 0.0
  %2230 = vmatprep.subr.mxu0 0.0
  %2231 = vmatpush2.xpose.msra.mxu0 0.0
  %2232 = vmatprep.subr.mxu0 0.0
  %2233 = vmatpush2.xpose.msra.mxu0 0.0
  %2234 = vmatprep.subr.mxu0 0.0
  %2235 = vmatpush2.xpose.msra.mxu0 0.0
  %2236 = vmatprep.subr.mxu0 0.0
  %2237 = vmatpush2.xpose.msra.mxu0 0.0
  %2238 = vmatprep.subr.mxu0 0.0
  %2239 = vmatpush2.xpose.msra.mxu0 0.0
  %2240 = vmatprep.subr.mxu0 0.0
  %2241 = vmatpush2.xpose.msra.mxu0 0.0
  %2242 = vmatprep.mubr.f32.mxu0 0.0
  %2243 = vmatmul.mubr.f32.gmra.mxu0 %v2170
  %v2244 = vpop.f32.mrf.mxu0
  %v2245 = vadd.f32 0.0, %v2244
  %v2246 = vpop.f32.mrf.mxu0
  %2247 = vmatprep.mubr.f32.mxu0 0.0
  %2248 = vmatmul.mubr.f32.gmra.mxu0 %v2172
  %v2249 = vpop.f32.mrf.mxu0
  %v2250 = vadd.f32 0.0, %v2249
  %v2251 = vpop.f32.mrf.mxu0
  %2252 = vdwg.mxu0
  %v2253 = vmul.f32 %v2245, 0.35355338
  %v2254 = vmul.f32 %v2250, 0.35355338
  %v2255 = vadd.f32 %v2253, %v2160
  %v2256 = vadd.f32 %v2254, %v2161
  %v2257 = vsel %vm144, %v2255, -1e+32
  %v2258 = vsel %vm145, %v2256, -1e+32
  %v2259 = vsel %vm1660, %v2257, -inf
  %2260 = vmax.xlane.f32.xlu0 %v2259
  %v2261 = vpop.xlane.xlu0 %2260
  %v2262 = vsel %vm1660, %v2258, -inf
  %2263 = vmax.xlane.f32.xlu0 %v2262
  %v2264 = vpop.xlane.xlu0 %2263
  %v2265 = vsub.f32 %v2257, %v2261
  %v2266 = vsub.f32 %v2258, %v2264
  %v2267 = vmul.f32 %v2265, 1.442695
  %v2268 = vpow.pop %v2267
  %v2269 = vmul.f32 %v2266, 1.442695
  %v2270 = vpow.pop %v2269
  %v2271 = vsel %vm1660, %v2268, 0.0
  %2272 = vadd.xlane.f32.xlu0 %v2271
  %v2273 = vpop.xlane.xlu0 %2272
  %v2274 = vsel %vm1660, %v2270, 0.0
  %2275 = vadd.xlane.f32.xlu0 %v2274
  %v2276 = vpop.xlane.xlu0 %2275
  %v2277 = vrcp.pop %v2273
  %v2278 = vrcp.pop %v2276
  %v2279 = vmul.f32 %v2268, %v2277
  %v2280 = vmul.f32 %v2270, %v2278
  %v2281 = vsel %vm144, %v2279, 0.0
  %v2282 = vsel %vm145, %v2280, 0.0
  %2283 = vrot.lane.b32.xlu0 %v1464, 112
  %v2284 = vpop.permute.xlu0 %2283
  %2285 = vrot.lane.b32.xlu0 %v1469, 112
  %v2286 = vpop.permute.xlu0 %2285
  %v2290 = vsel %vm1660, %v2281, 0
  %v2293 = vsel %vm1660, %v2282, 0
  %2295 = vmatprep.subr.mxu0 0.0
  %2296 = vmatpush1.msra.mxu0 0.0
  %2297 = vmatprep.subr.mxu0 0.0
  %2298 = vmatpush1.msra.mxu0 0.0
  %2299 = vmatprep.subr.mxu0 0.0
  %2300 = vmatpush1.msra.mxu0 0.0
  %2301 = vmatprep.subr.mxu0 0.0
  %2302 = vmatpush1.msra.mxu0 0.0
  %2303 = vmatprep.subr.mxu0 0.0
  %2304 = vmatpush1.msra.mxu0 0.0
  %2305 = vmatprep.subr.mxu0 0.0
  %2306 = vmatpush1.msra.mxu0 0.0
  %2307 = vmatprep.subr.mxu0 0.0
  %2308 = vmatpush1.msra.mxu0 0.0
  %2309 = vmatprep.subr.mxu0 0.0
  %2310 = vmatpush1.msra.mxu0 0.0
  %2311 = vmatprep.subr.mxu0 0.0
  %2312 = vmatpush1.msra.mxu0 0.0
  %2313 = vmatprep.subr.mxu0 0.0
  %2314 = vmatpush1.msra.mxu0 0.0
  %2315 = vmatprep.subr.mxu0 0.0
  %2316 = vmatpush1.msra.mxu0 0.0
  %2317 = vmatprep.subr.mxu0 0.0
  %2318 = vmatpush1.msra.mxu0 0.0
  %2319 = vmatprep.subr.mxu0 0.0
  %2320 = vmatpush1.msra.mxu0 0.0
  %2321 = vmatprep.subr.mxu0 0.0
  %2322 = vmatpush1.msra.mxu0 0.0
  %2323 = vmatprep.subr.mxu0 0.0
  %2324 = vmatpush1.msra.mxu0 %v2286
  %2325 = vmatprep.subr.mxu0 0.0
  %2326 = vmatpush1.msra.mxu0 %v2284
  %2327 = vmatprep.subr.mxu0 0.0
  %2328 = vmatpush2.msra.mxu0 0.0
  %2329 = vmatprep.subr.mxu0 0.0
  %2330 = vmatpush2.msra.mxu0 0.0
  %2331 = vmatprep.subr.mxu0 0.0
  %2332 = vmatpush2.msra.mxu0 0.0
  %2333 = vmatprep.subr.mxu0 0.0
  %2334 = vmatpush2.msra.mxu0 0.0
  %2335 = vmatprep.subr.mxu0 0.0
  %2336 = vmatpush2.msra.mxu0 0.0
  %2337 = vmatprep.subr.mxu0 0.0
  %2338 = vmatpush2.msra.mxu0 0.0
  %2339 = vmatprep.subr.mxu0 0.0
  %2340 = vmatpush2.msra.mxu0 0.0
  %2341 = vmatprep.subr.mxu0 0.0
  %2342 = vmatpush2.msra.mxu0 0.0
  %2343 = vmatprep.subr.mxu0 0.0
  %2344 = vmatpush2.msra.mxu0 0.0
  %2345 = vmatprep.subr.mxu0 0.0
  %2346 = vmatpush2.msra.mxu0 0.0
  %2347 = vmatprep.subr.mxu0 0.0
  %2348 = vmatpush2.msra.mxu0 0.0
  %2349 = vmatprep.subr.mxu0 0.0
  %2350 = vmatpush2.msra.mxu0 0.0
  %2351 = vmatprep.subr.mxu0 0.0
  %2352 = vmatpush2.msra.mxu0 0.0
  %2353 = vmatprep.subr.mxu0 0.0
  %2354 = vmatpush2.msra.mxu0 0.0
  %2355 = vmatprep.subr.mxu0 0.0
  %2356 = vmatpush2.msra.mxu0 0.0
  %2357 = vmatprep.subr.mxu0 0.0
  %2358 = vmatpush2.msra.mxu0 0.0
  %2359 = vmatprep.mubr.f32.mxu0 0.0
  %2360 = vmatmul.mubr.f32.gmra.mxu0 %v2290
  %v2361 = vpop.f32.mrf.mxu0
  %v2362 = vadd.f32 0.0, %v2361
  %v2363 = vpop.f32.mrf.mxu0
  %2364 = vmatprep.mubr.f32.mxu0 0.0
  %2365 = vmatmul.mubr.f32.gmra.mxu0 %v2293
  %v2366 = vpop.f32.mrf.mxu0
  %v2367 = vadd.f32 0.0, %v2366
  %v2368 = vpop.f32.mrf.mxu0
  %2369 = vdwg.mxu0
  %2370 = vrot.lane.b32.xlu0 %v1002, 104
  %v2371 = vpop.permute.xlu0 %2370
  %2372 = vrot.lane.b32.xlu0 %v1007, 104
  %v2373 = vpop.permute.xlu0 %2372
  %v2374 = vsel %vm1472, %v2371, 0
  %v2376 = vsel %vm1472, %v2373, 0
  %2378 = vmatprep.subr.mxu0 0.0
  %2379 = vmatpush1.xpose.msra.mxu0 0.0
  %2380 = vmatprep.subr.mxu0 0.0
  %2381 = vmatpush1.xpose.msra.mxu0 0.0
  %2382 = vmatprep.subr.mxu0 0.0
  %2383 = vmatpush1.xpose.msra.mxu0 0.0
  %2384 = vmatprep.subr.mxu0 0.0
  %2385 = vmatpush1.xpose.msra.mxu0 0.0
  %2386 = vmatprep.subr.mxu0 0.0
  %2387 = vmatpush1.xpose.msra.mxu0 0.0
  %2388 = vmatprep.subr.mxu0 0.0
  %2389 = vmatpush1.xpose.msra.mxu0 0.0
  %2390 = vmatprep.subr.mxu0 0.0
  %2391 = vmatpush1.xpose.msra.mxu0 0.0
  %2392 = vmatprep.subr.mxu0 0.0
  %2393 = vmatpush1.xpose.msra.mxu0 0.0
  %2394 = vmatprep.subr.mxu0 0.0
  %2395 = vmatpush1.xpose.msra.mxu0 0.0
  %2396 = vmatprep.subr.mxu0 0.0
  %2397 = vmatpush1.xpose.msra.mxu0 0.0
  %2398 = vmatprep.subr.mxu0 0.0
  %2399 = vmatpush1.xpose.msra.mxu0 0.0
  %2400 = vmatprep.subr.mxu0 0.0
  %2401 = vmatpush1.xpose.msra.mxu0 0.0
  %2402 = vmatprep.subr.mxu0 0.0
  %2403 = vmatpush1.xpose.msra.mxu0 0.0
  %2404 = vmatprep.subr.mxu0 0.0
  %2405 = vmatpush1.xpose.msra.mxu0 0.0
  %2406 = vmatprep.subr.mxu0 0.0
  %2407 = vmatpush1.xpose.msra.mxu0 %v2376
  %2408 = vmatprep.subr.mxu0 0.0
  %2409 = vmatpush1.xpose.msra.mxu0 %v2374
  %2410 = vmatprep.subr.mxu0 0.0
  %2411 = vmatpush2.xpose.msra.mxu0 0.0
  %2412 = vmatprep.subr.mxu0 0.0
  %2413 = vmatpush2.xpose.msra.mxu0 0.0
  %2414 = vmatprep.subr.mxu0 0.0
  %2415 = vmatpush2.xpose.msra.mxu0 0.0
  %2416 = vmatprep.subr.mxu0 0.0
  %2417 = vmatpush2.xpose.msra.mxu0 0.0
  %2418 = vmatprep.subr.mxu0 0.0
  %2419 = vmatpush2.xpose.msra.mxu0 0.0
  %2420 = vmatprep.subr.mxu0 0.0
  %2421 = vmatpush2.xpose.msra.mxu0 0.0
  %2422 = vmatprep.subr.mxu0 0.0
  %2423 = vmatpush2.xpose.msra.mxu0 0.0
  %2424 = vmatprep.subr.mxu0 0.0
  %2425 = vmatpush2.xpose.msra.mxu0 0.0
  %2426 = vmatprep.subr.mxu0 0.0
  %2427 = vmatpush2.xpose.msra.mxu0 0.0
  %2428 = vmatprep.subr.mxu0 0.0
  %2429 = vmatpush2.xpose.msra.mxu0 0.0
  %2430 = vmatprep.subr.mxu0 0.0
  %2431 = vmatpush2.xpose.msra.mxu0 0.0
  %2432 = vmatprep.subr.mxu0 0.0
  %2433 = vmatpush2.xpose.msra.mxu0 0.0
  %2434 = vmatprep.subr.mxu0 0.0
  %2435 = vmatpush2.xpose.msra.mxu0 0.0
  %2436 = vmatprep.subr.mxu0 0.0
  %2437 = vmatpush2.xpose.msra.mxu0 0.0
  %2438 = vmatprep.subr.mxu0 0.0
  %2439 = vmatpush2.xpose.msra.mxu0 0.0
  %2440 = vmatprep.subr.mxu0 0.0
  %2441 = vmatpush2.xpose.msra.mxu0 0.0
  %2442 = vmatprep.mubr.f32.mxu0 0.0
  %2443 = vmatmul.mubr.f32.gmra.mxu0 %v2374
  %v2444 = vpop.f32.mrf.mxu0
  %v2445 = vadd.f32 0.0, %v2444
  %v2446 = vpop.f32.mrf.mxu0
  %2447 = vmatprep.mubr.f32.mxu0 0.0
  %2448 = vmatmul.mubr.f32.gmra.mxu0 %v2376
  %v2449 = vpop.f32.mrf.mxu0
  %v2450 = vadd.f32 0.0, %v2449
  %v2451 = vpop.f32.mrf.mxu0
  %2452 = vdwg.mxu0
  %v2453 = vmul.f32 %v2445, 0.17677669
  %v2454 = vmul.f32 %v2450, 0.17677669
  %2455 = vset.pattern.permute.xlu0 3
  %2456 = vperm.xlu0 %2455, %v1558
  %v2457 = vpop.permute.xlu0 %2456
  %v2459 = vmul.f32 %v2453, %v2457
  %v2460 = vmul.f32 %v2454, %v2457
  %v2461 = vsel %vm1248, %v2459, 0.0
  %v2462 = vsel %vm1249, %v2460, 0.0
  %2463 = vrot.lane.b32.xlu0 %v1368, 104
  %v2464 = vpop.permute.xlu0 %2463
  %2465 = vrot.lane.b32.xlu0 %v1373, 104
  %v2466 = vpop.permute.xlu0 %2465
  %2467 = vrot.lane.b32.xlu0 %v1378, 104
  %v2468 = vpop.permute.xlu0 %2467
  %2469 = vrot.lane.b32.xlu0 %v1383, 104
  %v2470 = vpop.permute.xlu0 %2469
  %v2471 = vsel %vm1472, %v2464, 0
  %v2473 = vsel %vm1472, %v2466, 0
  %v2475 = vsel %vm1472, %v2468, 0
  %v2477 = vsel %vm1472, %v2470, 0
  %2479 = vmatprep.subr.mxu0 0.0
  %2480 = vmatpush1.xpose.msra.mxu0 0.0
  %2481 = vmatprep.subr.mxu0 0.0
  %2482 = vmatpush1.xpose.msra.mxu0 0.0
  %2483 = vmatprep.subr.mxu0 0.0
  %2484 = vmatpush1.xpose.msra.mxu0 0.0
  %2485 = vmatprep.subr.mxu0 0.0
  %2486 = vmatpush1.xpose.msra.mxu0 0.0
  %2487 = vmatprep.subr.mxu0 0.0
  %2488 = vmatpush1.xpose.msra.mxu0 0.0
  %2489 = vmatprep.subr.mxu0 0.0
  %2490 = vmatpush1.xpose.msra.mxu0 0.0
  %2491 = vmatprep.subr.mxu0 0.0
  %2492 = vmatpush1.xpose.msra.mxu0 0.0
  %2493 = vmatprep.subr.mxu0 0.0
  %2494 = vmatpush1.xpose.msra.mxu0 0.0
  %2495 = vmatprep.subr.mxu0 0.0
  %2496 = vmatpush1.xpose.msra.mxu0 0.0
  %2497 = vmatprep.subr.mxu0 0.0
  %2498 = vmatpush1.xpose.msra.mxu0 0.0
  %2499 = vmatprep.subr.mxu0 0.0
  %2500 = vmatpush1.xpose.msra.mxu0 0.0
  %2501 = vmatprep.subr.mxu0 0.0
  %2502 = vmatpush1.xpose.msra.mxu0 0.0
  %2503 = vmatprep.subr.mxu0 0.0
  %2504 = vmatpush1.xpose.msra.mxu0 0.0
  %2505 = vmatprep.subr.mxu0 0.0
  %2506 = vmatpush1.xpose.msra.mxu0 0.0
  %2507 = vmatprep.subr.mxu0 0.0
  %2508 = vmatpush1.xpose.msra.mxu0 %v2477
  %2509 = vmatprep.subr.mxu0 0.0
  %2510 = vmatpush1.xpose.msra.mxu0 %v2475
  %2511 = vmatprep.subr.mxu0 0.0
  %2512 = vmatpush2.xpose.msra.mxu0 0.0
  %2513 = vmatprep.subr.mxu0 0.0
  %2514 = vmatpush2.xpose.msra.mxu0 0.0
  %2515 = vmatprep.subr.mxu0 0.0
  %2516 = vmatpush2.xpose.msra.mxu0 0.0
  %2517 = vmatprep.subr.mxu0 0.0
  %2518 = vmatpush2.xpose.msra.mxu0 0.0
  %2519 = vmatprep.subr.mxu0 0.0
  %2520 = vmatpush2.xpose.msra.mxu0 0.0
  %2521 = vmatprep.subr.mxu0 0.0
  %2522 = vmatpush2.xpose.msra.mxu0 0.0
  %2523 = vmatprep.subr.mxu0 0.0
  %2524 = vmatpush2.xpose.msra.mxu0 0.0
  %2525 = vmatprep.subr.mxu0 0.0
  %2526 = vmatpush2.xpose.msra.mxu0 0.0
  %2527 = vmatprep.subr.mxu0 0.0
  %2528 = vmatpush2.xpose.msra.mxu0 0.0
  %2529 = vmatprep.subr.mxu0 0.0
  %2530 = vmatpush2.xpose.msra.mxu0 0.0
  %2531 = vmatprep.subr.mxu0 0.0
  %2532 = vmatpush2.xpose.msra.mxu0 0.0
  %2533 = vmatprep.subr.mxu0 0.0
  %2534 = vmatpush2.xpose.msra.mxu0 0.0
  %2535 = vmatprep.subr.mxu0 0.0
  %2536 = vmatpush2.xpose.msra.mxu0 0.0
  %2537 = vmatprep.subr.mxu0 0.0
  %2538 = vmatpush2.xpose.msra.mxu0 0.0
  %2539 = vmatprep.subr.mxu0 0.0
  %2540 = vmatpush2.xpose.msra.mxu0 0.0
  %2541 = vmatprep.subr.mxu0 0.0
  %2542 = vmatpush2.xpose.msra.mxu0 0.0
  %2543 = vmatprep.mubr.f32.mxu0 0.0
  %2544 = vmatmul.mubr.f32.gmra.mxu0 %v2471
  %v2545 = vpop.f32.mrf.mxu0
  %v2546 = vadd.f32 0.0, %v2545
  %v2547 = vpop.f32.mrf.mxu0
  %2548 = vmatprep.mubr.f32.mxu0 0.0
  %2549 = vmatmul.mubr.f32.gmra.mxu0 %v2473
  %v2550 = vpop.f32.mrf.mxu0
  %v2551 = vadd.f32 0.0, %v2550
  %v2552 = vpop.f32.mrf.mxu0
  %2553 = vdwg.mxu0
  %v2554 = vmul.f32 %v2546, 0.35355338
  %v2555 = vmul.f32 %v2551, 0.35355338
  %v2556 = vadd.f32 %v2554, %v2461
  %v2557 = vadd.f32 %v2555, %v2462
  %v2558 = vsel %vm144, %v2556, -1e+32
  %v2559 = vsel %vm145, %v2557, -1e+32
  %v2560 = vsel %vm1660, %v2558, -inf
  %2561 = vmax.xlane.f32.xlu0 %v2560
  %v2562 = vpop.xlane.xlu0 %2561
  %v2563 = vsel %vm1660, %v2559, -inf
  %2564 = vmax.xlane.f32.xlu0 %v2563
  %v2565 = vpop.xlane.xlu0 %2564
  %v2566 = vsub.f32 %v2558, %v2562
  %v2567 = vsub.f32 %v2559, %v2565
  %v2568 = vmul.f32 %v2566, 1.442695
  %v2569 = vpow.pop %v2568
  %v2570 = vmul.f32 %v2567, 1.442695
  %v2571 = vpow.pop %v2570
  %v2572 = vsel %vm1660, %v2569, 0.0
  %2573 = vadd.xlane.f32.xlu0 %v2572
  %v2574 = vpop.xlane.xlu0 %2573
  %v2575 = vsel %vm1660, %v2571, 0.0
  %2576 = vadd.xlane.f32.xlu0 %v2575
  %v2577 = vpop.xlane.xlu0 %2576
  %v2578 = vrcp.pop %v2574
  %v2579 = vrcp.pop %v2577
  %v2580 = vmul.f32 %v2569, %v2578
  %v2581 = vmul.f32 %v2571, %v2579
  %v2582 = vsel %vm144, %v2580, 0.0
  %v2583 = vsel %vm145, %v2581, 0.0
  %2584 = vrot.lane.b32.xlu0 %v1464, 104
  %v2585 = vpop.permute.xlu0 %2584
  %2586 = vrot.lane.b32.xlu0 %v1469, 104
  %v2587 = vpop.permute.xlu0 %2586
  %v2591 = vsel %vm1660, %v2582, 0
  %v2594 = vsel %vm1660, %v2583, 0
  %2596 = vmatprep.subr.mxu0 0.0
  %2597 = vmatpush1.msra.mxu0 0.0
  %2598 = vmatprep.subr.mxu0 0.0
  %2599 = vmatpush1.msra.mxu0 0.0
  %2600 = vmatprep.subr.mxu0 0.0
  %2601 = vmatpush1.msra.mxu0 0.0
  %2602 = vmatprep.subr.mxu0 0.0
  %2603 = vmatpush1.msra.mxu0 0.0
  %2604 = vmatprep.subr.mxu0 0.0
  %2605 = vmatpush1.msra.mxu0 0.0
  %2606 = vmatprep.subr.mxu0 0.0
  %2607 = vmatpush1.msra.mxu0 0.0
  %2608 = vmatprep.subr.mxu0 0.0
  %2609 = vmatpush1.msra.mxu0 0.0
  %2610 = vmatprep.subr.mxu0 0.0
  %2611 = vmatpush1.msra.mxu0 0.0
  %2612 = vmatprep.subr.mxu0 0.0
  %2613 = vmatpush1.msra.mxu0 0.0
  %2614 = vmatprep.subr.mxu0 0.0
  %2615 = vmatpush1.msra.mxu0 0.0
  %2616 = vmatprep.subr.mxu0 0.0
  %2617 = vmatpush1.msra.mxu0 0.0
  %2618 = vmatprep.subr.mxu0 0.0
  %2619 = vmatpush1.msra.mxu0 0.0
  %2620 = vmatprep.subr.mxu0 0.0
  %2621 = vmatpush1.msra.mxu0 0.0
  %2622 = vmatprep.subr.mxu0 0.0
  %2623 = vmatpush1.msra.mxu0 0.0
  %2624 = vmatprep.subr.mxu0 0.0
  %2625 = vmatpush1.msra.mxu0 %v2587
  %2626 = vmatprep.subr.mxu0 0.0
  %2627 = vmatpush1.msra.mxu0 %v2585
  %2628 = vmatprep.subr.mxu0 0.0
  %2629 = vmatpush2.msra.mxu0 0.0
  %2630 = vmatprep.subr.mxu0 0.0
  %2631 = vmatpush2.msra.mxu0 0.0
  %2632 = vmatprep.subr.mxu0 0.0
  %2633 = vmatpush2.msra.mxu0 0.0
  %2634 = vmatprep.subr.mxu0 0.0
  %2635 = vmatpush2.msra.mxu0 0.0
  %2636 = vmatprep.subr.mxu0 0.0
  %2637 = vmatpush2.msra.mxu0 0.0
  %2638 = vmatprep.subr.mxu0 0.0
  %2639 = vmatpush2.msra.mxu0 0.0
  %2640 = vmatprep.subr.mxu0 0.0
  %2641 = vmatpush2.msra.mxu0 0.0
  %2642 = vmatprep.subr.mxu0 0.0
  %2643 = vmatpush2.msra.mxu0 0.0
  %2644 = vmatprep.subr.mxu0 0.0
  %2645 = vmatpush2.msra.mxu0 0.0
  %2646 = vmatprep.subr.mxu0 0.0
  %2647 = vmatpush2.msra.mxu0 0.0
  %2648 = vmatprep.subr.mxu0 0.0
  %2649 = vmatpush2.msra.mxu0 0.0
  %2650 = vmatprep.subr.mxu0 0.0
  %2651 = vmatpush2.msra.mxu0 0.0
  %2652 = vmatprep.subr.mxu0 0.0
  %2653 = vmatpush2.msra.mxu0 0.0
  %2654 = vmatprep.subr.mxu0 0.0
  %2655 = vmatpush2.msra.mxu0 0.0
  %2656 = vmatprep.subr.mxu0 0.0
  %2657 = vmatpush2.msra.mxu0 0.0
  %2658 = vmatprep.subr.mxu0 0.0
  %2659 = vmatpush2.msra.mxu0 0.0
  %2660 = vmatprep.mubr.f32.mxu0 0.0
  %2661 = vmatmul.mubr.f32.gmra.mxu0 %v2591
  %v2662 = vpop.f32.mrf.mxu0
  %v2663 = vadd.f32 0.0, %v2662
  %v2664 = vpop.f32.mrf.mxu0
  %2665 = vmatprep.mubr.f32.mxu0 0.0
  %2666 = vmatmul.mubr.f32.gmra.mxu0 %v2594
  %v2667 = vpop.f32.mrf.mxu0
  %v2668 = vadd.f32 0.0, %v2667
  %v2669 = vpop.f32.mrf.mxu0
  %2670 = vdwg.mxu0
  %2673 = vrot.lane.b32.xlu0 %v2061, 8
  %v2674 = vpop.permute.xlu0 %2673
  %2675 = vrot.lane.b32.xlu0 %v2066, 8
  %v2676 = vpop.permute.xlu0 %2675
  %2681 = vrot.lane.b32.xlu0 %v2362, 16
  %v2682 = vpop.permute.xlu0 %2681
  %2683 = vrot.lane.b32.xlu0 %v2367, 16
  %v2684 = vpop.permute.xlu0 %2683
  %2689 = vrot.lane.b32.xlu0 %v2663, 24
  %v2690 = vpop.permute.xlu0 %2689
  %2691 = vrot.lane.b32.xlu0 %v2668, 24
  %v2692 = vpop.permute.xlu0 %2691
  %v2695 = vsel %vm1472, %v1758, %v2674
  %v2696 = vsel %vm1472, %v1763, %v2676
  %v2697 = vsel %vm1660, %v2695, %v2682
  %v2698 = vsel %vm1660, %v2696, %v2684
  %vm2699 = vcmask 195584
  %v2700 = vsel %vm2699, %v2697, %v2690
  %v2701 = vsel %vm2699, %v2698, %v2692
  %v2702 = vld [vmem:[%s57] sm:$0xff]
  %v2703 = vld [vmem:[%s57 + $0x8] sm:$0xff]
  %v2704 = vld [vmem:[%s57 + $0x10] sm:$0xff]
  %v2705 = vld [vmem:[%s57 + $0x18] sm:$0xff]
  %v2706 = vld [vmem:[%s59] sm:$0x1]
  %v2708 = vlaneseq
  %v2709 = vshrl.u32 %v2708, 7
  %v2710 = vsub.s32 0, %v2709
  %v2711 = vrot.slane %v2706, %v2710
  %v2714 = vsel %vm217, %v2700, 0
  %v2717 = vsel %vm217, %v2701, 0
  %2719 = vmatprep.subr.mxu0 0.0
  %2720 = vmatpush1.msra.mxu0 0.0
  %2721 = vmatprep.subr.mxu0 0.0
  %2722 = vmatpush1.msra.mxu0 0.0
  %2723 = vmatprep.subr.mxu0 0.0
  %2724 = vmatpush1.msra.mxu0 0.0
  %2725 = vmatprep.subr.mxu0 0.0
  %2726 = vmatpush1.msra.mxu0 0.0
  %2727 = vmatprep.subr.mxu0 0.0
  %2728 = vmatpush1.msra.mxu0 0.0
  %2729 = vmatprep.subr.mxu0 0.0
  %2730 = vmatpush1.msra.mxu0 0.0
  %2731 = vmatprep.subr.mxu0 0.0
  %2732 = vmatpush1.msra.mxu0 0.0
  %2733 = vmatprep.subr.mxu0 0.0
  %2734 = vmatpush1.msra.mxu0 0.0
  %2735 = vmatprep.subr.mxu0 0.0
  %2736 = vmatpush1.msra.mxu0 0.0
  %2737 = vmatprep.subr.mxu0 0.0
  %2738 = vmatpush1.msra.mxu0 0.0
  %2739 = vmatprep.subr.mxu0 0.0
  %2740 = vmatpush1.msra.mxu0 0.0
  %2741 = vmatprep.subr.mxu0 0.0
  %2742 = vmatpush1.msra.mxu0 0.0
  %2743 = vmatprep.subr.mxu0 0.0
  %2744 = vmatpush1.msra.mxu0 %v2705
  %2745 = vmatprep.subr.mxu0 0.0
  %2746 = vmatpush1.msra.mxu0 %v2704
  %2747 = vmatprep.subr.mxu0 0.0
  %2748 = vmatpush1.msra.mxu0 %v2703
  %2749 = vmatprep.subr.mxu0 0.0
  %2750 = vmatpush1.msra.mxu0 %v2702
  %2751 = vmatprep.subr.mxu0 0.0
  %2752 = vmatpush2.msra.mxu0 0.0
  %2753 = vmatprep.subr.mxu0 0.0
  %2754 = vmatpush2.msra.mxu0 0.0
  %2755 = vmatprep.subr.mxu0 0.0
  %2756 = vmatpush2.msra.mxu0 0.0
  %2757 = vmatprep.subr.mxu0 0.0
  %2758 = vmatpush2.msra.mxu0 0.0
  %2759 = vmatprep.subr.mxu0 0.0
  %2760 = vmatpush2.msra.mxu0 0.0
  %2761 = vmatprep.subr.mxu0 0.0
  %2762 = vmatpush2.msra.mxu0 0.0
  %2763 = vmatprep.subr.mxu0 0.0
  %2764 = vmatpush2.msra.mxu0 0.0
  %2765 = vmatprep.subr.mxu0 0.0
  %2766 = vmatpush2.msra.mxu0 0.0
  %2767 = vmatprep.subr.mxu0 0.0
  %2768 = vmatpush2.msra.mxu0 0.0
  %2769 = vmatprep.subr.mxu0 0.0
  %2770 = vmatpush2.msra.mxu0 0.0
  %2771 = vmatprep.subr.mxu0 0.0
  %2772 = vmatpush2.msra.mxu0 0.0
  %2773 = vmatprep.subr.mxu0 0.0
  %2774 = vmatpush2.msra.mxu0 0.0
  %2775 = vmatprep.subr.mxu0 0.0
  %2776 = vmatpush2.msra.mxu0 0.0
  %2777 = vmatprep.subr.mxu0 0.0
  %2778 = vmatpush2.msra.mxu0 0.0
  %2779 = vmatprep.subr.mxu0 0.0
  %2780 = vmatpush2.msra.mxu0 0.0
  %2781 = vmatprep.subr.mxu0 0.0
  %2782 = vmatpush2.msra.mxu0 0.0
  %2783 = vmatprep.mubr.f32.mxu0 0.0
  %2784 = vmatmul.mubr.f32.gmra.mxu0 %v2714
  %v2785 = vpop.f32.mrf.mxu0
  %v2786 = vadd.f32 %v2711, %v2785
  %v2787 = vpop.f32.mrf.mxu0
  %2788 = vmatprep.mubr.f32.mxu0 0.0
  %2789 = vmatmul.mubr.f32.gmra.mxu0 %v2717
  %v2790 = vpop.f32.mrf.mxu0
  %v2791 = vadd.f32 %v2711, %v2790
  %v2792 = vpop.f32.mrf.mxu0
  %2793 = vdwg.mxu0
  %v2794 = vadd.f32 %v1274, %v2786
  %v2795 = vadd.f32 %v1275, %v2791
  %v2796 = vsel %vm217, %v2794, 0.0
  %2797 = vadd.xlane.f32.xlu0 %v2796
  %v2798 = vpop.xlane.xlu0 %2797
  %v2799 = vsel %vm217, %v2795, 0.0
  %2800 = vadd.xlane.f32.xlu0 %v2799
  %v2801 = vpop.xlane.xlu0 %2800
  %v2802 = vrcp.pop 32.0
  %v2803 = vmul.f32 %v2798, %v2802
  %v2804 = vmul.f32 %v2801, %v2802
  %v2805 = vsub.f32 %v2794, %v2803
  %v2806 = vsub.f32 %v2795, %v2804
  %v2807 = vmul.f32 %v2805, %v2805
  %v2808 = vmul.f32 %v2806, %v2806
  %v2809 = vsel %vm217, %v2807, 0.0
  %2810 = vadd.xlane.f32.xlu0 %v2809
  %v2811 = vpop.xlane.xlu0 %2810
  %v2812 = vsel %vm217, %v2808, 0.0
  %2813 = vadd.xlane.f32.xlu0 %v2812
  %v2814 = vpop.xlane.xlu0 %2813
  %v2815 = vmul.f32 %v2811, %v2802
  %v2816 = vmul.f32 %v2814, %v2802
  %v2817 = vadd.f32 %v2815, 1e-05
  %v2818 = vadd.f32 %v2816, 1e-05
  %v2819 = vrsqrt.pop %v2817
  %v2820 = vrsqrt.pop %v2818
  %v2821 = vmul.f32 %v2805, %v2819
  %v2822 = vmul.f32 %v2806, %v2820
  %v2823 = vld [vmem:[%s61] sm:$0x1]
  %v2825 = vlaneseq
  %v2826 = vshrl.u32 %v2825, 7
  %v2827 = vsub.s32 0, %v2826
  %v2828 = vrot.slane %v2823, %v2827
  %v2830 = vmul.f32 %v2821, %v2828
  %v2831 = vmul.f32 %v2822, %v2828
  %v2832 = vld [vmem:[%s63] sm:$0x1]
  %v2834 = vlaneseq
  %v2835 = vshrl.u32 %v2834, 7
  %v2836 = vsub.s32 0, %v2835
  %v2837 = vrot.slane %v2832, %v2836
  %v2839 = vadd.f32 %v2830, %v2837
  %v2840 = vadd.f32 %v2831, %v2837
  %2843 = vrot.lane.b32.xlu0 %v2839, 32
  %v2844 = vpop.permute.xlu0 %2843
  %2845 = vrot.lane.b32.xlu0 %v2840, 32
  %v2846 = vpop.permute.xlu0 %2845
  %v2849 = vsel %vm217, %v1002, %v2844
  %v2850 = vsel %vm217, %v1007, %v2846
  %v2851 = vld [vmem:[%s65] sm:$0xff]
  %v2852 = vld [vmem:[%s65 + $0x8] sm:$0xff]
  %v2853 = vld [vmem:[%s65 + $0x10] sm:$0xff]
  %v2854 = vld [vmem:[%s65 + $0x18] sm:$0xff]
  %v2855 = vld [vmem:[%s65 + $0x20] sm:$0xff]
  %v2856 = vld [vmem:[%s65 + $0x28] sm:$0xff]
  %v2857 = vld [vmem:[%s65 + $0x30] sm:$0xff]
  %v2858 = vld [vmem:[%s65 + $0x38] sm:$0xff]
  %v2859 = vld [vmem:[%s67] sm:$0x1]
  %v2861 = vlaneseq
  %v2862 = vshrl.u32 %v2861, 7
  %v2863 = vsub.s32 0, %v2862
  %v2864 = vrot.slane %v2859, %v2863
  %v2867 = vsel %vm220, %v2849, 0
  %v2870 = vsel %vm220, %v2850, 0
  %2872 = vmatprep.subr.mxu0 0.0
  %2873 = vmatpush1.msra.mxu0 0.0
  %2874 = vmatprep.subr.mxu0 0.0
  %2875 = vmatpush1.msra.mxu0 0.0
  %2876 = vmatprep.subr.mxu0 0.0
  %2877 = vmatpush1.msra.mxu0 0.0
  %2878 = vmatprep.subr.mxu0 0.0
  %2879 = vmatpush1.msra.mxu0 0.0
  %2880 = vmatprep.subr.mxu0 0.0
  %2881 = vmatpush1.msra.mxu0 0.0
  %2882 = vmatprep.subr.mxu0 0.0
  %2883 = vmatpush1.msra.mxu0 0.0
  %2884 = vmatprep.subr.mxu0 0.0
  %2885 = vmatpush1.msra.mxu0 0.0
  %2886 = vmatprep.subr.mxu0 0.0
  %2887 = vmatpush1.msra.mxu0 0.0
  %2888 = vmatprep.subr.mxu0 0.0
  %2889 = vmatpush1.msra.mxu0 %v2858
  %2890 = vmatprep.subr.mxu0 0.0
  %2891 = vmatpush1.msra.mxu0 %v2857
  %2892 = vmatprep.subr.mxu0 0.0
  %2893 = vmatpush1.msra.mxu0 %v2856
  %2894 = vmatprep.subr.mxu0 0.0
  %2895 = vmatpush1.msra.mxu0 %v2855
  %2896 = vmatprep.subr.mxu0 0.0
  %2897 = vmatpush1.msra.mxu0 %v2854
  %2898 = vmatprep.subr.mxu0 0.0
  %2899 = vmatpush1.msra.mxu0 %v2853
  %2900 = vmatprep.subr.mxu0 0.0
  %2901 = vmatpush1.msra.mxu0 %v2852
  %2902 = vmatprep.subr.mxu0 0.0
  %2903 = vmatpush1.msra.mxu0 %v2851
  %2904 = vmatprep.subr.mxu0 0.0
  %2905 = vmatpush2.msra.mxu0 0.0
  %2906 = vmatprep.subr.mxu0 0.0
  %2907 = vmatpush2.msra.mxu0 0.0
  %2908 = vmatprep.subr.mxu0 0.0
  %2909 = vmatpush2.msra.mxu0 0.0
  %2910 = vmatprep.subr.mxu0 0.0
  %2911 = vmatpush2.msra.mxu0 0.0
  %2912 = vmatprep.subr.mxu0 0.0
  %2913 = vmatpush2.msra.mxu0 0.0
  %2914 = vmatprep.subr.mxu0 0.0
  %2915 = vmatpush2.msra.mxu0 0.0
  %2916 = vmatprep.subr.mxu0 0.0
  %2917 = vmatpush2.msra.mxu0 0.0
  %2918 = vmatprep.subr.mxu0 0.0
  %2919 = vmatpush2.msra.mxu0 0.0
  %2920 = vmatprep.subr.mxu0 0.0
  %2921 = vmatpush2.msra.mxu0 0.0
  %2922 = vmatprep.subr.mxu0 0.0
  %2923 = vmatpush2.msra.mxu0 0.0
  %2924 = vmatprep.subr.mxu0 0.0
  %2925 = vmatpush2.msra.mxu0 0.0
  %2926 = vmatprep.subr.mxu0 0.0
  %2927 = vmatpush2.msra.mxu0 0.0
  %2928 = vmatprep.subr.mxu0 0.0
  %2929 = vmatpush2.msra.mxu0 0.0
  %2930 = vmatprep.subr.mxu0 0.0
  %2931 = vmatpush2.msra.mxu0 0.0
  %2932 = vmatprep.subr.mxu0 0.0
  %2933 = vmatpush2.msra.mxu0 0.0
  %2934 = vmatprep.subr.mxu0 0.0
  %2935 = vmatpush2.msra.mxu0 0.0
  %2936 = vmatprep.mubr.f32.mxu0 0.0
  %2937 = vmatmul.mubr.f32.gmra.mxu0 %v2867
  %v2938 = vpop.f32.mrf.mxu0
  %v2939 = vadd.f32 %v2864, %v2938
  %v2940 = vpop.f32.mrf.mxu0
  %2941 = vmatprep.mubr.f32.mxu0 0.0
  %2942 = vmatmul.mubr.f32.gmra.mxu0 %v2870
  %v2943 = vpop.f32.mrf.mxu0
  %v2944 = vadd.f32 %v2864, %v2943
  %v2945 = vpop.f32.mrf.mxu0
  %2946 = vdwg.mxu0
  %v2947 = vcvt.s32.f32 %v1143
  %v2948 = vcvt.s32.f32 %v1158
  %2949 = vrot.lane.b32.xlu0 %v1002, 64
  %v2950 = vpop.permute.xlu0 %2949
  %2951 = vrot.lane.b32.xlu0 %v1007, 64
  %v2952 = vpop.permute.xlu0 %2951
  %v2955 = vsel %vm217, %v2939, %v2844
  %v2956 = vsel %vm217, %v2944, %v2846
  %v2957 = vsel %vm220, %v2955, %v2950
  %v2958 = vsel %vm220, %v2956, %v2952
  %v2959 = vsel %vm242, %v2957, %v2947
  %v2960 = vsel %vm242, %v2958, %v2948
  %2961 = vst [vmem:[%s69] sm:$0xff] %v2959
  %2962 = vst [vmem:[%s69 + $0x8] sm:$0xff] %v2960
  // Predicated region
  $region138: #{lskt_forward.1} parent=0 // pred_check
    _
  $region139: #{lskt_forward.1} parent=0 // pred_check_branch
    %2964 = sbr.rel (0) target = $region141
  $region140: #{lskt_forward.1} parent=0 // pred_region
    _
  $region141: #{lskt_forward.1} parent=0 // pred_fallthru
    _
  // Predicated region
  $region142: #{lskt_forward.1} parent=0 // pred_check
    _
  $region143: #{lskt_forward.1} parent=0 // pred_check_branch
    %2966 = sbr.rel (0) target = $region145
  $region144: #{lskt_forward.1} parent=0 // pred_region
    _
  $region145: #{lskt_forward.1} parent=0 // pred_fallthru
    _

</llo_original>
